<compile_context>
chip_gen: v7x
topology: tpu7x:2x2x1
jax: 0.10.0
libtpu: 0.0.40
codegen_flags: <defaults>
</compile_context>

<pallas_src>
import functools

import jax
import jax.numpy as jnp
from jax.experimental import pallas as pl
from jax.experimental.pallas import tpu as pltpu

BN_EPS = 1e-5


# ----------------------------- Pallas kernel ------------------------------- #

def tfsep_kernel(*refs, transition):
    if transition:
        (x_ref, wt_ref, bt_ref, wfd_ref, bfd_ref, wtd_ref, btd_ref,
         wfp_ref, bfp_ref, wtp_ref, btp_ref, sl_ref, sr_ref, out_ref) = refs
    else:
        (x_ref, wfd_ref, bfd_ref, wtd_ref, btd_ref,
         wfp_ref, bfp_ref, wtp_ref, btp_ref, sl_ref, sr_ref, out_ref) = refs

    H = out_ref.shape[0] // 2

    # -------- optional transition 1x1 conv (+ folded BN, ReLU) ------------- #
    if transition:
        xin = x_ref[...]                       # (Cin, F, T)
        y = bt_ref[...]                        # (Cout, 1, 1) folded BN bias
        for c in range(xin.shape[0]):          # unrolled VPU MACs (C << 128)
            y = y + wt_ref[c] * xin[c]         # (Cout,1,1) * (F,T) -> (Cout,F,T)
        x = jnp.maximum(y, 0.0)
    else:
        x = x_ref[...]                         # (Cout, F, T)

    x1 = x[:H]                                 # frequency-branch input (H, F, T)
    x2 = x[H:]                                 # temporal-branch input  (H, F, T)
    F = x1.shape[1]
    T = x1.shape[2]

    # -------- frequency branch: depthwise (3,1) over F, BN, ReLU ----------- #
    zrow = jnp.zeros((H, 1, T), x1.dtype)
    x1_up = jnp.concatenate([zrow, x1[:, :F - 1, :]], axis=1)   # x1[f-1], zero pad
    x1_dn = jnp.concatenate([x1[:, 1:, :], zrow], axis=1)       # x1[f+1], zero pad
    d1 = (wfd_ref[0] * x1_up + wfd_ref[1] * x1 + wfd_ref[2] * x1_dn
          + bfd_ref[...])
    d1 = jnp.maximum(d1, 0.0)
    m1 = jnp.sum(d1, axis=1, keepdims=True)    # (H, 1, T); 1/F folded into wfp
    y1 = bfp_ref[...]                          # (H, 1, 1)
    for i in range(H):                         # pointwise conv as unrolled MACs
        y1 = y1 + wfp_ref[i] * m1[i]           # (H,1,1) * (1,T) -> (H,1,T)
    y1 = jnp.maximum(y1, 0.0)
    out_ref[:H] = (x1 + y1).astype(out_ref.dtype)      # residual, bcast over F

    # -------- temporal branch: depthwise (1,3) over T, BN, ReLU ------------ #
    # Lane-axis shifts via exact (T,T) shift matrices on the MXU (zeros at the
    # boundary are built into the matrices; no masks / lane-offset copies).
    x2f = x2.reshape(H * F, T)                 # collapse leading dims (F % 8 == 0)
    x2_lf = jnp.dot(x2f, sl_ref[...],
                    preferred_element_type=jnp.float32).reshape(H, F, T)  # x2[t-1]
    x2_rt = jnp.dot(x2f, sr_ref[...],
                    preferred_element_type=jnp.float32).reshape(H, F, T)  # x2[t+1]
    d2 = (wtd_ref[0] * x2_lf + wtd_ref[1] * x2 + wtd_ref[2] * x2_rt
          + btd_ref[...])
    d2 = jnp.maximum(d2, 0.0)
    m2 = jnp.sum(d2, axis=2, keepdims=True)    # (H, F, 1); 1/T folded into wtp
    y2 = btp_ref[...]                          # (H, 1, 1)
    for i in range(H):
        y2 = y2 + wtp_ref[i] * m2[i]           # (H,1,1) * (F,1) -> (H,F,1)
    y2 = jnp.maximum(y2, 0.0)
    out_ref[H:] = (x2 + y2).astype(out_ref.dtype)      # residual, bcast over T


# --------------------------- host-side glue -------------------------------- #

def _fold_bn(gamma, beta, mean, var):
    scale = gamma / jnp.sqrt(var + BN_EPS)
    bias = beta - scale * mean
    return scale, bias


def build_kernel_params(p, transition, F, T, dtype=jnp.float32):
    """Fold eval-mode BN (+ 1/F, 1/T) into torch-layout conv weights and
    convert to the kernel's pre-broadcast layouts (no in-kernel reshapes)."""
    kp = {}
    if transition:
        s, b = _fold_bn(p["gt"], p["bt"], p["mt"], p["vt"])
        wt = jnp.transpose(p["wt"][:, :, 0, 0]) * s[None, :]          # (Cin, Cout)
        kp["wt"] = wt[:, :, None, None].astype(dtype)                 # (Cin,Cout,1,1)
        kp["bt"] = b[:, None, None].astype(dtype)                     # (Cout,1,1)
    s, b = _fold_bn(p["gfd"], p["bfd"], p["mfd"], p["vfd"])
    kp["wfd"] = ((jnp.transpose(p["wfd"][:, 0, :, 0]) * s[None, :])
                 [:, :, None, None]).astype(dtype)                    # (3,H,1,1)
    kp["bfd"] = b[:, None, None].astype(dtype)
    s, b = _fold_bn(p["gtd"], p["btd"], p["mtd"], p["vtd"])
    kp["wtd"] = ((jnp.transpose(p["wtd"][:, 0, 0, :]) * s[None, :])
                 [:, :, None, None]).astype(dtype)                    # (3,H,1,1)
    kp["btd"] = b[:, None, None].astype(dtype)
    s, b = _fold_bn(p["gfp"], p["bfp"], p["mfp"], p["vfp"])
    kp["wfp"] = (((jnp.transpose(p["wfp"][:, :, 0, 0]) * s[None, :]) / F)
                 [:, :, None, None]).astype(dtype)                    # (H,H,1,1)
    kp["bfp"] = b[:, None, None].astype(dtype)
    s, b = _fold_bn(p["gtp"], p["btp"], p["mtp"], p["vtp"])
    kp["wtp"] = (((jnp.transpose(p["wtp"][:, :, 0, 0]) * s[None, :]) / T)
                 [:, :, None, None]).astype(dtype)                    # (H,H,1,1)
    kp["btp"] = b[:, None, None].astype(dtype)
    return kp


def time_freq_sep_convs(x_nchw, torch_params, *, transition,
                        shuffle=False, shuffle_groups=10):
    """Forward pass of TimeFreqSepConvs. Input/output are NCHW (B, C, F, T)."""
    B, Cin, F, T = x_nchw.shape
    # Keep elementwise math in the activation dtype (bf16 stays bf16 on v6e/v7x);
    # matmuls accumulate in f32 via preferred_element_type.
    wdt = x_nchw.dtype if x_nchw.dtype == jnp.bfloat16 else jnp.float32
    kp = build_kernel_params(torch_params, transition, F, T, dtype=wdt)
    H = kp["bfd"].shape[0]
    Cout = 2 * H

    if shuffle:
        # ShuffleLayer = fixed channel permutation, folded into weights / input.
        # (Unverified against the torch ShuffleLayer placement; shuffle=False default.)
        c = Cout if transition else Cin
        assert c % shuffle_groups == 0
        n = jnp.arange(c)
        perm = (n % (c // shuffle_groups)) * shuffle_groups + n // (c // shuffle_groups)
        if transition:
            kp["wt"] = kp["wt"][:, perm]
            kp["bt"] = kp["bt"][perm]
        else:
            x_nchw = x_nchw[:, perm]

    # Exact shift matrices for the temporal (lane-axis) depthwise taps.
    sl = jnp.eye(T, k=1, dtype=wdt)    # right-multiply -> x[t-1] (zero at t=0)
    sr = jnp.eye(T, k=-1, dtype=wdt)   # right-multiply -> x[t+1] (zero at t=T-1)

    weight_args = []
    if transition:
        weight_args += [kp["wt"], kp["bt"]]
    weight_args += [kp["wfd"], kp["bfd"], kp["wtd"], kp["btd"],
                    kp["wfp"], kp["bfp"], kp["wtp"], kp["btp"], sl, sr]

    def const_spec(a):
        return pl.BlockSpec(a.shape, lambda b, _n=a.ndim: (0,) * _n)

    in_specs = [pl.BlockSpec((None, Cin, F, T), lambda b: (b, 0, 0, 0))]
    in_specs += [const_spec(a) for a in weight_args]
    out_spec = pl.BlockSpec((None, Cout, F, T), lambda b: (b, 0, 0, 0))

    kernel = functools.partial(tfsep_kernel, transition=transition)
    out = pl.pallas_call(
        kernel,
        grid=(B,),
        in_specs=in_specs,
        out_specs=out_spec,
        out_shape=jax.ShapeDtypeStruct((B, Cout, F, T), x_nchw.dtype),
        compiler_params=pltpu.CompilerParams(
            dimension_semantics=("parallel",),          # shard B across cores (v7x)
            vmem_limit_bytes=32 * 1024 * 1024),         # fits v5e/v6e/v7x budgets
    )(x_nchw, *weight_args)
    return out


# --------------------- pure-JAX NCHW reference (check) --------------------- #

def ref_forward_nchw(x, p, *, transition):
    def conv(x, w, padding, groups=1):
        return jax.lax.conv_general_dilated(
            x, w, window_strides=(1, 1), padding=padding,
            dimension_numbers=("NCHW", "OIHW", "NCHW"),
            feature_group_count=groups)

    def bn_relu(y, g, b, m, v):
        s = g / jnp.sqrt(v + BN_EPS)
        return jnp.maximum((y - m[None, :, None, None]) * s[None, :, None, None]
                           + b[None, :, None, None], 0.0)

    if transition:
        x = bn_relu(conv(x, p["wt"], "VALID"), p["gt"], p["bt"], p["mt"], p["vt"])
    H = p["wfp"].shape[0]
    x1, x2 = x[:, :H], x[:, H:]
    d1 = bn_relu(conv(x1, p["wfd"], ((1, 1), (0, 0)), groups=H),
                 p["gfd"], p["bfd"], p["mfd"], p["vfd"])
    m1 = d1.mean(axis=2, keepdims=True)
    p1 = bn_relu(conv(m1, p["wfp"], "VALID"), p["gfp"], p["bfp"], p["mfp"], p["vfp"])
    x1o = p1 + x1
    d2 = bn_relu(conv(x2, p["wtd"], ((0, 0), (1, 1)), groups=H),
                 p["gtd"], p["btd"], p["mtd"], p["vtd"])
    m2 = d2.mean(axis=3, keepdims=True)
    p2 = bn_relu(conv(m2, p["wtp"], "VALID"), p["gtp"], p["btp"], p["mtp"], p["vtp"])
    x2o = p2 + x2
    return jnp.concatenate([x1o, x2o], axis=1)


# --------------------------------- main ------------------------------------ #

def make_params(key, cin, cout):
    H = cout // 2
    ks = iter(jax.random.split(key, 32))
    nrm = lambda s: 0.2 * jax.random.normal(next(ks), s, jnp.float32)
    gam = lambda c: 1.0 + 0.1 * jax.random.normal(next(ks), (c,), jnp.float32)
    bet = lambda c: 0.1 * jax.random.normal(next(ks), (c,), jnp.float32)
    mu = lambda c: 0.1 * jax.random.normal(next(ks), (c,), jnp.float32)
    var = lambda c: 1.0 + 0.2 * jax.random.uniform(next(ks), (c,), jnp.float32)
    return {
        "wt": nrm((cout, cin, 1, 1)), "gt": gam(cout), "bt": bet(cout),
        "mt": mu(cout), "vt": var(cout),
        "wfd": nrm((H, 1, 3, 1)), "gfd": gam(H), "bfd": bet(H),
        "mfd": mu(H), "vfd": var(H),
        "wtd": nrm((H, 1, 1, 3)), "gtd": gam(H), "btd": bet(H),
        "mtd": mu(H), "vtd": var(H),
        "wfp": nrm((H, H, 1, 1)), "gfp": gam(H), "bfp": bet(H),
        "mfp": mu(H), "vfp": var(H),
        "wtp": nrm((H, H, 1, 1)), "gtp": gam(H), "btp": bet(H),
        "mtp": mu(H), "vtp": var(H),
    }


if __name__ == "__main__":
    key = jax.random.PRNGKey(0)
    kp1, kp2, kx1, kx2 = jax.random.split(key, 4)
    B, F, T = 2, 16, 24

    # (Cin, Cout): transition (8 -> 16) and non-transition (16 -> 16) paths.
    for cin, cout, kparam, kx in [(8, 16, kp1, kx1), (16, 16, kp2, kx2)]:
        transition = cin != cout
        params = make_params(kparam, cin, cout)
        x = jax.random.normal(kx, (B, cin, F, T), jnp.float32)

        out = time_freq_sep_convs(x, params, transition=transition)
        out = jax.block_until_ready(out)

        ref = ref_forward_nchw(x, params, transition=transition)
        assert out.shape == (B, cout, F, T), out.shape
        err = float(jnp.max(jnp.abs(out - ref)))
        assert jnp.allclose(out, ref, atol=1e-4, rtol=1e-4), err

    print("KERNEL_OK")
</pallas_src>

<mosaic_0001>
module attributes {stable_mosaic.version = 11 : i64} {
  func.func @tfsep_kernel(%arg0: i32, %arg1: memref<1x8x16x24xf32, #tpu.memory_space<vmem>>, %arg2: memref<8x16x1x1xf32, #tpu.memory_space<vmem>>, %arg3: memref<16x1x1xf32, #tpu.memory_space<vmem>>, %arg4: memref<3x8x1x1xf32, #tpu.memory_space<vmem>>, %arg5: memref<8x1x1xf32, #tpu.memory_space<vmem>>, %arg6: memref<3x8x1x1xf32, #tpu.memory_space<vmem>>, %arg7: memref<8x1x1xf32, #tpu.memory_space<vmem>>, %arg8: memref<8x8x1x1xf32, #tpu.memory_space<vmem>>, %arg9: memref<8x1x1xf32, #tpu.memory_space<vmem>>, %arg10: memref<8x8x1x1xf32, #tpu.memory_space<vmem>>, %arg11: memref<8x1x1xf32, #tpu.memory_space<vmem>>, %arg12: memref<24x24xf32, #tpu.memory_space<vmem>>, %arg13: memref<24x24xf32, #tpu.memory_space<vmem>>, %arg14: memref<1x16x16x24xf32, #tpu.memory_space<vmem>>) attributes {dimension_semantics = [#tpu.dimension_semantics<parallel>], iteration_bounds = array<i64: 2>, scalar_prefetch = 0 : i64, scratch_operands = 0 : i64, tpu.core_type = #tpu.core_type<tc>, window_params = [{transform_indices = @transform_0, window_bounds = array<i64: 1, 8, 16, 24>}, {pipeline_mode = #tpu.pipeline_mode<synchronous>, transform_indices = @transform_1, window_bounds = array<i64: 8, 16, 1, 1>}, {pipeline_mode = #tpu.pipeline_mode<synchronous>, transform_indices = @transform_2, window_bounds = array<i64: 16, 1, 1>}, {pipeline_mode = #tpu.pipeline_mode<synchronous>, transform_indices = @transform_3, window_bounds = array<i64: 3, 8, 1, 1>}, {pipeline_mode = #tpu.pipeline_mode<synchronous>, transform_indices = @transform_4, window_bounds = array<i64: 8, 1, 1>}, {pipeline_mode = #tpu.pipeline_mode<synchronous>, transform_indices = @transform_5, window_bounds = array<i64: 3, 8, 1, 1>}, {pipeline_mode = #tpu.pipeline_mode<synchronous>, transform_indices = @transform_6, window_bounds = array<i64: 8, 1, 1>}, {pipeline_mode = #tpu.pipeline_mode<synchronous>, transform_indices = @transform_7, window_bounds = array<i64: 8, 8, 1, 1>}, {pipeline_mode = #tpu.pipeline_mode<synchronous>, transform_indices = @transform_8, window_bounds = array<i64: 8, 1, 1>}, {pipeline_mode = #tpu.pipeline_mode<synchronous>, transform_indices = @transform_9, window_bounds = array<i64: 8, 8, 1, 1>}, {pipeline_mode = #tpu.pipeline_mode<synchronous>, transform_indices = @transform_10, window_bounds = array<i64: 8, 1, 1>}, {pipeline_mode = #tpu.pipeline_mode<synchronous>, transform_indices = @transform_11, window_bounds = array<i64: 24, 24>}, {pipeline_mode = #tpu.pipeline_mode<synchronous>, transform_indices = @transform_12, window_bounds = array<i64: 24, 24>}, {transform_indices = @transform_13, window_bounds = array<i64: 1, 16, 16, 24>}]} {
    %c0 = arith.constant 0 : index
    %c0_0 = arith.constant 0 : index
    %c0_1 = arith.constant 0 : index
    %c0_2 = arith.constant 0 : index
    %0 = vector.load %arg1[%c0, %c0_0, %c0_1, %c0_2] : memref<1x8x16x24xf32, #tpu.memory_space<vmem>>, vector<1x8x16x24xf32>
    %1 = vector.shape_cast %0 : vector<1x8x16x24xf32> to vector<8x16x24xf32>
    %c0_3 = arith.constant 0 : index
    %c0_4 = arith.constant 0 : index
    %c0_5 = arith.constant 0 : index
    %2 = vector.load %arg3[%c0_3, %c0_4, %c0_5] : memref<16x1x1xf32, #tpu.memory_space<vmem>>, vector<16x1x1xf32>
    %c0_6 = arith.constant 0 : index
    %c0_7 = arith.constant 0 : index
    %c0_8 = arith.constant 0 : index
    %c0_9 = arith.constant 0 : index
    %3 = vector.load %arg2[%c0_6, %c0_7, %c0_8, %c0_9] : memref<8x16x1x1xf32, #tpu.memory_space<vmem>>, vector<1x16x1x1xf32>
    %4 = vector.shape_cast %3 : vector<1x16x1x1xf32> to vector<16x1x1xf32>
    %5 = vector.extract_strided_slice %1 {offsets = [0, 0, 0], sizes = [1, 16, 24], strides = [1, 1, 1]} : vector<8x16x24xf32> to vector<1x16x24xf32>
    %6 = vector.shape_cast %5 : vector<1x16x24xf32> to vector<16x24xf32>
    %7 = vector.shape_cast %6 : vector<16x24xf32> to vector<1x16x24xf32>
    %8 = vector.broadcast %4 : vector<16x1x1xf32> to vector<16x16x24xf32>
    %9 = vector.broadcast %7 : vector<1x16x24xf32> to vector<16x16x24xf32>
    %10 = arith.mulf %8, %9 : vector<16x16x24xf32>
    %11 = vector.broadcast %2 : vector<16x1x1xf32> to vector<16x16x24xf32>
    %12 = arith.addf %11, %10 : vector<16x16x24xf32>
    %c1 = arith.constant 1 : index
    %c0_10 = arith.constant 0 : index
    %c0_11 = arith.constant 0 : index
    %c0_12 = arith.constant 0 : index
    %13 = vector.load %arg2[%c1, %c0_10, %c0_11, %c0_12] : memref<8x16x1x1xf32, #tpu.memory_space<vmem>>, vector<1x16x1x1xf32>
    %14 = vector.shape_cast %13 : vector<1x16x1x1xf32> to vector<16x1x1xf32>
    %15 = vector.extract_strided_slice %1 {offsets = [1, 0, 0], sizes = [1, 16, 24], strides = [1, 1, 1]} : vector<8x16x24xf32> to vector<1x16x24xf32>
    %16 = vector.shape_cast %15 : vector<1x16x24xf32> to vector<16x24xf32>
    %17 = vector.shape_cast %16 : vector<16x24xf32> to vector<1x16x24xf32>
    %18 = vector.broadcast %14 : vector<16x1x1xf32> to vector<16x16x24xf32>
    %19 = vector.broadcast %17 : vector<1x16x24xf32> to vector<16x16x24xf32>
    %20 = arith.mulf %18, %19 : vector<16x16x24xf32>
    %21 = arith.addf %12, %20 : vector<16x16x24xf32>
    %c2 = arith.constant 2 : index
    %c0_13 = arith.constant 0 : index
    %c0_14 = arith.constant 0 : index
    %c0_15 = arith.constant 0 : index
    %22 = vector.load %arg2[%c2, %c0_13, %c0_14, %c0_15] : memref<8x16x1x1xf32, #tpu.memory_space<vmem>>, vector<1x16x1x1xf32>
    %23 = vector.shape_cast %22 : vector<1x16x1x1xf32> to vector<16x1x1xf32>
    %24 = vector.extract_strided_slice %1 {offsets = [2, 0, 0], sizes = [1, 16, 24], strides = [1, 1, 1]} : vector<8x16x24xf32> to vector<1x16x24xf32>
    %25 = vector.shape_cast %24 : vector<1x16x24xf32> to vector<16x24xf32>
    %26 = vector.shape_cast %25 : vector<16x24xf32> to vector<1x16x24xf32>
    %27 = vector.broadcast %23 : vector<16x1x1xf32> to vector<16x16x24xf32>
    %28 = vector.broadcast %26 : vector<1x16x24xf32> to vector<16x16x24xf32>
    %29 = arith.mulf %27, %28 : vector<16x16x24xf32>
    %30 = arith.addf %21, %29 : vector<16x16x24xf32>
    %c3 = arith.constant 3 : index
    %c0_16 = arith.constant 0 : index
    %c0_17 = arith.constant 0 : index
    %c0_18 = arith.constant 0 : index
    %31 = vector.load %arg2[%c3, %c0_16, %c0_17, %c0_18] : memref<8x16x1x1xf32, #tpu.memory_space<vmem>>, vector<1x16x1x1xf32>
    %32 = vector.shape_cast %31 : vector<1x16x1x1xf32> to vector<16x1x1xf32>
    %33 = vector.extract_strided_slice %1 {offsets = [3, 0, 0], sizes = [1, 16, 24], strides = [1, 1, 1]} : vector<8x16x24xf32> to vector<1x16x24xf32>
    %34 = vector.shape_cast %33 : vector<1x16x24xf32> to vector<16x24xf32>
    %35 = vector.shape_cast %34 : vector<16x24xf32> to vector<1x16x24xf32>
    %36 = vector.broadcast %32 : vector<16x1x1xf32> to vector<16x16x24xf32>
    %37 = vector.broadcast %35 : vector<1x16x24xf32> to vector<16x16x24xf32>
    %38 = arith.mulf %36, %37 : vector<16x16x24xf32>
    %39 = arith.addf %30, %38 : vector<16x16x24xf32>
    %c4 = arith.constant 4 : index
    %c0_19 = arith.constant 0 : index
    %c0_20 = arith.constant 0 : index
    %c0_21 = arith.constant 0 : index
    %40 = vector.load %arg2[%c4, %c0_19, %c0_20, %c0_21] : memref<8x16x1x1xf32, #tpu.memory_space<vmem>>, vector<1x16x1x1xf32>
    %41 = vector.shape_cast %40 : vector<1x16x1x1xf32> to vector<16x1x1xf32>
    %42 = vector.extract_strided_slice %1 {offsets = [4, 0, 0], sizes = [1, 16, 24], strides = [1, 1, 1]} : vector<8x16x24xf32> to vector<1x16x24xf32>
    %43 = vector.shape_cast %42 : vector<1x16x24xf32> to vector<16x24xf32>
    %44 = vector.shape_cast %43 : vector<16x24xf32> to vector<1x16x24xf32>
    %45 = vector.broadcast %41 : vector<16x1x1xf32> to vector<16x16x24xf32>
    %46 = vector.broadcast %44 : vector<1x16x24xf32> to vector<16x16x24xf32>
    %47 = arith.mulf %45, %46 : vector<16x16x24xf32>
    %48 = arith.addf %39, %47 : vector<16x16x24xf32>
    %c5 = arith.constant 5 : index
    %c0_22 = arith.constant 0 : index
    %c0_23 = arith.constant 0 : index
    %c0_24 = arith.constant 0 : index
    %49 = vector.load %arg2[%c5, %c0_22, %c0_23, %c0_24] : memref<8x16x1x1xf32, #tpu.memory_space<vmem>>, vector<1x16x1x1xf32>
    %50 = vector.shape_cast %49 : vector<1x16x1x1xf32> to vector<16x1x1xf32>
    %51 = vector.extract_strided_slice %1 {offsets = [5, 0, 0], sizes = [1, 16, 24], strides = [1, 1, 1]} : vector<8x16x24xf32> to vector<1x16x24xf32>
    %52 = vector.shape_cast %51 : vector<1x16x24xf32> to vector<16x24xf32>
    %53 = vector.shape_cast %52 : vector<16x24xf32> to vector<1x16x24xf32>
    %54 = vector.broadcast %50 : vector<16x1x1xf32> to vector<16x16x24xf32>
    %55 = vector.broadcast %53 : vector<1x16x24xf32> to vector<16x16x24xf32>
    %56 = arith.mulf %54, %55 : vector<16x16x24xf32>
    %57 = arith.addf %48, %56 : vector<16x16x24xf32>
    %c6 = arith.constant 6 : index
    %c0_25 = arith.constant 0 : index
    %c0_26 = arith.constant 0 : index
    %c0_27 = arith.constant 0 : index
    %58 = vector.load %arg2[%c6, %c0_25, %c0_26, %c0_27] : memref<8x16x1x1xf32, #tpu.memory_space<vmem>>, vector<1x16x1x1xf32>
    %59 = vector.shape_cast %58 : vector<1x16x1x1xf32> to vector<16x1x1xf32>
    %60 = vector.extract_strided_slice %1 {offsets = [6, 0, 0], sizes = [1, 16, 24], strides = [1, 1, 1]} : vector<8x16x24xf32> to vector<1x16x24xf32>
    %61 = vector.shape_cast %60 : vector<1x16x24xf32> to vector<16x24xf32>
    %62 = vector.shape_cast %61 : vector<16x24xf32> to vector<1x16x24xf32>
    %63 = vector.broadcast %59 : vector<16x1x1xf32> to vector<16x16x24xf32>
    %64 = vector.broadcast %62 : vector<1x16x24xf32> to vector<16x16x24xf32>
    %65 = arith.mulf %63, %64 : vector<16x16x24xf32>
    %66 = arith.addf %57, %65 : vector<16x16x24xf32>
    %c7 = arith.constant 7 : index
    %c0_28 = arith.constant 0 : index
    %c0_29 = arith.constant 0 : index
    %c0_30 = arith.constant 0 : index
    %67 = vector.load %arg2[%c7, %c0_28, %c0_29, %c0_30] : memref<8x16x1x1xf32, #tpu.memory_space<vmem>>, vector<1x16x1x1xf32>
    %68 = vector.shape_cast %67 : vector<1x16x1x1xf32> to vector<16x1x1xf32>
    %69 = vector.extract_strided_slice %1 {offsets = [7, 0, 0], sizes = [1, 16, 24], strides = [1, 1, 1]} : vector<8x16x24xf32> to vector<1x16x24xf32>
    %70 = vector.shape_cast %69 : vector<1x16x24xf32> to vector<16x24xf32>
    %71 = vector.shape_cast %70 : vector<16x24xf32> to vector<1x16x24xf32>
    %72 = vector.broadcast %68 : vector<16x1x1xf32> to vector<16x16x24xf32>
    %73 = vector.broadcast %71 : vector<1x16x24xf32> to vector<16x16x24xf32>
    %74 = arith.mulf %72, %73 : vector<16x16x24xf32>
    %75 = arith.addf %66, %74 : vector<16x16x24xf32>
    %cst = arith.constant 0.000000e+00 : f32
    %76 = vector.broadcast %cst : f32 to vector<16x16x24xf32>
    %77 = arith.maximumf %75, %76 : vector<16x16x24xf32>
    %78 = vector.extract_strided_slice %77 {offsets = [0, 0, 0], sizes = [8, 16, 24], strides = [1, 1, 1]} : vector<16x16x24xf32> to vector<8x16x24xf32>
    %79 = vector.extract_strided_slice %77 {offsets = [8, 0, 0], sizes = [8, 16, 24], strides = [1, 1, 1]} : vector<16x16x24xf32> to vector<8x16x24xf32>
    %cst_31 = arith.constant 0.000000e+00 : f32
    %80 = vector.broadcast %cst_31 : f32 to vector<8x1x24xf32>
    %81 = vector.extract_strided_slice %78 {offsets = [0, 0, 0], sizes = [8, 15, 24], strides = [1, 1, 1]} : vector<8x16x24xf32> to vector<8x15x24xf32>
    %82 = tpu.concatenate %80, %81 in 1 : vector<8x1x24xf32>, vector<8x15x24xf32> -> vector<8x16x24xf32>
    %83 = vector.extract_strided_slice %78 {offsets = [0, 1, 0], sizes = [8, 15, 24], strides = [1, 1, 1]} : vector<8x16x24xf32> to vector<8x15x24xf32>
    %84 = tpu.concatenate %83, %80 in 1 : vector<8x15x24xf32>, vector<8x1x24xf32> -> vector<8x16x24xf32>
    %c0_32 = arith.constant 0 : index
    %c0_33 = arith.constant 0 : index
    %c0_34 = arith.constant 0 : index
    %c0_35 = arith.constant 0 : index
    %85 = vector.load %arg4[%c0_32, %c0_33, %c0_34, %c0_35] : memref<3x8x1x1xf32, #tpu.memory_space<vmem>>, vector<1x8x1x1xf32>
    %86 = vector.shape_cast %85 : vector<1x8x1x1xf32> to vector<8x1x1xf32>
    %87 = vector.broadcast %86 : vector<8x1x1xf32> to vector<8x16x24xf32>
    %88 = arith.mulf %87, %82 : vector<8x16x24xf32>
    %c1_36 = arith.constant 1 : index
    %c0_37 = arith.constant 0 : index
    %c0_38 = arith.constant 0 : index
    %c0_39 = arith.constant 0 : index
    %89 = vector.load %arg4[%c1_36, %c0_37, %c0_38, %c0_39] : memref<3x8x1x1xf32, #tpu.memory_space<vmem>>, vector<1x8x1x1xf32>
    %90 = vector.shape_cast %89 : vector<1x8x1x1xf32> to vector<8x1x1xf32>
    %91 = vector.broadcast %90 : vector<8x1x1xf32> to vector<8x16x24xf32>
    %92 = arith.mulf %91, %78 : vector<8x16x24xf32>
    %93 = arith.addf %88, %92 : vector<8x16x24xf32>
    %c2_40 = arith.constant 2 : index
    %c0_41 = arith.constant 0 : index
    %c0_42 = arith.constant 0 : index
    %c0_43 = arith.constant 0 : index
    %94 = vector.load %arg4[%c2_40, %c0_41, %c0_42, %c0_43] : memref<3x8x1x1xf32, #tpu.memory_space<vmem>>, vector<1x8x1x1xf32>
    %95 = vector.shape_cast %94 : vector<1x8x1x1xf32> to vector<8x1x1xf32>
    %96 = vector.broadcast %95 : vector<8x1x1xf32> to vector<8x16x24xf32>
    %97 = arith.mulf %96, %84 : vector<8x16x24xf32>
    %98 = arith.addf %93, %97 : vector<8x16x24xf32>
    %c0_44 = arith.constant 0 : index
    %c0_45 = arith.constant 0 : index
    %c0_46 = arith.constant 0 : index
    %99 = vector.load %arg5[%c0_44, %c0_45, %c0_46] : memref<8x1x1xf32, #tpu.memory_space<vmem>>, vector<8x1x1xf32>
    %100 = vector.broadcast %99 : vector<8x1x1xf32> to vector<8x16x24xf32>
    %101 = arith.addf %98, %100 : vector<8x16x24xf32>
    %cst_47 = arith.constant 0.000000e+00 : f32
    %102 = vector.broadcast %cst_47 : f32 to vector<8x16x24xf32>
    %103 = arith.maximumf %101, %102 : vector<8x16x24xf32>
    %cst_48 = arith.constant dense<0.000000e+00> : vector<8x24xf32>
    %104 = vector.multi_reduction <add>, %103, %cst_48 [1] : vector<8x16x24xf32> to vector<8x24xf32>
    %105 = vector.shape_cast %104 : vector<8x24xf32> to vector<8x1x24xf32>
    %c0_49 = arith.constant 0 : index
    %c0_50 = arith.constant 0 : index
    %c0_51 = arith.constant 0 : index
    %106 = vector.load %arg9[%c0_49, %c0_50, %c0_51] : memref<8x1x1xf32, #tpu.memory_space<vmem>>, vector<8x1x1xf32>
    %c0_52 = arith.constant 0 : index
    %c0_53 = arith.constant 0 : index
    %c0_54 = arith.constant 0 : index
    %c0_55 = arith.constant 0 : index
    %107 = vector.load %arg8[%c0_52, %c0_53, %c0_54, %c0_55] : memref<8x8x1x1xf32, #tpu.memory_space<vmem>>, vector<1x8x1x1xf32>
    %108 = vector.shape_cast %107 : vector<1x8x1x1xf32> to vector<8x1x1xf32>
    %109 = vector.extract_strided_slice %105 {offsets = [0, 0, 0], sizes = [1, 1, 24], strides = [1, 1, 1]} : vector<8x1x24xf32> to vector<1x1x24xf32>
    %110 = vector.shape_cast %109 : vector<1x1x24xf32> to vector<1x24xf32>
    %111 = vector.shape_cast %110 : vector<1x24xf32> to vector<1x1x24xf32>
    %112 = vector.broadcast %108 : vector<8x1x1xf32> to vector<8x1x24xf32>
    %113 = vector.broadcast %111 : vector<1x1x24xf32> to vector<8x1x24xf32>
    %114 = arith.mulf %112, %113 : vector<8x1x24xf32>
    %115 = vector.broadcast %106 : vector<8x1x1xf32> to vector<8x1x24xf32>
    %116 = arith.addf %115, %114 : vector<8x1x24xf32>
    %c1_56 = arith.constant 1 : index
    %c0_57 = arith.constant 0 : index
    %c0_58 = arith.constant 0 : index
    %c0_59 = arith.constant 0 : index
    %117 = vector.load %arg8[%c1_56, %c0_57, %c0_58, %c0_59] : memref<8x8x1x1xf32, #tpu.memory_space<vmem>>, vector<1x8x1x1xf32>
    %118 = vector.shape_cast %117 : vector<1x8x1x1xf32> to vector<8x1x1xf32>
    %119 = vector.extract_strided_slice %105 {offsets = [1, 0, 0], sizes = [1, 1, 24], strides = [1, 1, 1]} : vector<8x1x24xf32> to vector<1x1x24xf32>
    %120 = vector.shape_cast %119 : vector<1x1x24xf32> to vector<1x24xf32>
    %121 = vector.shape_cast %120 : vector<1x24xf32> to vector<1x1x24xf32>
    %122 = vector.broadcast %118 : vector<8x1x1xf32> to vector<8x1x24xf32>
    %123 = vector.broadcast %121 : vector<1x1x24xf32> to vector<8x1x24xf32>
    %124 = arith.mulf %122, %123 : vector<8x1x24xf32>
    %125 = arith.addf %116, %124 : vector<8x1x24xf32>
    %c2_60 = arith.constant 2 : index
    %c0_61 = arith.constant 0 : index
    %c0_62 = arith.constant 0 : index
    %c0_63 = arith.constant 0 : index
    %126 = vector.load %arg8[%c2_60, %c0_61, %c0_62, %c0_63] : memref<8x8x1x1xf32, #tpu.memory_space<vmem>>, vector<1x8x1x1xf32>
    %127 = vector.shape_cast %126 : vector<1x8x1x1xf32> to vector<8x1x1xf32>
    %128 = vector.extract_strided_slice %105 {offsets = [2, 0, 0], sizes = [1, 1, 24], strides = [1, 1, 1]} : vector<8x1x24xf32> to vector<1x1x24xf32>
    %129 = vector.shape_cast %128 : vector<1x1x24xf32> to vector<1x24xf32>
    %130 = vector.shape_cast %129 : vector<1x24xf32> to vector<1x1x24xf32>
    %131 = vector.broadcast %127 : vector<8x1x1xf32> to vector<8x1x24xf32>
    %132 = vector.broadcast %130 : vector<1x1x24xf32> to vector<8x1x24xf32>
    %133 = arith.mulf %131, %132 : vector<8x1x24xf32>
    %134 = arith.addf %125, %133 : vector<8x1x24xf32>
    %c3_64 = arith.constant 3 : index
    %c0_65 = arith.constant 0 : index
    %c0_66 = arith.constant 0 : index
    %c0_67 = arith.constant 0 : index
    %135 = vector.load %arg8[%c3_64, %c0_65, %c0_66, %c0_67] : memref<8x8x1x1xf32, #tpu.memory_space<vmem>>, vector<1x8x1x1xf32>
    %136 = vector.shape_cast %135 : vector<1x8x1x1xf32> to vector<8x1x1xf32>
    %137 = vector.extract_strided_slice %105 {offsets = [3, 0, 0], sizes = [1, 1, 24], strides = [1, 1, 1]} : vector<8x1x24xf32> to vector<1x1x24xf32>
    %138 = vector.shape_cast %137 : vector<1x1x24xf32> to vector<1x24xf32>
    %139 = vector.shape_cast %138 : vector<1x24xf32> to vector<1x1x24xf32>
    %140 = vector.broadcast %136 : vector<8x1x1xf32> to vector<8x1x24xf32>
    %141 = vector.broadcast %139 : vector<1x1x24xf32> to vector<8x1x24xf32>
    %142 = arith.mulf %140, %141 : vector<8x1x24xf32>
    %143 = arith.addf %134, %142 : vector<8x1x24xf32>
    %c4_68 = arith.constant 4 : index
    %c0_69 = arith.constant 0 : index
    %c0_70 = arith.constant 0 : index
    %c0_71 = arith.constant 0 : index
    %144 = vector.load %arg8[%c4_68, %c0_69, %c0_70, %c0_71] : memref<8x8x1x1xf32, #tpu.memory_space<vmem>>, vector<1x8x1x1xf32>
    %145 = vector.shape_cast %144 : vector<1x8x1x1xf32> to vector<8x1x1xf32>
    %146 = vector.extract_strided_slice %105 {offsets = [4, 0, 0], sizes = [1, 1, 24], strides = [1, 1, 1]} : vector<8x1x24xf32> to vector<1x1x24xf32>
    %147 = vector.shape_cast %146 : vector<1x1x24xf32> to vector<1x24xf32>
    %148 = vector.shape_cast %147 : vector<1x24xf32> to vector<1x1x24xf32>
    %149 = vector.broadcast %145 : vector<8x1x1xf32> to vector<8x1x24xf32>
    %150 = vector.broadcast %148 : vector<1x1x24xf32> to vector<8x1x24xf32>
    %151 = arith.mulf %149, %150 : vector<8x1x24xf32>
    %152 = arith.addf %143, %151 : vector<8x1x24xf32>
    %c5_72 = arith.constant 5 : index
    %c0_73 = arith.constant 0 : index
    %c0_74 = arith.constant 0 : index
    %c0_75 = arith.constant 0 : index
    %153 = vector.load %arg8[%c5_72, %c0_73, %c0_74, %c0_75] : memref<8x8x1x1xf32, #tpu.memory_space<vmem>>, vector<1x8x1x1xf32>
    %154 = vector.shape_cast %153 : vector<1x8x1x1xf32> to vector<8x1x1xf32>
    %155 = vector.extract_strided_slice %105 {offsets = [5, 0, 0], sizes = [1, 1, 24], strides = [1, 1, 1]} : vector<8x1x24xf32> to vector<1x1x24xf32>
    %156 = vector.shape_cast %155 : vector<1x1x24xf32> to vector<1x24xf32>
    %157 = vector.shape_cast %156 : vector<1x24xf32> to vector<1x1x24xf32>
    %158 = vector.broadcast %154 : vector<8x1x1xf32> to vector<8x1x24xf32>
    %159 = vector.broadcast %157 : vector<1x1x24xf32> to vector<8x1x24xf32>
    %160 = arith.mulf %158, %159 : vector<8x1x24xf32>
    %161 = arith.addf %152, %160 : vector<8x1x24xf32>
    %c6_76 = arith.constant 6 : index
    %c0_77 = arith.constant 0 : index
    %c0_78 = arith.constant 0 : index
    %c0_79 = arith.constant 0 : index
    %162 = vector.load %arg8[%c6_76, %c0_77, %c0_78, %c0_79] : memref<8x8x1x1xf32, #tpu.memory_space<vmem>>, vector<1x8x1x1xf32>
    %163 = vector.shape_cast %162 : vector<1x8x1x1xf32> to vector<8x1x1xf32>
    %164 = vector.extract_strided_slice %105 {offsets = [6, 0, 0], sizes = [1, 1, 24], strides = [1, 1, 1]} : vector<8x1x24xf32> to vector<1x1x24xf32>
    %165 = vector.shape_cast %164 : vector<1x1x24xf32> to vector<1x24xf32>
    %166 = vector.shape_cast %165 : vector<1x24xf32> to vector<1x1x24xf32>
    %167 = vector.broadcast %163 : vector<8x1x1xf32> to vector<8x1x24xf32>
    %168 = vector.broadcast %166 : vector<1x1x24xf32> to vector<8x1x24xf32>
    %169 = arith.mulf %167, %168 : vector<8x1x24xf32>
    %170 = arith.addf %161, %169 : vector<8x1x24xf32>
    %c7_80 = arith.constant 7 : index
    %c0_81 = arith.constant 0 : index
    %c0_82 = arith.constant 0 : index
    %c0_83 = arith.constant 0 : index
    %171 = vector.load %arg8[%c7_80, %c0_81, %c0_82, %c0_83] : memref<8x8x1x1xf32, #tpu.memory_space<vmem>>, vector<1x8x1x1xf32>
    %172 = vector.shape_cast %171 : vector<1x8x1x1xf32> to vector<8x1x1xf32>
    %173 = vector.extract_strided_slice %105 {offsets = [7, 0, 0], sizes = [1, 1, 24], strides = [1, 1, 1]} : vector<8x1x24xf32> to vector<1x1x24xf32>
    %174 = vector.shape_cast %173 : vector<1x1x24xf32> to vector<1x24xf32>
    %175 = vector.shape_cast %174 : vector<1x24xf32> to vector<1x1x24xf32>
    %176 = vector.broadcast %172 : vector<8x1x1xf32> to vector<8x1x24xf32>
    %177 = vector.broadcast %175 : vector<1x1x24xf32> to vector<8x1x24xf32>
    %178 = arith.mulf %176, %177 : vector<8x1x24xf32>
    %179 = arith.addf %170, %178 : vector<8x1x24xf32>
    %cst_84 = arith.constant 0.000000e+00 : f32
    %180 = vector.broadcast %cst_84 : f32 to vector<8x1x24xf32>
    %181 = arith.maximumf %179, %180 : vector<8x1x24xf32>
    %182 = vector.broadcast %181 : vector<8x1x24xf32> to vector<8x16x24xf32>
    %183 = arith.addf %78, %182 : vector<8x16x24xf32>
    %c0_85 = arith.constant 0 : index
    %c0_86 = arith.constant 0 : index
    %c0_87 = arith.constant 0 : index
    %c0_88 = arith.constant 0 : index
    %184 = vector.load %arg14[%c0_85, %c0_86, %c0_87, %c0_88] : memref<1x16x16x24xf32, #tpu.memory_space<vmem>>, vector<1x8x16x24xf32>
    %185 = vector.shape_cast %184 : vector<1x8x16x24xf32> to vector<8x16x24xf32>
    %186 = vector.shape_cast %183 : vector<8x16x24xf32> to vector<1x8x16x24xf32>
    tpu.vector_store %arg14[%c0_85, %c0_86, %c0_87, %c0_88], %186 {strides = array<i32>} : memref<1x16x16x24xf32, #tpu.memory_space<vmem>>, vector<1x8x16x24xf32>,
    %187 = vector.shape_cast %79 : vector<8x16x24xf32> to vector<128x24xf32>
    %c0_89 = arith.constant 0 : index
    %c0_90 = arith.constant 0 : index
    %188 = vector.load %arg12[%c0_89, %c0_90] : memref<24x24xf32, #tpu.memory_space<vmem>>, vector<24x24xf32>
    %cst_91 = arith.constant dense<0.000000e+00> : vector<128x24xf32>
    %189 = tpu.matmul %187, %188, %cst_91 {dimension_numbers = #tpu.dot_dimension_numbers<[1], [0], [0], [1], [0, 0, 1, 1], [], []>} : vector<128x24xf32>, vector<24x24xf32>, vector<128x24xf32> -> vector<128x24xf32>
    %190 = vector.shape_cast %189 : vector<128x24xf32> to vector<8x16x24xf32>
    %c0_92 = arith.constant 0 : index
    %c0_93 = arith.constant 0 : index
    %191 = vector.load %arg13[%c0_92, %c0_93] : memref<24x24xf32, #tpu.memory_space<vmem>>, vector<24x24xf32>
    %cst_94 = arith.constant dense<0.000000e+00> : vector<128x24xf32>
    %192 = tpu.matmul %187, %191, %cst_94 {dimension_numbers = #tpu.dot_dimension_numbers<[1], [0], [0], [1], [0, 0, 1, 1], [], []>} : vector<128x24xf32>, vector<24x24xf32>, vector<128x24xf32> -> vector<128x24xf32>
    %193 = vector.shape_cast %192 : vector<128x24xf32> to vector<8x16x24xf32>
    %c0_95 = arith.constant 0 : index
    %c0_96 = arith.constant 0 : index
    %c0_97 = arith.constant 0 : index
    %c0_98 = arith.constant 0 : index
    %194 = vector.load %arg6[%c0_95, %c0_96, %c0_97, %c0_98] : memref<3x8x1x1xf32, #tpu.memory_space<vmem>>, vector<1x8x1x1xf32>
    %195 = vector.shape_cast %194 : vector<1x8x1x1xf32> to vector<8x1x1xf32>
    %196 = vector.broadcast %195 : vector<8x1x1xf32> to vector<8x16x24xf32>
    %197 = arith.mulf %196, %190 : vector<8x16x24xf32>
    %c1_99 = arith.constant 1 : index
    %c0_100 = arith.constant 0 : index
    %c0_101 = arith.constant 0 : index
    %c0_102 = arith.constant 0 : index
    %198 = vector.load %arg6[%c1_99, %c0_100, %c0_101, %c0_102] : memref<3x8x1x1xf32, #tpu.memory_space<vmem>>, vector<1x8x1x1xf32>
    %199 = vector.shape_cast %198 : vector<1x8x1x1xf32> to vector<8x1x1xf32>
    %200 = vector.broadcast %199 : vector<8x1x1xf32> to vector<8x16x24xf32>
    %201 = arith.mulf %200, %79 : vector<8x16x24xf32>
    %202 = arith.addf %197, %201 : vector<8x16x24xf32>
    %c2_103 = arith.constant 2 : index
    %c0_104 = arith.constant 0 : index
    %c0_105 = arith.constant 0 : index
    %c0_106 = arith.constant 0 : index
    %203 = vector.load %arg6[%c2_103, %c0_104, %c0_105, %c0_106] : memref<3x8x1x1xf32, #tpu.memory_space<vmem>>, vector<1x8x1x1xf32>
    %204 = vector.shape_cast %203 : vector<1x8x1x1xf32> to vector<8x1x1xf32>
    %205 = vector.broadcast %204 : vector<8x1x1xf32> to vector<8x16x24xf32>
    %206 = arith.mulf %205, %193 : vector<8x16x24xf32>
    %207 = arith.addf %202, %206 : vector<8x16x24xf32>
    %c0_107 = arith.constant 0 : index
    %c0_108 = arith.constant 0 : index
    %c0_109 = arith.constant 0 : index
    %208 = vector.load %arg7[%c0_107, %c0_108, %c0_109] : memref<8x1x1xf32, #tpu.memory_space<vmem>>, vector<8x1x1xf32>
    %209 = vector.broadcast %208 : vector<8x1x1xf32> to vector<8x16x24xf32>
    %210 = arith.addf %207, %209 : vector<8x16x24xf32>
    %cst_110 = arith.constant 0.000000e+00 : f32
    %211 = vector.broadcast %cst_110 : f32 to vector<8x16x24xf32>
    %212 = arith.maximumf %210, %211 : vector<8x16x24xf32>
    %cst_111 = arith.constant dense<0.000000e+00> : vector<8x16xf32>
    %213 = vector.multi_reduction <add>, %212, %cst_111 [2] : vector<8x16x24xf32> to vector<8x16xf32>
    %214 = vector.shape_cast %213 : vector<8x16xf32> to vector<8x16x1xf32>
    %c0_112 = arith.constant 0 : index
    %c0_113 = arith.constant 0 : index
    %c0_114 = arith.constant 0 : index
    %215 = vector.load %arg11[%c0_112, %c0_113, %c0_114] : memref<8x1x1xf32, #tpu.memory_space<vmem>>, vector<8x1x1xf32>
    %c0_115 = arith.constant 0 : index
    %c0_116 = arith.constant 0 : index
    %c0_117 = arith.constant 0 : index
    %c0_118 = arith.constant 0 : index
    %216 = vector.load %arg10[%c0_115, %c0_116, %c0_117, %c0_118] : memref<8x8x1x1xf32, #tpu.memory_space<vmem>>, vector<1x8x1x1xf32>
    %217 = vector.shape_cast %216 : vector<1x8x1x1xf32> to vector<8x1x1xf32>
    %218 = vector.extract_strided_slice %214 {offsets = [0, 0, 0], sizes = [1, 16, 1], strides = [1, 1, 1]} : vector<8x16x1xf32> to vector<1x16x1xf32>
    %219 = vector.shape_cast %218 : vector<1x16x1xf32> to vector<16x1xf32>
    %220 = vector.shape_cast %219 : vector<16x1xf32> to vector<1x16x1xf32>
    %221 = vector.broadcast %217 : vector<8x1x1xf32> to vector<8x16x1xf32>
    %222 = vector.broadcast %220 : vector<1x16x1xf32> to vector<8x16x1xf32>
    %223 = arith.mulf %221, %222 : vector<8x16x1xf32>
    %224 = vector.broadcast %215 : vector<8x1x1xf32> to vector<8x16x1xf32>
    %225 = arith.addf %224, %223 : vector<8x16x1xf32>
    %c1_119 = arith.constant 1 : index
    %c0_120 = arith.constant 0 : index
    %c0_121 = arith.constant 0 : index
    %c0_122 = arith.constant 0 : index
    %226 = vector.load %arg10[%c1_119, %c0_120, %c0_121, %c0_122] : memref<8x8x1x1xf32, #tpu.memory_space<vmem>>, vector<1x8x1x1xf32>
    %227 = vector.shape_cast %226 : vector<1x8x1x1xf32> to vector<8x1x1xf32>
    %228 = vector.extract_strided_slice %214 {offsets = [1, 0, 0], sizes = [1, 16, 1], strides = [1, 1, 1]} : vector<8x16x1xf32> to vector<1x16x1xf32>
    %229 = vector.shape_cast %228 : vector<1x16x1xf32> to vector<16x1xf32>
    %230 = vector.shape_cast %229 : vector<16x1xf32> to vector<1x16x1xf32>
    %231 = vector.broadcast %227 : vector<8x1x1xf32> to vector<8x16x1xf32>
    %232 = vector.broadcast %230 : vector<1x16x1xf32> to vector<8x16x1xf32>
    %233 = arith.mulf %231, %232 : vector<8x16x1xf32>
    %234 = arith.addf %225, %233 : vector<8x16x1xf32>
    %c2_123 = arith.constant 2 : index
    %c0_124 = arith.constant 0 : index
    %c0_125 = arith.constant 0 : index
    %c0_126 = arith.constant 0 : index
    %235 = vector.load %arg10[%c2_123, %c0_124, %c0_125, %c0_126] : memref<8x8x1x1xf32, #tpu.memory_space<vmem>>, vector<1x8x1x1xf32>
    %236 = vector.shape_cast %235 : vector<1x8x1x1xf32> to vector<8x1x1xf32>
    %237 = vector.extract_strided_slice %214 {offsets = [2, 0, 0], sizes = [1, 16, 1], strides = [1, 1, 1]} : vector<8x16x1xf32> to vector<1x16x1xf32>
    %238 = vector.shape_cast %237 : vector<1x16x1xf32> to vector<16x1xf32>
    %239 = vector.shape_cast %238 : vector<16x1xf32> to vector<1x16x1xf32>
    %240 = vector.broadcast %236 : vector<8x1x1xf32> to vector<8x16x1xf32>
    %241 = vector.broadcast %239 : vector<1x16x1xf32> to vector<8x16x1xf32>
    %242 = arith.mulf %240, %241 : vector<8x16x1xf32>
    %243 = arith.addf %234, %242 : vector<8x16x1xf32>
    %c3_127 = arith.constant 3 : index
    %c0_128 = arith.constant 0 : index
    %c0_129 = arith.constant 0 : index
    %c0_130 = arith.constant 0 : index
    %244 = vector.load %arg10[%c3_127, %c0_128, %c0_129, %c0_130] : memref<8x8x1x1xf32, #tpu.memory_space<vmem>>, vector<1x8x1x1xf32>
    %245 = vector.shape_cast %244 : vector<1x8x1x1xf32> to vector<8x1x1xf32>
    %246 = vector.extract_strided_slice %214 {offsets = [3, 0, 0], sizes = [1, 16, 1], strides = [1, 1, 1]} : vector<8x16x1xf32> to vector<1x16x1xf32>
    %247 = vector.shape_cast %246 : vector<1x16x1xf32> to vector<16x1xf32>
    %248 = vector.shape_cast %247 : vector<16x1xf32> to vector<1x16x1xf32>
    %249 = vector.broadcast %245 : vector<8x1x1xf32> to vector<8x16x1xf32>
    %250 = vector.broadcast %248 : vector<1x16x1xf32> to vector<8x16x1xf32>
    %251 = arith.mulf %249, %250 : vector<8x16x1xf32>
    %252 = arith.addf %243, %251 : vector<8x16x1xf32>
    %c4_131 = arith.constant 4 : index
    %c0_132 = arith.constant 0 : index
    %c0_133 = arith.constant 0 : index
    %c0_134 = arith.constant 0 : index
    %253 = vector.load %arg10[%c4_131, %c0_132, %c0_133, %c0_134] : memref<8x8x1x1xf32, #tpu.memory_space<vmem>>, vector<1x8x1x1xf32>
    %254 = vector.shape_cast %253 : vector<1x8x1x1xf32> to vector<8x1x1xf32>
    %255 = vector.extract_strided_slice %214 {offsets = [4, 0, 0], sizes = [1, 16, 1], strides = [1, 1, 1]} : vector<8x16x1xf32> to vector<1x16x1xf32>
    %256 = vector.shape_cast %255 : vector<1x16x1xf32> to vector<16x1xf32>
    %257 = vector.shape_cast %256 : vector<16x1xf32> to vector<1x16x1xf32>
    %258 = vector.broadcast %254 : vector<8x1x1xf32> to vector<8x16x1xf32>
    %259 = vector.broadcast %257 : vector<1x16x1xf32> to vector<8x16x1xf32>
    %260 = arith.mulf %258, %259 : vector<8x16x1xf32>
    %261 = arith.addf %252, %260 : vector<8x16x1xf32>
    %c5_135 = arith.constant 5 : index
    %c0_136 = arith.constant 0 : index
    %c0_137 = arith.constant 0 : index
    %c0_138 = arith.constant 0 : index
    %262 = vector.load %arg10[%c5_135, %c0_136, %c0_137, %c0_138] : memref<8x8x1x1xf32, #tpu.memory_space<vmem>>, vector<1x8x1x1xf32>
    %263 = vector.shape_cast %262 : vector<1x8x1x1xf32> to vector<8x1x1xf32>
    %264 = vector.extract_strided_slice %214 {offsets = [5, 0, 0], sizes = [1, 16, 1], strides = [1, 1, 1]} : vector<8x16x1xf32> to vector<1x16x1xf32>
    %265 = vector.shape_cast %264 : vector<1x16x1xf32> to vector<16x1xf32>
    %266 = vector.shape_cast %265 : vector<16x1xf32> to vector<1x16x1xf32>
    %267 = vector.broadcast %263 : vector<8x1x1xf32> to vector<8x16x1xf32>
    %268 = vector.broadcast %266 : vector<1x16x1xf32> to vector<8x16x1xf32>
    %269 = arith.mulf %267, %268 : vector<8x16x1xf32>
    %270 = arith.addf %261, %269 : vector<8x16x1xf32>
    %c6_139 = arith.constant 6 : index
    %c0_140 = arith.constant 0 : index
    %c0_141 = arith.constant 0 : index
    %c0_142 = arith.constant 0 : index
    %271 = vector.load %arg10[%c6_139, %c0_140, %c0_141, %c0_142] : memref<8x8x1x1xf32, #tpu.memory_space<vmem>>, vector<1x8x1x1xf32>
    %272 = vector.shape_cast %271 : vector<1x8x1x1xf32> to vector<8x1x1xf32>
    %273 = vector.extract_strided_slice %214 {offsets = [6, 0, 0], sizes = [1, 16, 1], strides = [1, 1, 1]} : vector<8x16x1xf32> to vector<1x16x1xf32>
    %274 = vector.shape_cast %273 : vector<1x16x1xf32> to vector<16x1xf32>
    %275 = vector.shape_cast %274 : vector<16x1xf32> to vector<1x16x1xf32>
    %276 = vector.broadcast %272 : vector<8x1x1xf32> to vector<8x16x1xf32>
    %277 = vector.broadcast %275 : vector<1x16x1xf32> to vector<8x16x1xf32>
    %278 = arith.mulf %276, %277 : vector<8x16x1xf32>
    %279 = arith.addf %270, %278 : vector<8x16x1xf32>
    %c7_143 = arith.constant 7 : index
    %c0_144 = arith.constant 0 : index
    %c0_145 = arith.constant 0 : index
    %c0_146 = arith.constant 0 : index
    %280 = vector.load %arg10[%c7_143, %c0_144, %c0_145, %c0_146] : memref<8x8x1x1xf32, #tpu.memory_space<vmem>>, vector<1x8x1x1xf32>
    %281 = vector.shape_cast %280 : vector<1x8x1x1xf32> to vector<8x1x1xf32>
    %282 = vector.extract_strided_slice %214 {offsets = [7, 0, 0], sizes = [1, 16, 1], strides = [1, 1, 1]} : vector<8x16x1xf32> to vector<1x16x1xf32>
    %283 = vector.shape_cast %282 : vector<1x16x1xf32> to vector<16x1xf32>
    %284 = vector.shape_cast %283 : vector<16x1xf32> to vector<1x16x1xf32>
    %285 = vector.broadcast %281 : vector<8x1x1xf32> to vector<8x16x1xf32>
    %286 = vector.broadcast %284 : vector<1x16x1xf32> to vector<8x16x1xf32>
    %287 = arith.mulf %285, %286 : vector<8x16x1xf32>
    %288 = arith.addf %279, %287 : vector<8x16x1xf32>
    %cst_147 = arith.constant 0.000000e+00 : f32
    %289 = vector.broadcast %cst_147 : f32 to vector<8x16x1xf32>
    %290 = arith.maximumf %288, %289 : vector<8x16x1xf32>
    %291 = vector.broadcast %290 : vector<8x16x1xf32> to vector<8x16x24xf32>
    %292 = arith.addf %79, %291 : vector<8x16x24xf32>
    %c0_148 = arith.constant 0 : index
    %c8 = arith.constant 8 : index
    %c0_149 = arith.constant 0 : index
    %c0_150 = arith.constant 0 : index
    %293 = vector.load %arg14[%c0_148, %c8, %c0_149, %c0_150] : memref<1x16x16x24xf32, #tpu.memory_space<vmem>>, vector<1x8x16x24xf32>
    %294 = vector.shape_cast %293 : vector<1x8x16x24xf32> to vector<8x16x24xf32>
    %295 = vector.shape_cast %292 : vector<8x16x24xf32> to vector<1x8x16x24xf32>
    tpu.vector_store %arg14[%c0_148, %c8, %c0_149, %c0_150], %295 {strides = array<i32>} : memref<1x16x16x24xf32, #tpu.memory_space<vmem>>, vector<1x8x16x24xf32>,
    return
  }
  func.func @transform_0(%arg0: i32) -> (i32, i32, i32, i32) {
    %c0_i32 = arith.constant 0 : i32
    %c0_i32_0 = arith.constant 0 : i32
    %c0_i32_1 = arith.constant 0 : i32
    %c0_i32_2 = arith.constant 0 : i32
    return %arg0, %c0_i32, %c0_i32_0, %c0_i32_1 : i32, i32, i32, i32
  }
  func.func @transform_1(%arg0: i32) -> (i32, i32, i32, i32) {
    %c0_i32 = arith.constant 0 : i32
    %c0_i32_0 = arith.constant 0 : i32
    %c0_i32_1 = arith.constant 0 : i32
    %c0_i32_2 = arith.constant 0 : i32
    %c0_i32_3 = arith.constant 0 : i32
    return %c0_i32, %c0_i32_0, %c0_i32_1, %c0_i32_2 : i32, i32, i32, i32
  }
  func.func @transform_2(%arg0: i32) -> (i32, i32, i32) {
    %c0_i32 = arith.constant 0 : i32
    %c0_i32_0 = arith.constant 0 : i32
    %c0_i32_1 = arith.constant 0 : i32
    %c0_i32_2 = arith.constant 0 : i32
    return %c0_i32, %c0_i32_0, %c0_i32_1 : i32, i32, i32
  }
  func.func @transform_3(%arg0: i32) -> (i32, i32, i32, i32) {
    %c0_i32 = arith.constant 0 : i32
    %c0_i32_0 = arith.constant 0 : i32
    %c0_i32_1 = arith.constant 0 : i32
    %c0_i32_2 = arith.constant 0 : i32
    %c0_i32_3 = arith.constant 0 : i32
    return %c0_i32, %c0_i32_0, %c0_i32_1, %c0_i32_2 : i32, i32, i32, i32
  }
  func.func @transform_4(%arg0: i32) -> (i32, i32, i32) {
    %c0_i32 = arith.constant 0 : i32
    %c0_i32_0 = arith.constant 0 : i32
    %c0_i32_1 = arith.constant 0 : i32
    %c0_i32_2 = arith.constant 0 : i32
    return %c0_i32, %c0_i32_0, %c0_i32_1 : i32, i32, i32
  }
  func.func @transform_5(%arg0: i32) -> (i32, i32, i32, i32) {
    %c0_i32 = arith.constant 0 : i32
    %c0_i32_0 = arith.constant 0 : i32
    %c0_i32_1 = arith.constant 0 : i32
    %c0_i32_2 = arith.constant 0 : i32
    %c0_i32_3 = arith.constant 0 : i32
    return %c0_i32, %c0_i32_0, %c0_i32_1, %c0_i32_2 : i32, i32, i32, i32
  }
  func.func @transform_6(%arg0: i32) -> (i32, i32, i32) {
    %c0_i32 = arith.constant 0 : i32
    %c0_i32_0 = arith.constant 0 : i32
    %c0_i32_1 = arith.constant 0 : i32
    %c0_i32_2 = arith.constant 0 : i32
    return %c0_i32, %c0_i32_0, %c0_i32_1 : i32, i32, i32
  }
  func.func @transform_7(%arg0: i32) -> (i32, i32, i32, i32) {
    %c0_i32 = arith.constant 0 : i32
    %c0_i32_0 = arith.constant 0 : i32
    %c0_i32_1 = arith.constant 0 : i32
    %c0_i32_2 = arith.constant 0 : i32
    %c0_i32_3 = arith.constant 0 : i32
    return %c0_i32, %c0_i32_0, %c0_i32_1, %c0_i32_2 : i32, i32, i32, i32
  }
  func.func @transform_8(%arg0: i32) -> (i32, i32, i32) {
    %c0_i32 = arith.constant 0 : i32
    %c0_i32_0 = arith.constant 0 : i32
    %c0_i32_1 = arith.constant 0 : i32
    %c0_i32_2 = arith.constant 0 : i32
    return %c0_i32, %c0_i32_0, %c0_i32_1 : i32, i32, i32
  }
  func.func @transform_9(%arg0: i32) -> (i32, i32, i32, i32) {
    %c0_i32 = arith.constant 0 : i32
    %c0_i32_0 = arith.constant 0 : i32
    %c0_i32_1 = arith.constant 0 : i32
    %c0_i32_2 = arith.constant 0 : i32
    %c0_i32_3 = arith.constant 0 : i32
    return %c0_i32, %c0_i32_0, %c0_i32_1, %c0_i32_2 : i32, i32, i32, i32
  }
  func.func @transform_10(%arg0: i32) -> (i32, i32, i32) {
    %c0_i32 = arith.constant 0 : i32
    %c0_i32_0 = arith.constant 0 : i32
    %c0_i32_1 = arith.constant 0 : i32
    %c0_i32_2 = arith.constant 0 : i32
    return %c0_i32, %c0_i32_0, %c0_i32_1 : i32, i32, i32
  }
  func.func @transform_11(%arg0: i32) -> (i32, i32) {
    %c0_i32 = arith.constant 0 : i32
    %c0_i32_0 = arith.constant 0 : i32
    %c0_i32_1 = arith.constant 0 : i32
    return %c0_i32, %c0_i32_0 : i32, i32
  }
  func.func @transform_12(%arg0: i32) -> (i32, i32) {
    %c0_i32 = arith.constant 0 : i32
    %c0_i32_0 = arith.constant 0 : i32
    %c0_i32_1 = arith.constant 0 : i32
    return %c0_i32, %c0_i32_0 : i32, i32
  }
  func.func @transform_13(%arg0: i32) -> (i32, i32, i32, i32) {
    %c0_i32 = arith.constant 0 : i32
    %c0_i32_0 = arith.constant 0 : i32
    %c0_i32_1 = arith.constant 0 : i32
    %c0_i32_2 = arith.constant 0 : i32
    return %arg0, %c0_i32, %c0_i32_0, %c0_i32_1 : i32, i32, i32, i32
  }
}

</mosaic_0001>

<llo_original>
// kernel: tpu_custom_call.1
$region0: #{tpu_custom_call.1}
  #allocation0 [shape = 'u32[]', space=smem, size = 0x4, offset = 0x4, fixed_abs, tag = 'smem constant byte address 0x4 - core index']
  #allocation1 [shape = 'u32[144,128]{1,0:T(1,128)}', space=vmem, size = 0x12000, scoped, tag = 'internal scratch']
  %s0 = inlined_call_operand.vmem [shape: f32[2,8,16,24], index: 0, kind: input, shape index: {}]
  %s1 = inlined_call_operand.vmem [shape: f32[8,16,1,1], index: 1, kind: input, shape index: {}]
  %s2 = inlined_call_operand.vmem [shape: f32[16,1,1], index: 2, kind: input, shape index: {}]
  %s3 = inlined_call_operand.vmem [shape: f32[3,8,1,1], index: 3, kind: input, shape index: {}]
  %s4 = inlined_call_operand.vmem [shape: f32[8,1,1], index: 4, kind: input, shape index: {}]
  %s5 = inlined_call_operand.vmem [shape: f32[3,8,1,1], index: 5, kind: input, shape index: {}]
  %s6 = inlined_call_operand.vmem [shape: f32[8,1,1], index: 6, kind: input, shape index: {}]
  %s7 = inlined_call_operand.vmem [shape: f32[8,8,1,1], index: 7, kind: input, shape index: {}]
  %s8 = inlined_call_operand.vmem [shape: f32[8,1,1], index: 8, kind: input, shape index: {}]
  %s9 = inlined_call_operand.vmem [shape: f32[8,8,1,1], index: 9, kind: input, shape index: {}]
  %s10 = inlined_call_operand.vmem [shape: f32[8,1,1], index: 10, kind: input, shape index: {}]
  %s11 = inlined_call_operand.vmem [shape: f32[24,24], index: 11, kind: input, shape index: {}]
  %s12 = inlined_call_operand.vmem [shape: f32[24,24], index: 12, kind: input, shape index: {}]
  %s13 = inlined_call_operand.hbm [shape: f32[2,16,16,24], index: 13, kind: output, shape index: {}]
  %s14 = sld [smem:[#allocation0]]
  $region85: #{tpu_custom_call.1} parent=0
    _
  %s16 = ssub.s32 1, %s14
  %s17 = scalar_select 0, %s16, %s14
  $region1: #{tpu_custom_call.1} parent=0
    #allocation2 [shape = 'u8[262144]{0}', space=vmem, size = 0x40000, scoped, tag = 'output window, operand 0']
    #allocation3 [shape = 's32[2]{0}', space=sflag, size = 0x8, scoped, tag = 'scoped memory for tpu_custom_call.1']
    %18 = vsyncpa [#allocation3], 0
    %s19 = scalar_lea.sflag [#allocation3], 1
    %20 = vsyncpa %s19, 0
    loop: start=0, step=1, limit=4
    $region2: #{tpu_custom_call.1} parent=1 // loop_pre_header
      _
    $region3: #{tpu_custom_call.1} parent=1 // loop_header
      %s22 = sphi 0, %s26
      %p23 = scmp.ge.s32.totalorder %s22, 4
      %s32 = sphi 0, %s34
      %s35 = sphi 0, %s32
      %s36 = sphi 0, %s35
      %s52 = sphi 0, %s36
      %s56 = sphi 0, %s56
      %s58 = sphi 0, %s56
      %s59 = sphi 0, %s58
      %s73 = sphi 0, %s59
      %s77 = sphi 0, %s77
      %s79 = sphi 0, %s77
      %s80 = sphi 0, %s79
      %s94 = sphi 0, %s80
      %s98 = sphi 0, %s98
      %s100 = sphi 0, %s98
      %s101 = sphi 0, %s100
      %s115 = sphi 0, %s101
      %s119 = sphi 0, %s119
      %s121 = sphi 0, %s119
      %s122 = sphi 0, %s121
      %s136 = sphi 0, %s122
      %s140 = sphi 0, %s140
      %s142 = sphi 0, %s140
      %s143 = sphi 0, %s142
      %s157 = sphi 0, %s143
      %s161 = sphi 0, %s161
      %s163 = sphi 0, %s161
      %s164 = sphi 0, %s163
      %s178 = sphi 0, %s164
      %s182 = sphi 0, %s182
      %s184 = sphi 0, %s182
      %s185 = sphi 0, %s184
      %s199 = sphi 0, %s185
      %s203 = sphi 0, %s203
      %s205 = sphi 0, %s203
      %s206 = sphi 0, %s205
      %s220 = sphi 0, %s206
      %s224 = sphi 0, %s224
      %s226 = sphi 0, %s224
      %s227 = sphi 0, %s226
      %s241 = sphi 0, %s227
      %s245 = sphi 0, %s245
      %s247 = sphi 0, %s245
      %s248 = sphi 0, %s247
      %s262 = sphi 0, %s248
      %s266 = sphi 0, %s266
      %s268 = sphi 0, %s266
      %s269 = sphi 0, %s268
      %s283 = sphi 0, %s269
      %s287 = sphi 0, %s287
      %s289 = sphi 0, %s287
      %s290 = sphi 0, %s289
      %s304 = sphi 0, %s290
      %s310 = sphi 0, %s312
      %s313 = sphi 0, %s310
      %s314 = sphi 0, %s313
      %s330 = sphi 0, %s314
    $region4: #{tpu_custom_call.1} parent=1 // loop_header_branch
      %25 = sbr.rel (%p23) target = $region8
    $region5: #{tpu_custom_call.1} parent=1 // loop_body
      %s27 = ssub.s32 %s22, 1
      %s28 = ssub.s32 %s22, 2
      %s29 = sadd.s32 %s22, 1
      %s30 = ssub.s32 %s22, %s29
      %p31 = scmp.eq.s32.totalorder %s30, 0
      %s33 = sadd.s32 %s32, 1
      %s34 = scalar_select %p31, %s32, %s33
      %p37 = pneg %p31
      %p38 = scmp.eq.s32.totalorder %s22, 1
      %p39 = por %p37, %p38
      %p40 = scmp.ne.s32.totalorder %s32, %s35
      %p41 = scmp.eq.s32.totalorder %s22, 0
      %p42 = por %p40, %p41
      %p43 = scmp.ne.s32.totalorder %s32, %s35
      %p44 = scmp.eq.s32.totalorder %s27, 1
      %p45 = por %p43, %p44
      %p46 = scmp.ne.s32.totalorder %s35, %s36
      %p47 = scmp.eq.s32.totalorder %s27, 0
      %p48 = por %p46, %p47
      %p49 = scmp.ne.s32.totalorder %s35, %s36
      %p50 = scmp.eq.s32.totalorder %s28, 1
      %p51 = por %p49, %p50
      %p53 = scmp.ne.s32.totalorder %s36, %s52
      %p54 = scmp.eq.s32.totalorder %s28, 0
      %p55 = por %p53, %p54
      %s57 = sadd.s32 %s56, 1
      %p60 = scmp.eq.s32.totalorder %s22, 1
      %p61 = scmp.ne.s32.totalorder %s56, %s58
      %p62 = scmp.eq.s32.totalorder %s22, 0
      %p63 = por %p61, %p62
      %p64 = scmp.ne.s32.totalorder %s56, %s58
      %p65 = scmp.eq.s32.totalorder %s27, 1
      %p66 = por %p64, %p65
      %p67 = scmp.ne.s32.totalorder %s58, %s59
      %p68 = scmp.eq.s32.totalorder %s27, 0
      %p69 = por %p67, %p68
      %p70 = scmp.ne.s32.totalorder %s58, %s59
      %p71 = scmp.eq.s32.totalorder %s28, 1
      %p72 = por %p70, %p71
      %p74 = scmp.ne.s32.totalorder %s59, %s73
      %p75 = scmp.eq.s32.totalorder %s28, 0
      %p76 = por %p74, %p75
      %s78 = sadd.s32 %s77, 1
      %p81 = scmp.eq.s32.totalorder %s22, 1
      %p82 = scmp.ne.s32.totalorder %s77, %s79
      %p83 = scmp.eq.s32.totalorder %s22, 0
      %p84 = por %p82, %p83
      %p85 = scmp.ne.s32.totalorder %s77, %s79
      %p86 = scmp.eq.s32.totalorder %s27, 1
      %p87 = por %p85, %p86
      %p88 = scmp.ne.s32.totalorder %s79, %s80
      %p89 = scmp.eq.s32.totalorder %s27, 0
      %p90 = por %p88, %p89
      %p91 = scmp.ne.s32.totalorder %s79, %s80
      %p92 = scmp.eq.s32.totalorder %s28, 1
      %p93 = por %p91, %p92
      %p95 = scmp.ne.s32.totalorder %s80, %s94
      %p96 = scmp.eq.s32.totalorder %s28, 0
      %p97 = por %p95, %p96
      %s99 = sadd.s32 %s98, 1
      %p102 = scmp.eq.s32.totalorder %s22, 1
      %p103 = scmp.ne.s32.totalorder %s98, %s100
      %p104 = scmp.eq.s32.totalorder %s22, 0
      %p105 = por %p103, %p104
      %p106 = scmp.ne.s32.totalorder %s98, %s100
      %p107 = scmp.eq.s32.totalorder %s27, 1
      %p108 = por %p106, %p107
      %p109 = scmp.ne.s32.totalorder %s100, %s101
      %p110 = scmp.eq.s32.totalorder %s27, 0
      %p111 = por %p109, %p110
      %p112 = scmp.ne.s32.totalorder %s100, %s101
      %p113 = scmp.eq.s32.totalorder %s28, 1
      %p114 = por %p112, %p113
      %p116 = scmp.ne.s32.totalorder %s101, %s115
      %p117 = scmp.eq.s32.totalorder %s28, 0
      %p118 = por %p116, %p117
      %s120 = sadd.s32 %s119, 1
      %p123 = scmp.eq.s32.totalorder %s22, 1
      %p124 = scmp.ne.s32.totalorder %s119, %s121
      %p125 = scmp.eq.s32.totalorder %s22, 0
      %p126 = por %p124, %p125
      %p127 = scmp.ne.s32.totalorder %s119, %s121
      %p128 = scmp.eq.s32.totalorder %s27, 1
      %p129 = por %p127, %p128
      %p130 = scmp.ne.s32.totalorder %s121, %s122
      %p131 = scmp.eq.s32.totalorder %s27, 0
      %p132 = por %p130, %p131
      %p133 = scmp.ne.s32.totalorder %s121, %s122
      %p134 = scmp.eq.s32.totalorder %s28, 1
      %p135 = por %p133, %p134
      %p137 = scmp.ne.s32.totalorder %s122, %s136
      %p138 = scmp.eq.s32.totalorder %s28, 0
      %p139 = por %p137, %p138
      %s141 = sadd.s32 %s140, 1
      %p144 = scmp.eq.s32.totalorder %s22, 1
      %p145 = scmp.ne.s32.totalorder %s140, %s142
      %p146 = scmp.eq.s32.totalorder %s22, 0
      %p147 = por %p145, %p146
      %p148 = scmp.ne.s32.totalorder %s140, %s142
      %p149 = scmp.eq.s32.totalorder %s27, 1
      %p150 = por %p148, %p149
      %p151 = scmp.ne.s32.totalorder %s142, %s143
      %p152 = scmp.eq.s32.totalorder %s27, 0
      %p153 = por %p151, %p152
      %p154 = scmp.ne.s32.totalorder %s142, %s143
      %p155 = scmp.eq.s32.totalorder %s28, 1
      %p156 = por %p154, %p155
      %p158 = scmp.ne.s32.totalorder %s143, %s157
      %p159 = scmp.eq.s32.totalorder %s28, 0
      %p160 = por %p158, %p159
      %s162 = sadd.s32 %s161, 1
      %p165 = scmp.eq.s32.totalorder %s22, 1
      %p166 = scmp.ne.s32.totalorder %s161, %s163
      %p167 = scmp.eq.s32.totalorder %s22, 0
      %p168 = por %p166, %p167
      %p169 = scmp.ne.s32.totalorder %s161, %s163
      %p170 = scmp.eq.s32.totalorder %s27, 1
      %p171 = por %p169, %p170
      %p172 = scmp.ne.s32.totalorder %s163, %s164
      %p173 = scmp.eq.s32.totalorder %s27, 0
      %p174 = por %p172, %p173
      %p175 = scmp.ne.s32.totalorder %s163, %s164
      %p176 = scmp.eq.s32.totalorder %s28, 1
      %p177 = por %p175, %p176
      %p179 = scmp.ne.s32.totalorder %s164, %s178
      %p180 = scmp.eq.s32.totalorder %s28, 0
      %p181 = por %p179, %p180
      %s183 = sadd.s32 %s182, 1
      %p186 = scmp.eq.s32.totalorder %s22, 1
      %p187 = scmp.ne.s32.totalorder %s182, %s184
      %p188 = scmp.eq.s32.totalorder %s22, 0
      %p189 = por %p187, %p188
      %p190 = scmp.ne.s32.totalorder %s182, %s184
      %p191 = scmp.eq.s32.totalorder %s27, 1
      %p192 = por %p190, %p191
      %p193 = scmp.ne.s32.totalorder %s184, %s185
      %p194 = scmp.eq.s32.totalorder %s27, 0
      %p195 = por %p193, %p194
      %p196 = scmp.ne.s32.totalorder %s184, %s185
      %p197 = scmp.eq.s32.totalorder %s28, 1
      %p198 = por %p196, %p197
      %p200 = scmp.ne.s32.totalorder %s185, %s199
      %p201 = scmp.eq.s32.totalorder %s28, 0
      %p202 = por %p200, %p201
      %s204 = sadd.s32 %s203, 1
      %p207 = scmp.eq.s32.totalorder %s22, 1
      %p208 = scmp.ne.s32.totalorder %s203, %s205
      %p209 = scmp.eq.s32.totalorder %s22, 0
      %p210 = por %p208, %p209
      %p211 = scmp.ne.s32.totalorder %s203, %s205
      %p212 = scmp.eq.s32.totalorder %s27, 1
      %p213 = por %p211, %p212
      %p214 = scmp.ne.s32.totalorder %s205, %s206
      %p215 = scmp.eq.s32.totalorder %s27, 0
      %p216 = por %p214, %p215
      %p217 = scmp.ne.s32.totalorder %s205, %s206
      %p218 = scmp.eq.s32.totalorder %s28, 1
      %p219 = por %p217, %p218
      %p221 = scmp.ne.s32.totalorder %s206, %s220
      %p222 = scmp.eq.s32.totalorder %s28, 0
      %p223 = por %p221, %p222
      %s225 = sadd.s32 %s224, 1
      %p228 = scmp.eq.s32.totalorder %s22, 1
      %p229 = scmp.ne.s32.totalorder %s224, %s226
      %p230 = scmp.eq.s32.totalorder %s22, 0
      %p231 = por %p229, %p230
      %p232 = scmp.ne.s32.totalorder %s224, %s226
      %p233 = scmp.eq.s32.totalorder %s27, 1
      %p234 = por %p232, %p233
      %p235 = scmp.ne.s32.totalorder %s226, %s227
      %p236 = scmp.eq.s32.totalorder %s27, 0
      %p237 = por %p235, %p236
      %p238 = scmp.ne.s32.totalorder %s226, %s227
      %p239 = scmp.eq.s32.totalorder %s28, 1
      %p240 = por %p238, %p239
      %p242 = scmp.ne.s32.totalorder %s227, %s241
      %p243 = scmp.eq.s32.totalorder %s28, 0
      %p244 = por %p242, %p243
      %s246 = sadd.s32 %s245, 1
      %p249 = scmp.eq.s32.totalorder %s22, 1
      %p250 = scmp.ne.s32.totalorder %s245, %s247
      %p251 = scmp.eq.s32.totalorder %s22, 0
      %p252 = por %p250, %p251
      %p253 = scmp.ne.s32.totalorder %s245, %s247
      %p254 = scmp.eq.s32.totalorder %s27, 1
      %p255 = por %p253, %p254
      %p256 = scmp.ne.s32.totalorder %s247, %s248
      %p257 = scmp.eq.s32.totalorder %s27, 0
      %p258 = por %p256, %p257
      %p259 = scmp.ne.s32.totalorder %s247, %s248
      %p260 = scmp.eq.s32.totalorder %s28, 1
      %p261 = por %p259, %p260
      %p263 = scmp.ne.s32.totalorder %s248, %s262
      %p264 = scmp.eq.s32.totalorder %s28, 0
      %p265 = por %p263, %p264
      %s267 = sadd.s32 %s266, 1
      %p270 = scmp.eq.s32.totalorder %s22, 1
      %p271 = scmp.ne.s32.totalorder %s266, %s268
      %p272 = scmp.eq.s32.totalorder %s22, 0
      %p273 = por %p271, %p272
      %p274 = scmp.ne.s32.totalorder %s266, %s268
      %p275 = scmp.eq.s32.totalorder %s27, 1
      %p276 = por %p274, %p275
      %p277 = scmp.ne.s32.totalorder %s268, %s269
      %p278 = scmp.eq.s32.totalorder %s27, 0
      %p279 = por %p277, %p278
      %p280 = scmp.ne.s32.totalorder %s268, %s269
      %p281 = scmp.eq.s32.totalorder %s28, 1
      %p282 = por %p280, %p281
      %p284 = scmp.ne.s32.totalorder %s269, %s283
      %p285 = scmp.eq.s32.totalorder %s28, 0
      %p286 = por %p284, %p285
      %s288 = sadd.s32 %s287, 1
      %p291 = scmp.eq.s32.totalorder %s22, 1
      %p292 = scmp.ne.s32.totalorder %s287, %s289
      %p293 = scmp.eq.s32.totalorder %s22, 0
      %p294 = por %p292, %p293
      %p295 = scmp.ne.s32.totalorder %s287, %s289
      %p296 = scmp.eq.s32.totalorder %s27, 1
      %p297 = por %p295, %p296
      %p298 = scmp.ne.s32.totalorder %s289, %s290
      %p299 = scmp.eq.s32.totalorder %s27, 0
      %p300 = por %p298, %p299
      %p301 = scmp.ne.s32.totalorder %s289, %s290
      %p302 = scmp.eq.s32.totalorder %s28, 1
      %p303 = por %p301, %p302
      %p305 = scmp.ne.s32.totalorder %s290, %s304
      %p306 = scmp.eq.s32.totalorder %s28, 0
      %p307 = por %p305, %p306
      %s308 = ssub.s32 %s22, %s29
      %p309 = scmp.eq.s32.totalorder %s308, 0
      %s311 = sadd.s32 %s310, 1
      %s312 = scalar_select %p309, %s310, %s311
      %p315 = pneg %p309
      %p316 = scmp.eq.s32.totalorder %s22, 1
      %p317 = por %p315, %p316
      %p318 = scmp.ne.s32.totalorder %s310, %s313
      %p319 = scmp.eq.s32.totalorder %s22, 0
      %p320 = por %p318, %p319
      %p321 = scmp.ne.s32.totalorder %s310, %s313
      %p322 = scmp.eq.s32.totalorder %s27, 1
      %p323 = por %p321, %p322
      %p324 = scmp.ne.s32.totalorder %s313, %s314
      %p325 = scmp.eq.s32.totalorder %s27, 0
      %p326 = por %p324, %p325
      %p327 = scmp.ne.s32.totalorder %s313, %s314
      %p328 = scmp.eq.s32.totalorder %s28, 1
      %p329 = por %p327, %p328
      %p331 = scmp.ne.s32.totalorder %s314, %s330
      %p332 = scmp.eq.s32.totalorder %s28, 0
      %p333 = por %p331, %p332
      %p334 = scmp.le.s32.totalorder 1, %s22
      %p335 = scmp.lt.s32.totalorder %s22, 3
      %p336 = pnand %p334, %p335
      %p337 = pneg %p336
      // Predicated region
      $region9: #{tpu_custom_call.1} parent=5 // pred_check
        _
      $region10: #{tpu_custom_call.1} parent=5 // pred_check_branch
        %339 = sbr.rel (%p336) target = $region12
      $region11: #{tpu_custom_call.1} parent=5 // pred_region
        %s340 = ssub.s32 %s22, 1
        // Predicated region
        $region13: #{tpu_custom_call.1} parent=11 // pred_check
          %p341 = pneg %p69
        $region14: #{tpu_custom_call.1} parent=11 // pred_check_branch
          %343 = sbr.rel (%p341) target = $region16
        $region15: #{tpu_custom_call.1} parent=11 // pred_region
          _
        $region16: #{tpu_custom_call.1} parent=11 // pred_fallthru
          _
        // Predicated region
        $region17: #{tpu_custom_call.1} parent=11 // pred_check
          %p344 = pneg %p90
        $region18: #{tpu_custom_call.1} parent=11 // pred_check_branch
          %346 = sbr.rel (%p344) target = $region20
        $region19: #{tpu_custom_call.1} parent=11 // pred_region
          _
        $region20: #{tpu_custom_call.1} parent=11 // pred_fallthru
          _
        // Predicated region
        $region21: #{tpu_custom_call.1} parent=11 // pred_check
          %p347 = pneg %p111
        $region22: #{tpu_custom_call.1} parent=11 // pred_check_branch
          %349 = sbr.rel (%p347) target = $region24
        $region23: #{tpu_custom_call.1} parent=11 // pred_region
          _
        $region24: #{tpu_custom_call.1} parent=11 // pred_fallthru
          _
        // Predicated region
        $region25: #{tpu_custom_call.1} parent=11 // pred_check
          %p350 = pneg %p132
        $region26: #{tpu_custom_call.1} parent=11 // pred_check_branch
          %352 = sbr.rel (%p350) target = $region28
        $region27: #{tpu_custom_call.1} parent=11 // pred_region
          _
        $region28: #{tpu_custom_call.1} parent=11 // pred_fallthru
          _
        // Predicated region
        $region29: #{tpu_custom_call.1} parent=11 // pred_check
          %p353 = pneg %p153
        $region30: #{tpu_custom_call.1} parent=11 // pred_check_branch
          %355 = sbr.rel (%p353) target = $region32
        $region31: #{tpu_custom_call.1} parent=11 // pred_region
          _
        $region32: #{tpu_custom_call.1} parent=11 // pred_fallthru
          _
        // Predicated region
        $region33: #{tpu_custom_call.1} parent=11 // pred_check
          %p356 = pneg %p174
        $region34: #{tpu_custom_call.1} parent=11 // pred_check_branch
          %358 = sbr.rel (%p356) target = $region36
        $region35: #{tpu_custom_call.1} parent=11 // pred_region
          _
        $region36: #{tpu_custom_call.1} parent=11 // pred_fallthru
          _
        // Predicated region
        $region37: #{tpu_custom_call.1} parent=11 // pred_check
          %p359 = pneg %p195
        $region38: #{tpu_custom_call.1} parent=11 // pred_check_branch
          %361 = sbr.rel (%p359) target = $region40
        $region39: #{tpu_custom_call.1} parent=11 // pred_region
          _
        $region40: #{tpu_custom_call.1} parent=11 // pred_fallthru
          _
        // Predicated region
        $region41: #{tpu_custom_call.1} parent=11 // pred_check
          %p362 = pneg %p216
        $region42: #{tpu_custom_call.1} parent=11 // pred_check_branch
          %364 = sbr.rel (%p362) target = $region44
        $region43: #{tpu_custom_call.1} parent=11 // pred_region
          _
        $region44: #{tpu_custom_call.1} parent=11 // pred_fallthru
          _
        // Predicated region
        $region45: #{tpu_custom_call.1} parent=11 // pred_check
          %p365 = pneg %p237
        $region46: #{tpu_custom_call.1} parent=11 // pred_check_branch
          %367 = sbr.rel (%p365) target = $region48
        $region47: #{tpu_custom_call.1} parent=11 // pred_region
          _
        $region48: #{tpu_custom_call.1} parent=11 // pred_fallthru
          _
        // Predicated region
        $region49: #{tpu_custom_call.1} parent=11 // pred_check
          %p368 = pneg %p258
        $region50: #{tpu_custom_call.1} parent=11 // pred_check_branch
          %370 = sbr.rel (%p368) target = $region52
        $region51: #{tpu_custom_call.1} parent=11 // pred_region
          _
        $region52: #{tpu_custom_call.1} parent=11 // pred_fallthru
          _
        // Predicated region
        $region53: #{tpu_custom_call.1} parent=11 // pred_check
          %p371 = pneg %p279
        $region54: #{tpu_custom_call.1} parent=11 // pred_check_branch
          %373 = sbr.rel (%p371) target = $region56
        $region55: #{tpu_custom_call.1} parent=11 // pred_region
          _
        $region56: #{tpu_custom_call.1} parent=11 // pred_fallthru
          _
        // Predicated region
        $region57: #{tpu_custom_call.1} parent=11 // pred_check
          %p374 = pneg %p300
        $region58: #{tpu_custom_call.1} parent=11 // pred_check_branch
          %376 = sbr.rel (%p374) target = $region60
        $region59: #{tpu_custom_call.1} parent=11 // pred_region
          _
        $region60: #{tpu_custom_call.1} parent=11 // pred_fallthru
          _
      $region12: #{tpu_custom_call.1} parent=5 // pred_fallthru
        _
      %p377 = scmp.lt.s32.totalorder %s22, 2
      // Predicated region
      $region61: #{tpu_custom_call.1} parent=5 // pred_check
        %p378 = pneg %p377
      $region62: #{tpu_custom_call.1} parent=5 // pred_check_branch
        %380 = sbr.rel (%p378) target = $region64
      $region63: #{tpu_custom_call.1} parent=5 // pred_region
        // Predicated region
        $region65: #{tpu_custom_call.1} parent=63 // pred_check
          %p381 = pneg %p42
        $region66: #{tpu_custom_call.1} parent=63 // pred_check_branch
          %383 = sbr.rel (%p381) target = $region68
        $region67: #{tpu_custom_call.1} parent=63 // pred_region
          %p384 = scmp.lt.s32.totalorder %s22, 1
          %s385 = scalar_select %p384, %s22, 1
          %s386 = smul.addr %s385, 16
          %s387 = smul.addr %s386, 8
          %s388 = scalar_lea.vmem %s0, %s387
        $region68: #{tpu_custom_call.1} parent=63 // pred_fallthru
          _
      $region64: #{tpu_custom_call.1} parent=5 // pred_fallthru
        _
      %p389 = scmp.le.s32.totalorder 1, %s22
      %p390 = scmp.lt.s32.totalorder %s22, 3
      %p391 = pnand %p389, %p390
      %p392 = pneg %p391
      // Predicated region
      $region69: #{tpu_custom_call.1} parent=5 // pred_check
        _
      $region70: #{tpu_custom_call.1} parent=5 // pred_check_branch
        %394 = sbr.rel (%p391) target = $region72
      $region71: #{tpu_custom_call.1} parent=5 // pred_region
        %s395 = ssub.s32 %s22, 1
        %p396 = scmp.lt.s32.totalorder %s27, 1
        %s397 = scalar_select %p396, %s27, 1
        %s398 = smul.addr %s397, 16
        %s399 = smul.addr %s398, 8
        %s400 = scalar_lea.vmem %s0, %s399
        %p401 = pneg %p48
        %p402 = pneg %p45
        %p403 = pneg %p69
        %p404 = pneg %p66
        %p405 = pneg %p90
        %p406 = pneg %p87
        %p407 = pneg %p111
        %p408 = pneg %p108
        %p409 = pneg %p132
        %p410 = pneg %p129
        %p411 = pneg %p153
        %p412 = pneg %p150
        %p413 = pneg %p174
        %p414 = pneg %p171
        %p415 = pneg %p195
        %p416 = pneg %p192
        %p417 = pneg %p216
        %p418 = pneg %p213
        %p419 = pneg %p237
        %p420 = pneg %p234
        %p421 = pneg %p258
        %p422 = pneg %p255
        %p423 = pneg %p279
        %p424 = pneg %p276
        %p425 = pneg %p300
        %p426 = pneg %p297
        %p427 = pneg %p326
        %p428 = pneg %p323
        %s429 = sand.u32 %s313, 1
        %s430 = scalar_lea.sflag [#allocation3], %s429
        %s431 = sand.u32 %s313, 1
        %s432 = smul.addr %s431, 256
        %s433 = scalar_lea.vmem [#allocation2], %s432
        %p434 = scmp.lt.s32.totalorder %s27, 1
        %s435 = scalar_select %p434, %s27, 1
        %s436 = smul.addr %s435, 16
        %s437 = smul.addr %s436, 8
        %s438 = scalar_lea.vmem %s0, %s437
        %v439 = vld [vmem:[%s438] sm:$0xff]
        %v440 = vld [vmem:[%s438 + $0x8] sm:$0xff]
        %v441 = vld [vmem:[%s438 + $0x10] sm:$0xff]
        %v442 = vld [vmem:[%s438 + $0x18] sm:$0xff]
        %v443 = vld [vmem:[%s438 + $0x20] sm:$0xff]
        %v444 = vld [vmem:[%s438 + $0x28] sm:$0xff]
        %v445 = vld [vmem:[%s438 + $0x30] sm:$0xff]
        %v446 = vld [vmem:[%s438 + $0x38] sm:$0xff]
        %v447 = vld [vmem:[%s438 + $0x40] sm:$0xff]
        %v448 = vld [vmem:[%s438 + $0x48] sm:$0xff]
        %v449 = vld [vmem:[%s438 + $0x50] sm:$0xff]
        %v450 = vld [vmem:[%s438 + $0x58] sm:$0xff]
        %v451 = vld [vmem:[%s438 + $0x60] sm:$0xff]
        %v452 = vld [vmem:[%s438 + $0x68] sm:$0xff]
        %v453 = vld [vmem:[%s438 + $0x70] sm:$0xff]
        %v454 = vld [vmem:[%s438 + $0x78] sm:$0xff]
        %v455 = vld [vmem:[%s2] sm:$0x1]
        %v456 = vld [vmem:[%s2 + $0x1] sm:$0x1]
        %v457 = vld [vmem:[%s2 + $0x2] sm:$0x1]
        %v458 = vld [vmem:[%s2 + $0x3] sm:$0x1]
        %v459 = vld [vmem:[%s2 + $0x4] sm:$0x1]
        %v460 = vld [vmem:[%s2 + $0x5] sm:$0x1]
        %v461 = vld [vmem:[%s2 + $0x6] sm:$0x1]
        %v462 = vld [vmem:[%s2 + $0x7] sm:$0x1]
        %v463 = vld [vmem:[%s2 + $0x8] sm:$0x1]
        %v464 = vld [vmem:[%s2 + $0x9] sm:$0x1]
        %v465 = vld [vmem:[%s2 + $0xa] sm:$0x1]
        %v466 = vld [vmem:[%s2 + $0xb] sm:$0x1]
        %v467 = vld [vmem:[%s2 + $0xc] sm:$0x1]
        %v468 = vld [vmem:[%s2 + $0xd] sm:$0x1]
        %v469 = vld [vmem:[%s2 + $0xe] sm:$0x1]
        %v470 = vld [vmem:[%s2 + $0xf] sm:$0x1]
        %v471 = vld [vmem:[%s1] sm:$0x1]
        %v472 = vld [vmem:[%s1 + $0x1] sm:$0x1]
        %v473 = vld [vmem:[%s1 + $0x2] sm:$0x1]
        %v474 = vld [vmem:[%s1 + $0x3] sm:$0x1]
        %v475 = vld [vmem:[%s1 + $0x4] sm:$0x1]
        %v476 = vld [vmem:[%s1 + $0x5] sm:$0x1]
        %v477 = vld [vmem:[%s1 + $0x6] sm:$0x1]
        %v478 = vld [vmem:[%s1 + $0x7] sm:$0x1]
        %v479 = vld [vmem:[%s1 + $0x8] sm:$0x1]
        %v480 = vld [vmem:[%s1 + $0x9] sm:$0x1]
        %v481 = vld [vmem:[%s1 + $0xa] sm:$0x1]
        %v482 = vld [vmem:[%s1 + $0xb] sm:$0x1]
        %v483 = vld [vmem:[%s1 + $0xc] sm:$0x1]
        %v484 = vld [vmem:[%s1 + $0xd] sm:$0x1]
        %v485 = vld [vmem:[%s1 + $0xe] sm:$0x1]
        %v486 = vld [vmem:[%s1 + $0xf] sm:$0x1]
        %v503 = vlaneseq
        %v504 = vshrl.u32 %v503, 7
        %v505 = vsub.s32 0, %v504
        %v506 = vrot.slane %v471, %v505
        %v507 = vlaneseq
        %v508 = vshrl.u32 %v507, 7
        %v509 = vsub.s32 0, %v508
        %v510 = vrot.slane %v472, %v509
        %v511 = vlaneseq
        %v512 = vshrl.u32 %v511, 7
        %v513 = vsub.s32 0, %v512
        %v514 = vrot.slane %v473, %v513
        %v515 = vlaneseq
        %v516 = vshrl.u32 %v515, 7
        %v517 = vsub.s32 0, %v516
        %v518 = vrot.slane %v474, %v517
        %v519 = vlaneseq
        %v520 = vshrl.u32 %v519, 7
        %v521 = vsub.s32 0, %v520
        %v522 = vrot.slane %v475, %v521
        %v523 = vlaneseq
        %v524 = vshrl.u32 %v523, 7
        %v525 = vsub.s32 0, %v524
        %v526 = vrot.slane %v476, %v525
        %v527 = vlaneseq
        %v528 = vshrl.u32 %v527, 7
        %v529 = vsub.s32 0, %v528
        %v530 = vrot.slane %v477, %v529
        %v531 = vlaneseq
        %v532 = vshrl.u32 %v531, 7
        %v533 = vsub.s32 0, %v532
        %v534 = vrot.slane %v478, %v533
        %v535 = vlaneseq
        %v536 = vshrl.u32 %v535, 7
        %v537 = vsub.s32 0, %v536
        %v538 = vrot.slane %v479, %v537
        %v539 = vlaneseq
        %v540 = vshrl.u32 %v539, 7
        %v541 = vsub.s32 0, %v540
        %v542 = vrot.slane %v480, %v541
        %v543 = vlaneseq
        %v544 = vshrl.u32 %v543, 7
        %v545 = vsub.s32 0, %v544
        %v546 = vrot.slane %v481, %v545
        %v547 = vlaneseq
        %v548 = vshrl.u32 %v547, 7
        %v549 = vsub.s32 0, %v548
        %v550 = vrot.slane %v482, %v549
        %v551 = vlaneseq
        %v552 = vshrl.u32 %v551, 7
        %v553 = vsub.s32 0, %v552
        %v554 = vrot.slane %v483, %v553
        %v555 = vlaneseq
        %v556 = vshrl.u32 %v555, 7
        %v557 = vsub.s32 0, %v556
        %v558 = vrot.slane %v484, %v557
        %v559 = vlaneseq
        %v560 = vshrl.u32 %v559, 7
        %v561 = vsub.s32 0, %v560
        %v562 = vrot.slane %v485, %v561
        %v563 = vlaneseq
        %v564 = vshrl.u32 %v563, 7
        %v565 = vsub.s32 0, %v564
        %v566 = vrot.slane %v486, %v565
        %567 = vset.pattern.permute.xlu0 0
        %568 = vperm.xlu0 %567, %v506
        %v569 = vpop.permute.xlu0 %568
        %571 = vset.pattern.permute.xlu0 0
        %572 = vperm.xlu0 %571, %v510
        %v573 = vpop.permute.xlu0 %572
        %575 = vset.pattern.permute.xlu0 0
        %576 = vperm.xlu0 %575, %v514
        %v577 = vpop.permute.xlu0 %576
        %579 = vset.pattern.permute.xlu0 0
        %580 = vperm.xlu0 %579, %v518
        %v581 = vpop.permute.xlu0 %580
        %583 = vset.pattern.permute.xlu0 0
        %584 = vperm.xlu0 %583, %v522
        %v585 = vpop.permute.xlu0 %584
        %587 = vset.pattern.permute.xlu0 0
        %588 = vperm.xlu0 %587, %v526
        %v589 = vpop.permute.xlu0 %588
        %591 = vset.pattern.permute.xlu0 0
        %592 = vperm.xlu0 %591, %v530
        %v593 = vpop.permute.xlu0 %592
        %595 = vset.pattern.permute.xlu0 0
        %596 = vperm.xlu0 %595, %v534
        %v597 = vpop.permute.xlu0 %596
        %599 = vset.pattern.permute.xlu0 0
        %600 = vperm.xlu0 %599, %v538
        %v601 = vpop.permute.xlu0 %600
        %603 = vset.pattern.permute.xlu0 0
        %604 = vperm.xlu0 %603, %v542
        %v605 = vpop.permute.xlu0 %604
        %607 = vset.pattern.permute.xlu0 0
        %608 = vperm.xlu0 %607, %v546
        %v609 = vpop.permute.xlu0 %608
        %611 = vset.pattern.permute.xlu0 0
        %612 = vperm.xlu0 %611, %v550
        %v613 = vpop.permute.xlu0 %612
        %615 = vset.pattern.permute.xlu0 0
        %616 = vperm.xlu0 %615, %v554
        %v617 = vpop.permute.xlu0 %616
        %619 = vset.pattern.permute.xlu0 0
        %620 = vperm.xlu0 %619, %v558
        %v621 = vpop.permute.xlu0 %620
        %623 = vset.pattern.permute.xlu0 0
        %624 = vperm.xlu0 %623, %v562
        %v625 = vpop.permute.xlu0 %624
        %627 = vset.pattern.permute.xlu0 0
        %628 = vperm.xlu0 %627, %v566
        %v629 = vpop.permute.xlu0 %628
        %v631 = vmul.f32 %v569, %v439
        %v632 = vmul.f32 %v569, %v440
        %v633 = vmul.f32 %v573, %v439
        %v634 = vmul.f32 %v573, %v440
        %v635 = vmul.f32 %v577, %v439
        %v636 = vmul.f32 %v577, %v440
        %v637 = vmul.f32 %v581, %v439
        %v638 = vmul.f32 %v581, %v440
        %v639 = vmul.f32 %v585, %v439
        %v640 = vmul.f32 %v585, %v440
        %v641 = vmul.f32 %v589, %v439
        %v642 = vmul.f32 %v589, %v440
        %v643 = vmul.f32 %v593, %v439
        %v644 = vmul.f32 %v593, %v440
        %v645 = vmul.f32 %v597, %v439
        %v646 = vmul.f32 %v597, %v440
        %v647 = vmul.f32 %v601, %v439
        %v648 = vmul.f32 %v601, %v440
        %v649 = vmul.f32 %v605, %v439
        %v650 = vmul.f32 %v605, %v440
        %v651 = vmul.f32 %v609, %v439
        %v652 = vmul.f32 %v609, %v440
        %v653 = vmul.f32 %v613, %v439
        %v654 = vmul.f32 %v613, %v440
        %v655 = vmul.f32 %v617, %v439
        %v656 = vmul.f32 %v617, %v440
        %v657 = vmul.f32 %v621, %v439
        %v658 = vmul.f32 %v621, %v440
        %v659 = vmul.f32 %v625, %v439
        %v660 = vmul.f32 %v625, %v440
        %v661 = vmul.f32 %v629, %v439
        %v662 = vmul.f32 %v629, %v440
        %v679 = vlaneseq
        %v680 = vshrl.u32 %v679, 7
        %v681 = vsub.s32 0, %v680
        %v682 = vrot.slane %v455, %v681
        %v683 = vlaneseq
        %v684 = vshrl.u32 %v683, 7
        %v685 = vsub.s32 0, %v684
        %v686 = vrot.slane %v456, %v685
        %v687 = vlaneseq
        %v688 = vshrl.u32 %v687, 7
        %v689 = vsub.s32 0, %v688
        %v690 = vrot.slane %v457, %v689
        %v691 = vlaneseq
        %v692 = vshrl.u32 %v691, 7
        %v693 = vsub.s32 0, %v692
        %v694 = vrot.slane %v458, %v693
        %v695 = vlaneseq
        %v696 = vshrl.u32 %v695, 7
        %v697 = vsub.s32 0, %v696
        %v698 = vrot.slane %v459, %v697
        %v699 = vlaneseq
        %v700 = vshrl.u32 %v699, 7
        %v701 = vsub.s32 0, %v700
        %v702 = vrot.slane %v460, %v701
        %v703 = vlaneseq
        %v704 = vshrl.u32 %v703, 7
        %v705 = vsub.s32 0, %v704
        %v706 = vrot.slane %v461, %v705
        %v707 = vlaneseq
        %v708 = vshrl.u32 %v707, 7
        %v709 = vsub.s32 0, %v708
        %v710 = vrot.slane %v462, %v709
        %v711 = vlaneseq
        %v712 = vshrl.u32 %v711, 7
        %v713 = vsub.s32 0, %v712
        %v714 = vrot.slane %v463, %v713
        %v715 = vlaneseq
        %v716 = vshrl.u32 %v715, 7
        %v717 = vsub.s32 0, %v716
        %v718 = vrot.slane %v464, %v717
        %v719 = vlaneseq
        %v720 = vshrl.u32 %v719, 7
        %v721 = vsub.s32 0, %v720
        %v722 = vrot.slane %v465, %v721
        %v723 = vlaneseq
        %v724 = vshrl.u32 %v723, 7
        %v725 = vsub.s32 0, %v724
        %v726 = vrot.slane %v466, %v725
        %v727 = vlaneseq
        %v728 = vshrl.u32 %v727, 7
        %v729 = vsub.s32 0, %v728
        %v730 = vrot.slane %v467, %v729
        %v731 = vlaneseq
        %v732 = vshrl.u32 %v731, 7
        %v733 = vsub.s32 0, %v732
        %v734 = vrot.slane %v468, %v733
        %v735 = vlaneseq
        %v736 = vshrl.u32 %v735, 7
        %v737 = vsub.s32 0, %v736
        %v738 = vrot.slane %v469, %v737
        %v739 = vlaneseq
        %v740 = vshrl.u32 %v739, 7
        %v741 = vsub.s32 0, %v740
        %v742 = vrot.slane %v470, %v741
        %743 = vset.pattern.permute.xlu0 0
        %744 = vperm.xlu0 %743, %v682
        %v745 = vpop.permute.xlu0 %744
        %747 = vset.pattern.permute.xlu0 0
        %748 = vperm.xlu0 %747, %v686
        %v749 = vpop.permute.xlu0 %748
        %751 = vset.pattern.permute.xlu0 0
        %752 = vperm.xlu0 %751, %v690
        %v753 = vpop.permute.xlu0 %752
        %755 = vset.pattern.permute.xlu0 0
        %756 = vperm.xlu0 %755, %v694
        %v757 = vpop.permute.xlu0 %756
        %759 = vset.pattern.permute.xlu0 0
        %760 = vperm.xlu0 %759, %v698
        %v761 = vpop.permute.xlu0 %760
        %763 = vset.pattern.permute.xlu0 0
        %764 = vperm.xlu0 %763, %v702
        %v765 = vpop.permute.xlu0 %764
        %767 = vset.pattern.permute.xlu0 0
        %768 = vperm.xlu0 %767, %v706
        %v769 = vpop.permute.xlu0 %768
        %771 = vset.pattern.permute.xlu0 0
        %772 = vperm.xlu0 %771, %v710
        %v773 = vpop.permute.xlu0 %772
        %775 = vset.pattern.permute.xlu0 0
        %776 = vperm.xlu0 %775, %v714
        %v777 = vpop.permute.xlu0 %776
        %779 = vset.pattern.permute.xlu0 0
        %780 = vperm.xlu0 %779, %v718
        %v781 = vpop.permute.xlu0 %780
        %783 = vset.pattern.permute.xlu0 0
        %784 = vperm.xlu0 %783, %v722
        %v785 = vpop.permute.xlu0 %784
        %787 = vset.pattern.permute.xlu0 0
        %788 = vperm.xlu0 %787, %v726
        %v789 = vpop.permute.xlu0 %788
        %791 = vset.pattern.permute.xlu0 0
        %792 = vperm.xlu0 %791, %v730
        %v793 = vpop.permute.xlu0 %792
        %795 = vset.pattern.permute.xlu0 0
        %796 = vperm.xlu0 %795, %v734
        %v797 = vpop.permute.xlu0 %796
        %799 = vset.pattern.permute.xlu0 0
        %800 = vperm.xlu0 %799, %v738
        %v801 = vpop.permute.xlu0 %800
        %803 = vset.pattern.permute.xlu0 0
        %804 = vperm.xlu0 %803, %v742
        %v805 = vpop.permute.xlu0 %804
        %v807 = vadd.f32 %v745, %v631
        %v808 = vadd.f32 %v745, %v632
        %v809 = vadd.f32 %v749, %v633
        %v810 = vadd.f32 %v749, %v634
        %v811 = vadd.f32 %v753, %v635
        %v812 = vadd.f32 %v753, %v636
        %v813 = vadd.f32 %v757, %v637
        %v814 = vadd.f32 %v757, %v638
        %v815 = vadd.f32 %v761, %v639
        %v816 = vadd.f32 %v761, %v640
        %v817 = vadd.f32 %v765, %v641
        %v818 = vadd.f32 %v765, %v642
        %v819 = vadd.f32 %v769, %v643
        %v820 = vadd.f32 %v769, %v644
        %v821 = vadd.f32 %v773, %v645
        %v822 = vadd.f32 %v773, %v646
        %v823 = vadd.f32 %v777, %v647
        %v824 = vadd.f32 %v777, %v648
        %v825 = vadd.f32 %v781, %v649
        %v826 = vadd.f32 %v781, %v650
        %v827 = vadd.f32 %v785, %v651
        %v828 = vadd.f32 %v785, %v652
        %v829 = vadd.f32 %v789, %v653
        %v830 = vadd.f32 %v789, %v654
        %v831 = vadd.f32 %v793, %v655
        %v832 = vadd.f32 %v793, %v656
        %v833 = vadd.f32 %v797, %v657
        %v834 = vadd.f32 %v797, %v658
        %v835 = vadd.f32 %v801, %v659
        %v836 = vadd.f32 %v801, %v660
        %v837 = vadd.f32 %v805, %v661
        %v838 = vadd.f32 %v805, %v662
        %s839 = scalar_lea.vmem %s1, 16
        %v840 = vld [vmem:[%s839] sm:$0x1]
        %v841 = vld [vmem:[%s839 + $0x1] sm:$0x1]
        %v842 = vld [vmem:[%s839 + $0x2] sm:$0x1]
        %v843 = vld [vmem:[%s839 + $0x3] sm:$0x1]
        %v844 = vld [vmem:[%s839 + $0x4] sm:$0x1]
        %v845 = vld [vmem:[%s839 + $0x5] sm:$0x1]
        %v846 = vld [vmem:[%s839 + $0x6] sm:$0x1]
        %v847 = vld [vmem:[%s839 + $0x7] sm:$0x1]
        %v848 = vld [vmem:[%s839 + $0x8] sm:$0x1]
        %v849 = vld [vmem:[%s839 + $0x9] sm:$0x1]
        %v850 = vld [vmem:[%s839 + $0xa] sm:$0x1]
        %v851 = vld [vmem:[%s839 + $0xb] sm:$0x1]
        %v852 = vld [vmem:[%s839 + $0xc] sm:$0x1]
        %v853 = vld [vmem:[%s839 + $0xd] sm:$0x1]
        %v854 = vld [vmem:[%s839 + $0xe] sm:$0x1]
        %v855 = vld [vmem:[%s839 + $0xf] sm:$0x1]
        %v872 = vlaneseq
        %v873 = vshrl.u32 %v872, 7
        %v874 = vsub.s32 0, %v873
        %v875 = vrot.slane %v840, %v874
        %v876 = vlaneseq
        %v877 = vshrl.u32 %v876, 7
        %v878 = vsub.s32 0, %v877
        %v879 = vrot.slane %v841, %v878
        %v880 = vlaneseq
        %v881 = vshrl.u32 %v880, 7
        %v882 = vsub.s32 0, %v881
        %v883 = vrot.slane %v842, %v882
        %v884 = vlaneseq
        %v885 = vshrl.u32 %v884, 7
        %v886 = vsub.s32 0, %v885
        %v887 = vrot.slane %v843, %v886
        %v888 = vlaneseq
        %v889 = vshrl.u32 %v888, 7
        %v890 = vsub.s32 0, %v889
        %v891 = vrot.slane %v844, %v890
        %v892 = vlaneseq
        %v893 = vshrl.u32 %v892, 7
        %v894 = vsub.s32 0, %v893
        %v895 = vrot.slane %v845, %v894
        %v896 = vlaneseq
        %v897 = vshrl.u32 %v896, 7
        %v898 = vsub.s32 0, %v897
        %v899 = vrot.slane %v846, %v898
        %v900 = vlaneseq
        %v901 = vshrl.u32 %v900, 7
        %v902 = vsub.s32 0, %v901
        %v903 = vrot.slane %v847, %v902
        %v904 = vlaneseq
        %v905 = vshrl.u32 %v904, 7
        %v906 = vsub.s32 0, %v905
        %v907 = vrot.slane %v848, %v906
        %v908 = vlaneseq
        %v909 = vshrl.u32 %v908, 7
        %v910 = vsub.s32 0, %v909
        %v911 = vrot.slane %v849, %v910
        %v912 = vlaneseq
        %v913 = vshrl.u32 %v912, 7
        %v914 = vsub.s32 0, %v913
        %v915 = vrot.slane %v850, %v914
        %v916 = vlaneseq
        %v917 = vshrl.u32 %v916, 7
        %v918 = vsub.s32 0, %v917
        %v919 = vrot.slane %v851, %v918
        %v920 = vlaneseq
        %v921 = vshrl.u32 %v920, 7
        %v922 = vsub.s32 0, %v921
        %v923 = vrot.slane %v852, %v922
        %v924 = vlaneseq
        %v925 = vshrl.u32 %v924, 7
        %v926 = vsub.s32 0, %v925
        %v927 = vrot.slane %v853, %v926
        %v928 = vlaneseq
        %v929 = vshrl.u32 %v928, 7
        %v930 = vsub.s32 0, %v929
        %v931 = vrot.slane %v854, %v930
        %v932 = vlaneseq
        %v933 = vshrl.u32 %v932, 7
        %v934 = vsub.s32 0, %v933
        %v935 = vrot.slane %v855, %v934
        %936 = vset.pattern.permute.xlu0 0
        %937 = vperm.xlu0 %936, %v875
        %v938 = vpop.permute.xlu0 %937
        %940 = vset.pattern.permute.xlu0 0
        %941 = vperm.xlu0 %940, %v879
        %v942 = vpop.permute.xlu0 %941
        %944 = vset.pattern.permute.xlu0 0
        %945 = vperm.xlu0 %944, %v883
        %v946 = vpop.permute.xlu0 %945
        %948 = vset.pattern.permute.xlu0 0
        %949 = vperm.xlu0 %948, %v887
        %v950 = vpop.permute.xlu0 %949
        %952 = vset.pattern.permute.xlu0 0
        %953 = vperm.xlu0 %952, %v891
        %v954 = vpop.permute.xlu0 %953
        %956 = vset.pattern.permute.xlu0 0
        %957 = vperm.xlu0 %956, %v895
        %v958 = vpop.permute.xlu0 %957
        %960 = vset.pattern.permute.xlu0 0
        %961 = vperm.xlu0 %960, %v899
        %v962 = vpop.permute.xlu0 %961
        %964 = vset.pattern.permute.xlu0 0
        %965 = vperm.xlu0 %964, %v903
        %v966 = vpop.permute.xlu0 %965
        %968 = vset.pattern.permute.xlu0 0
        %969 = vperm.xlu0 %968, %v907
        %v970 = vpop.permute.xlu0 %969
        %972 = vset.pattern.permute.xlu0 0
        %973 = vperm.xlu0 %972, %v911
        %v974 = vpop.permute.xlu0 %973
        %976 = vset.pattern.permute.xlu0 0
        %977 = vperm.xlu0 %976, %v915
        %v978 = vpop.permute.xlu0 %977
        %980 = vset.pattern.permute.xlu0 0
        %981 = vperm.xlu0 %980, %v919
        %v982 = vpop.permute.xlu0 %981
        %984 = vset.pattern.permute.xlu0 0
        %985 = vperm.xlu0 %984, %v923
        %v986 = vpop.permute.xlu0 %985
        %988 = vset.pattern.permute.xlu0 0
        %989 = vperm.xlu0 %988, %v927
        %v990 = vpop.permute.xlu0 %989
        %992 = vset.pattern.permute.xlu0 0
        %993 = vperm.xlu0 %992, %v931
        %v994 = vpop.permute.xlu0 %993
        %996 = vset.pattern.permute.xlu0 0
        %997 = vperm.xlu0 %996, %v935
        %v998 = vpop.permute.xlu0 %997
        %v1000 = vmul.f32 %v938, %v441
        %v1001 = vmul.f32 %v938, %v442
        %v1002 = vmul.f32 %v942, %v441
        %v1003 = vmul.f32 %v942, %v442
        %v1004 = vmul.f32 %v946, %v441
        %v1005 = vmul.f32 %v946, %v442
        %v1006 = vmul.f32 %v950, %v441
        %v1007 = vmul.f32 %v950, %v442
        %v1008 = vmul.f32 %v954, %v441
        %v1009 = vmul.f32 %v954, %v442
        %v1010 = vmul.f32 %v958, %v441
        %v1011 = vmul.f32 %v958, %v442
        %v1012 = vmul.f32 %v962, %v441
        %v1013 = vmul.f32 %v962, %v442
        %v1014 = vmul.f32 %v966, %v441
        %v1015 = vmul.f32 %v966, %v442
        %v1016 = vmul.f32 %v970, %v441
        %v1017 = vmul.f32 %v970, %v442
        %v1018 = vmul.f32 %v974, %v441
        %v1019 = vmul.f32 %v974, %v442
        %v1020 = vmul.f32 %v978, %v441
        %v1021 = vmul.f32 %v978, %v442
        %v1022 = vmul.f32 %v982, %v441
        %v1023 = vmul.f32 %v982, %v442
        %v1024 = vmul.f32 %v986, %v441
        %v1025 = vmul.f32 %v986, %v442
        %v1026 = vmul.f32 %v990, %v441
        %v1027 = vmul.f32 %v990, %v442
        %v1028 = vmul.f32 %v994, %v441
        %v1029 = vmul.f32 %v994, %v442
        %v1030 = vmul.f32 %v998, %v441
        %v1031 = vmul.f32 %v998, %v442
        %v1032 = vadd.f32 %v807, %v1000
        %v1033 = vadd.f32 %v808, %v1001
        %v1034 = vadd.f32 %v809, %v1002
        %v1035 = vadd.f32 %v810, %v1003
        %v1036 = vadd.f32 %v811, %v1004
        %v1037 = vadd.f32 %v812, %v1005
        %v1038 = vadd.f32 %v813, %v1006
        %v1039 = vadd.f32 %v814, %v1007
        %v1040 = vadd.f32 %v815, %v1008
        %v1041 = vadd.f32 %v816, %v1009
        %v1042 = vadd.f32 %v817, %v1010
        %v1043 = vadd.f32 %v818, %v1011
        %v1044 = vadd.f32 %v819, %v1012
        %v1045 = vadd.f32 %v820, %v1013
        %v1046 = vadd.f32 %v821, %v1014
        %v1047 = vadd.f32 %v822, %v1015
        %v1048 = vadd.f32 %v823, %v1016
        %v1049 = vadd.f32 %v824, %v1017
        %v1050 = vadd.f32 %v825, %v1018
        %v1051 = vadd.f32 %v826, %v1019
        %v1052 = vadd.f32 %v827, %v1020
        %v1053 = vadd.f32 %v828, %v1021
        %v1054 = vadd.f32 %v829, %v1022
        %v1055 = vadd.f32 %v830, %v1023
        %v1056 = vadd.f32 %v831, %v1024
        %v1057 = vadd.f32 %v832, %v1025
        %v1058 = vadd.f32 %v833, %v1026
        %v1059 = vadd.f32 %v834, %v1027
        %v1060 = vadd.f32 %v835, %v1028
        %v1061 = vadd.f32 %v836, %v1029
        %v1062 = vadd.f32 %v837, %v1030
        %v1063 = vadd.f32 %v838, %v1031
        %s1064 = scalar_lea.vmem %s1, 32
        %v1065 = vld [vmem:[%s1064] sm:$0x1]
        %v1066 = vld [vmem:[%s1064 + $0x1] sm:$0x1]
        %v1067 = vld [vmem:[%s1064 + $0x2] sm:$0x1]
        %v1068 = vld [vmem:[%s1064 + $0x3] sm:$0x1]
        %v1069 = vld [vmem:[%s1064 + $0x4] sm:$0x1]
        %v1070 = vld [vmem:[%s1064 + $0x5] sm:$0x1]
        %v1071 = vld [vmem:[%s1064 + $0x6] sm:$0x1]
        %v1072 = vld [vmem:[%s1064 + $0x7] sm:$0x1]
        %v1073 = vld [vmem:[%s1064 + $0x8] sm:$0x1]
        %v1074 = vld [vmem:[%s1064 + $0x9] sm:$0x1]
        %v1075 = vld [vmem:[%s1064 + $0xa] sm:$0x1]
        %v1076 = vld [vmem:[%s1064 + $0xb] sm:$0x1]
        %v1077 = vld [vmem:[%s1064 + $0xc] sm:$0x1]
        %v1078 = vld [vmem:[%s1064 + $0xd] sm:$0x1]
        %v1079 = vld [vmem:[%s1064 + $0xe] sm:$0x1]
        %v1080 = vld [vmem:[%s1064 + $0xf] sm:$0x1]
        %v1097 = vlaneseq
        %v1098 = vshrl.u32 %v1097, 7
        %v1099 = vsub.s32 0, %v1098
        %v1100 = vrot.slane %v1065, %v1099
        %v1101 = vlaneseq
        %v1102 = vshrl.u32 %v1101, 7
        %v1103 = vsub.s32 0, %v1102
        %v1104 = vrot.slane %v1066, %v1103
        %v1105 = vlaneseq
        %v1106 = vshrl.u32 %v1105, 7
        %v1107 = vsub.s32 0, %v1106
        %v1108 = vrot.slane %v1067, %v1107
        %v1109 = vlaneseq
        %v1110 = vshrl.u32 %v1109, 7
        %v1111 = vsub.s32 0, %v1110
        %v1112 = vrot.slane %v1068, %v1111
        %v1113 = vlaneseq
        %v1114 = vshrl.u32 %v1113, 7
        %v1115 = vsub.s32 0, %v1114
        %v1116 = vrot.slane %v1069, %v1115
        %v1117 = vlaneseq
        %v1118 = vshrl.u32 %v1117, 7
        %v1119 = vsub.s32 0, %v1118
        %v1120 = vrot.slane %v1070, %v1119
        %v1121 = vlaneseq
        %v1122 = vshrl.u32 %v1121, 7
        %v1123 = vsub.s32 0, %v1122
        %v1124 = vrot.slane %v1071, %v1123
        %v1125 = vlaneseq
        %v1126 = vshrl.u32 %v1125, 7
        %v1127 = vsub.s32 0, %v1126
        %v1128 = vrot.slane %v1072, %v1127
        %v1129 = vlaneseq
        %v1130 = vshrl.u32 %v1129, 7
        %v1131 = vsub.s32 0, %v1130
        %v1132 = vrot.slane %v1073, %v1131
        %v1133 = vlaneseq
        %v1134 = vshrl.u32 %v1133, 7
        %v1135 = vsub.s32 0, %v1134
        %v1136 = vrot.slane %v1074, %v1135
        %v1137 = vlaneseq
        %v1138 = vshrl.u32 %v1137, 7
        %v1139 = vsub.s32 0, %v1138
        %v1140 = vrot.slane %v1075, %v1139
        %v1141 = vlaneseq
        %v1142 = vshrl.u32 %v1141, 7
        %v1143 = vsub.s32 0, %v1142
        %v1144 = vrot.slane %v1076, %v1143
        %v1145 = vlaneseq
        %v1146 = vshrl.u32 %v1145, 7
        %v1147 = vsub.s32 0, %v1146
        %v1148 = vrot.slane %v1077, %v1147
        %v1149 = vlaneseq
        %v1150 = vshrl.u32 %v1149, 7
        %v1151 = vsub.s32 0, %v1150
        %v1152 = vrot.slane %v1078, %v1151
        %v1153 = vlaneseq
        %v1154 = vshrl.u32 %v1153, 7
        %v1155 = vsub.s32 0, %v1154
        %v1156 = vrot.slane %v1079, %v1155
        %v1157 = vlaneseq
        %v1158 = vshrl.u32 %v1157, 7
        %v1159 = vsub.s32 0, %v1158
        %v1160 = vrot.slane %v1080, %v1159
        %1161 = vset.pattern.permute.xlu0 0
        %1162 = vperm.xlu0 %1161, %v1100
        %v1163 = vpop.permute.xlu0 %1162
        %1165 = vset.pattern.permute.xlu0 0
        %1166 = vperm.xlu0 %1165, %v1104
        %v1167 = vpop.permute.xlu0 %1166
        %1169 = vset.pattern.permute.xlu0 0
        %1170 = vperm.xlu0 %1169, %v1108
        %v1171 = vpop.permute.xlu0 %1170
        %1173 = vset.pattern.permute.xlu0 0
        %1174 = vperm.xlu0 %1173, %v1112
        %v1175 = vpop.permute.xlu0 %1174
        %1177 = vset.pattern.permute.xlu0 0
        %1178 = vperm.xlu0 %1177, %v1116
        %v1179 = vpop.permute.xlu0 %1178
        %1181 = vset.pattern.permute.xlu0 0
        %1182 = vperm.xlu0 %1181, %v1120
        %v1183 = vpop.permute.xlu0 %1182
        %1185 = vset.pattern.permute.xlu0 0
        %1186 = vperm.xlu0 %1185, %v1124
        %v1187 = vpop.permute.xlu0 %1186
        %1189 = vset.pattern.permute.xlu0 0
        %1190 = vperm.xlu0 %1189, %v1128
        %v1191 = vpop.permute.xlu0 %1190
        %1193 = vset.pattern.permute.xlu0 0
        %1194 = vperm.xlu0 %1193, %v1132
        %v1195 = vpop.permute.xlu0 %1194
        %1197 = vset.pattern.permute.xlu0 0
        %1198 = vperm.xlu0 %1197, %v1136
        %v1199 = vpop.permute.xlu0 %1198
        %1201 = vset.pattern.permute.xlu0 0
        %1202 = vperm.xlu0 %1201, %v1140
        %v1203 = vpop.permute.xlu0 %1202
        %1205 = vset.pattern.permute.xlu0 0
        %1206 = vperm.xlu0 %1205, %v1144
        %v1207 = vpop.permute.xlu0 %1206
        %1209 = vset.pattern.permute.xlu0 0
        %1210 = vperm.xlu0 %1209, %v1148
        %v1211 = vpop.permute.xlu0 %1210
        %1213 = vset.pattern.permute.xlu0 0
        %1214 = vperm.xlu0 %1213, %v1152
        %v1215 = vpop.permute.xlu0 %1214
        %1217 = vset.pattern.permute.xlu0 0
        %1218 = vperm.xlu0 %1217, %v1156
        %v1219 = vpop.permute.xlu0 %1218
        %1221 = vset.pattern.permute.xlu0 0
        %1222 = vperm.xlu0 %1221, %v1160
        %v1223 = vpop.permute.xlu0 %1222
        %v1225 = vmul.f32 %v1163, %v443
        %v1226 = vmul.f32 %v1163, %v444
        %v1227 = vmul.f32 %v1167, %v443
        %v1228 = vmul.f32 %v1167, %v444
        %v1229 = vmul.f32 %v1171, %v443
        %v1230 = vmul.f32 %v1171, %v444
        %v1231 = vmul.f32 %v1175, %v443
        %v1232 = vmul.f32 %v1175, %v444
        %v1233 = vmul.f32 %v1179, %v443
        %v1234 = vmul.f32 %v1179, %v444
        %v1235 = vmul.f32 %v1183, %v443
        %v1236 = vmul.f32 %v1183, %v444
        %v1237 = vmul.f32 %v1187, %v443
        %v1238 = vmul.f32 %v1187, %v444
        %v1239 = vmul.f32 %v1191, %v443
        %v1240 = vmul.f32 %v1191, %v444
        %v1241 = vmul.f32 %v1195, %v443
        %v1242 = vmul.f32 %v1195, %v444
        %v1243 = vmul.f32 %v1199, %v443
        %v1244 = vmul.f32 %v1199, %v444
        %v1245 = vmul.f32 %v1203, %v443
        %v1246 = vmul.f32 %v1203, %v444
        %v1247 = vmul.f32 %v1207, %v443
        %v1248 = vmul.f32 %v1207, %v444
        %v1249 = vmul.f32 %v1211, %v443
        %v1250 = vmul.f32 %v1211, %v444
        %v1251 = vmul.f32 %v1215, %v443
        %v1252 = vmul.f32 %v1215, %v444
        %v1253 = vmul.f32 %v1219, %v443
        %v1254 = vmul.f32 %v1219, %v444
        %v1255 = vmul.f32 %v1223, %v443
        %v1256 = vmul.f32 %v1223, %v444
        %v1257 = vadd.f32 %v1032, %v1225
        %v1258 = vadd.f32 %v1033, %v1226
        %v1259 = vadd.f32 %v1034, %v1227
        %v1260 = vadd.f32 %v1035, %v1228
        %v1261 = vadd.f32 %v1036, %v1229
        %v1262 = vadd.f32 %v1037, %v1230
        %v1263 = vadd.f32 %v1038, %v1231
        %v1264 = vadd.f32 %v1039, %v1232
        %v1265 = vadd.f32 %v1040, %v1233
        %v1266 = vadd.f32 %v1041, %v1234
        %v1267 = vadd.f32 %v1042, %v1235
        %v1268 = vadd.f32 %v1043, %v1236
        %v1269 = vadd.f32 %v1044, %v1237
        %v1270 = vadd.f32 %v1045, %v1238
        %v1271 = vadd.f32 %v1046, %v1239
        %v1272 = vadd.f32 %v1047, %v1240
        %v1273 = vadd.f32 %v1048, %v1241
        %v1274 = vadd.f32 %v1049, %v1242
        %v1275 = vadd.f32 %v1050, %v1243
        %v1276 = vadd.f32 %v1051, %v1244
        %v1277 = vadd.f32 %v1052, %v1245
        %v1278 = vadd.f32 %v1053, %v1246
        %v1279 = vadd.f32 %v1054, %v1247
        %v1280 = vadd.f32 %v1055, %v1248
        %v1281 = vadd.f32 %v1056, %v1249
        %v1282 = vadd.f32 %v1057, %v1250
        %v1283 = vadd.f32 %v1058, %v1251
        %v1284 = vadd.f32 %v1059, %v1252
        %v1285 = vadd.f32 %v1060, %v1253
        %v1286 = vadd.f32 %v1061, %v1254
        %v1287 = vadd.f32 %v1062, %v1255
        %v1288 = vadd.f32 %v1063, %v1256
        %s1289 = scalar_lea.vmem %s1, 48
        %v1290 = vld [vmem:[%s1289] sm:$0x1]
        %v1291 = vld [vmem:[%s1289 + $0x1] sm:$0x1]
        %v1292 = vld [vmem:[%s1289 + $0x2] sm:$0x1]
        %v1293 = vld [vmem:[%s1289 + $0x3] sm:$0x1]
        %v1294 = vld [vmem:[%s1289 + $0x4] sm:$0x1]
        %v1295 = vld [vmem:[%s1289 + $0x5] sm:$0x1]
        %v1296 = vld [vmem:[%s1289 + $0x6] sm:$0x1]
        %v1297 = vld [vmem:[%s1289 + $0x7] sm:$0x1]
        %v1298 = vld [vmem:[%s1289 + $0x8] sm:$0x1]
        %v1299 = vld [vmem:[%s1289 + $0x9] sm:$0x1]
        %v1300 = vld [vmem:[%s1289 + $0xa] sm:$0x1]
        %v1301 = vld [vmem:[%s1289 + $0xb] sm:$0x1]
        %v1302 = vld [vmem:[%s1289 + $0xc] sm:$0x1]
        %v1303 = vld [vmem:[%s1289 + $0xd] sm:$0x1]
        %v1304 = vld [vmem:[%s1289 + $0xe] sm:$0x1]
        %v1305 = vld [vmem:[%s1289 + $0xf] sm:$0x1]
        %v1322 = vlaneseq
        %v1323 = vshrl.u32 %v1322, 7
        %v1324 = vsub.s32 0, %v1323
        %v1325 = vrot.slane %v1290, %v1324
        %v1326 = vlaneseq
        %v1327 = vshrl.u32 %v1326, 7
        %v1328 = vsub.s32 0, %v1327
        %v1329 = vrot.slane %v1291, %v1328
        %v1330 = vlaneseq
        %v1331 = vshrl.u32 %v1330, 7
        %v1332 = vsub.s32 0, %v1331
        %v1333 = vrot.slane %v1292, %v1332
        %v1334 = vlaneseq
        %v1335 = vshrl.u32 %v1334, 7
        %v1336 = vsub.s32 0, %v1335
        %v1337 = vrot.slane %v1293, %v1336
        %v1338 = vlaneseq
        %v1339 = vshrl.u32 %v1338, 7
        %v1340 = vsub.s32 0, %v1339
        %v1341 = vrot.slane %v1294, %v1340
        %v1342 = vlaneseq
        %v1343 = vshrl.u32 %v1342, 7
        %v1344 = vsub.s32 0, %v1343
        %v1345 = vrot.slane %v1295, %v1344
        %v1346 = vlaneseq
        %v1347 = vshrl.u32 %v1346, 7
        %v1348 = vsub.s32 0, %v1347
        %v1349 = vrot.slane %v1296, %v1348
        %v1350 = vlaneseq
        %v1351 = vshrl.u32 %v1350, 7
        %v1352 = vsub.s32 0, %v1351
        %v1353 = vrot.slane %v1297, %v1352
        %v1354 = vlaneseq
        %v1355 = vshrl.u32 %v1354, 7
        %v1356 = vsub.s32 0, %v1355
        %v1357 = vrot.slane %v1298, %v1356
        %v1358 = vlaneseq
        %v1359 = vshrl.u32 %v1358, 7
        %v1360 = vsub.s32 0, %v1359
        %v1361 = vrot.slane %v1299, %v1360
        %v1362 = vlaneseq
        %v1363 = vshrl.u32 %v1362, 7
        %v1364 = vsub.s32 0, %v1363
        %v1365 = vrot.slane %v1300, %v1364
        %v1366 = vlaneseq
        %v1367 = vshrl.u32 %v1366, 7
        %v1368 = vsub.s32 0, %v1367
        %v1369 = vrot.slane %v1301, %v1368
        %v1370 = vlaneseq
        %v1371 = vshrl.u32 %v1370, 7
        %v1372 = vsub.s32 0, %v1371
        %v1373 = vrot.slane %v1302, %v1372
        %v1374 = vlaneseq
        %v1375 = vshrl.u32 %v1374, 7
        %v1376 = vsub.s32 0, %v1375
        %v1377 = vrot.slane %v1303, %v1376
        %v1378 = vlaneseq
        %v1379 = vshrl.u32 %v1378, 7
        %v1380 = vsub.s32 0, %v1379
        %v1381 = vrot.slane %v1304, %v1380
        %v1382 = vlaneseq
        %v1383 = vshrl.u32 %v1382, 7
        %v1384 = vsub.s32 0, %v1383
        %v1385 = vrot.slane %v1305, %v1384
        %1386 = vset.pattern.permute.xlu0 0
        %1387 = vperm.xlu0 %1386, %v1325
        %v1388 = vpop.permute.xlu0 %1387
        %1390 = vset.pattern.permute.xlu0 0
        %1391 = vperm.xlu0 %1390, %v1329
        %v1392 = vpop.permute.xlu0 %1391
        %1394 = vset.pattern.permute.xlu0 0
        %1395 = vperm.xlu0 %1394, %v1333
        %v1396 = vpop.permute.xlu0 %1395
        %1398 = vset.pattern.permute.xlu0 0
        %1399 = vperm.xlu0 %1398, %v1337
        %v1400 = vpop.permute.xlu0 %1399
        %1402 = vset.pattern.permute.xlu0 0
        %1403 = vperm.xlu0 %1402, %v1341
        %v1404 = vpop.permute.xlu0 %1403
        %1406 = vset.pattern.permute.xlu0 0
        %1407 = vperm.xlu0 %1406, %v1345
        %v1408 = vpop.permute.xlu0 %1407
        %1410 = vset.pattern.permute.xlu0 0
        %1411 = vperm.xlu0 %1410, %v1349
        %v1412 = vpop.permute.xlu0 %1411
        %1414 = vset.pattern.permute.xlu0 0
        %1415 = vperm.xlu0 %1414, %v1353
        %v1416 = vpop.permute.xlu0 %1415
        %1418 = vset.pattern.permute.xlu0 0
        %1419 = vperm.xlu0 %1418, %v1357
        %v1420 = vpop.permute.xlu0 %1419
        %1422 = vset.pattern.permute.xlu0 0
        %1423 = vperm.xlu0 %1422, %v1361
        %v1424 = vpop.permute.xlu0 %1423
        %1426 = vset.pattern.permute.xlu0 0
        %1427 = vperm.xlu0 %1426, %v1365
        %v1428 = vpop.permute.xlu0 %1427
        %1430 = vset.pattern.permute.xlu0 0
        %1431 = vperm.xlu0 %1430, %v1369
        %v1432 = vpop.permute.xlu0 %1431
        %1434 = vset.pattern.permute.xlu0 0
        %1435 = vperm.xlu0 %1434, %v1373
        %v1436 = vpop.permute.xlu0 %1435
        %1438 = vset.pattern.permute.xlu0 0
        %1439 = vperm.xlu0 %1438, %v1377
        %v1440 = vpop.permute.xlu0 %1439
        %1442 = vset.pattern.permute.xlu0 0
        %1443 = vperm.xlu0 %1442, %v1381
        %v1444 = vpop.permute.xlu0 %1443
        %1446 = vset.pattern.permute.xlu0 0
        %1447 = vperm.xlu0 %1446, %v1385
        %v1448 = vpop.permute.xlu0 %1447
        %v1450 = vmul.f32 %v1388, %v445
        %v1451 = vmul.f32 %v1388, %v446
        %v1452 = vmul.f32 %v1392, %v445
        %v1453 = vmul.f32 %v1392, %v446
        %v1454 = vmul.f32 %v1396, %v445
        %v1455 = vmul.f32 %v1396, %v446
        %v1456 = vmul.f32 %v1400, %v445
        %v1457 = vmul.f32 %v1400, %v446
        %v1458 = vmul.f32 %v1404, %v445
        %v1459 = vmul.f32 %v1404, %v446
        %v1460 = vmul.f32 %v1408, %v445
        %v1461 = vmul.f32 %v1408, %v446
        %v1462 = vmul.f32 %v1412, %v445
        %v1463 = vmul.f32 %v1412, %v446
        %v1464 = vmul.f32 %v1416, %v445
        %v1465 = vmul.f32 %v1416, %v446
        %v1466 = vmul.f32 %v1420, %v445
        %v1467 = vmul.f32 %v1420, %v446
        %v1468 = vmul.f32 %v1424, %v445
        %v1469 = vmul.f32 %v1424, %v446
        %v1470 = vmul.f32 %v1428, %v445
        %v1471 = vmul.f32 %v1428, %v446
        %v1472 = vmul.f32 %v1432, %v445
        %v1473 = vmul.f32 %v1432, %v446
        %v1474 = vmul.f32 %v1436, %v445
        %v1475 = vmul.f32 %v1436, %v446
        %v1476 = vmul.f32 %v1440, %v445
        %v1477 = vmul.f32 %v1440, %v446
        %v1478 = vmul.f32 %v1444, %v445
        %v1479 = vmul.f32 %v1444, %v446
        %v1480 = vmul.f32 %v1448, %v445
        %v1481 = vmul.f32 %v1448, %v446
        %v1482 = vadd.f32 %v1257, %v1450
        %v1483 = vadd.f32 %v1258, %v1451
        %v1484 = vadd.f32 %v1259, %v1452
        %v1485 = vadd.f32 %v1260, %v1453
        %v1486 = vadd.f32 %v1261, %v1454
        %v1487 = vadd.f32 %v1262, %v1455
        %v1488 = vadd.f32 %v1263, %v1456
        %v1489 = vadd.f32 %v1264, %v1457
        %v1490 = vadd.f32 %v1265, %v1458
        %v1491 = vadd.f32 %v1266, %v1459
        %v1492 = vadd.f32 %v1267, %v1460
        %v1493 = vadd.f32 %v1268, %v1461
        %v1494 = vadd.f32 %v1269, %v1462
        %v1495 = vadd.f32 %v1270, %v1463
        %v1496 = vadd.f32 %v1271, %v1464
        %v1497 = vadd.f32 %v1272, %v1465
        %v1498 = vadd.f32 %v1273, %v1466
        %v1499 = vadd.f32 %v1274, %v1467
        %v1500 = vadd.f32 %v1275, %v1468
        %v1501 = vadd.f32 %v1276, %v1469
        %v1502 = vadd.f32 %v1277, %v1470
        %v1503 = vadd.f32 %v1278, %v1471
        %v1504 = vadd.f32 %v1279, %v1472
        %v1505 = vadd.f32 %v1280, %v1473
        %v1506 = vadd.f32 %v1281, %v1474
        %v1507 = vadd.f32 %v1282, %v1475
        %v1508 = vadd.f32 %v1283, %v1476
        %v1509 = vadd.f32 %v1284, %v1477
        %v1510 = vadd.f32 %v1285, %v1478
        %v1511 = vadd.f32 %v1286, %v1479
        %v1512 = vadd.f32 %v1287, %v1480
        %v1513 = vadd.f32 %v1288, %v1481
        %s1514 = scalar_lea.vmem %s1, 64
        %v1515 = vld [vmem:[%s1514] sm:$0x1]
        %v1516 = vld [vmem:[%s1514 + $0x1] sm:$0x1]
        %v1517 = vld [vmem:[%s1514 + $0x2] sm:$0x1]
        %v1518 = vld [vmem:[%s1514 + $0x3] sm:$0x1]
        %v1519 = vld [vmem:[%s1514 + $0x4] sm:$0x1]
        %v1520 = vld [vmem:[%s1514 + $0x5] sm:$0x1]
        %v1521 = vld [vmem:[%s1514 + $0x6] sm:$0x1]
        %v1522 = vld [vmem:[%s1514 + $0x7] sm:$0x1]
        %v1523 = vld [vmem:[%s1514 + $0x8] sm:$0x1]
        %v1524 = vld [vmem:[%s1514 + $0x9] sm:$0x1]
        %v1525 = vld [vmem:[%s1514 + $0xa] sm:$0x1]
        %v1526 = vld [vmem:[%s1514 + $0xb] sm:$0x1]
        %v1527 = vld [vmem:[%s1514 + $0xc] sm:$0x1]
        %v1528 = vld [vmem:[%s1514 + $0xd] sm:$0x1]
        %v1529 = vld [vmem:[%s1514 + $0xe] sm:$0x1]
        %v1530 = vld [vmem:[%s1514 + $0xf] sm:$0x1]
        %v1547 = vlaneseq
        %v1548 = vshrl.u32 %v1547, 7
        %v1549 = vsub.s32 0, %v1548
        %v1550 = vrot.slane %v1515, %v1549
        %v1551 = vlaneseq
        %v1552 = vshrl.u32 %v1551, 7
        %v1553 = vsub.s32 0, %v1552
        %v1554 = vrot.slane %v1516, %v1553
        %v1555 = vlaneseq
        %v1556 = vshrl.u32 %v1555, 7
        %v1557 = vsub.s32 0, %v1556
        %v1558 = vrot.slane %v1517, %v1557
        %v1559 = vlaneseq
        %v1560 = vshrl.u32 %v1559, 7
        %v1561 = vsub.s32 0, %v1560
        %v1562 = vrot.slane %v1518, %v1561
        %v1563 = vlaneseq
        %v1564 = vshrl.u32 %v1563, 7
        %v1565 = vsub.s32 0, %v1564
        %v1566 = vrot.slane %v1519, %v1565
        %v1567 = vlaneseq
        %v1568 = vshrl.u32 %v1567, 7
        %v1569 = vsub.s32 0, %v1568
        %v1570 = vrot.slane %v1520, %v1569
        %v1571 = vlaneseq
        %v1572 = vshrl.u32 %v1571, 7
        %v1573 = vsub.s32 0, %v1572
        %v1574 = vrot.slane %v1521, %v1573
        %v1575 = vlaneseq
        %v1576 = vshrl.u32 %v1575, 7
        %v1577 = vsub.s32 0, %v1576
        %v1578 = vrot.slane %v1522, %v1577
        %v1579 = vlaneseq
        %v1580 = vshrl.u32 %v1579, 7
        %v1581 = vsub.s32 0, %v1580
        %v1582 = vrot.slane %v1523, %v1581
        %v1583 = vlaneseq
        %v1584 = vshrl.u32 %v1583, 7
        %v1585 = vsub.s32 0, %v1584
        %v1586 = vrot.slane %v1524, %v1585
        %v1587 = vlaneseq
        %v1588 = vshrl.u32 %v1587, 7
        %v1589 = vsub.s32 0, %v1588
        %v1590 = vrot.slane %v1525, %v1589
        %v1591 = vlaneseq
        %v1592 = vshrl.u32 %v1591, 7
        %v1593 = vsub.s32 0, %v1592
        %v1594 = vrot.slane %v1526, %v1593
        %v1595 = vlaneseq
        %v1596 = vshrl.u32 %v1595, 7
        %v1597 = vsub.s32 0, %v1596
        %v1598 = vrot.slane %v1527, %v1597
        %v1599 = vlaneseq
        %v1600 = vshrl.u32 %v1599, 7
        %v1601 = vsub.s32 0, %v1600
        %v1602 = vrot.slane %v1528, %v1601
        %v1603 = vlaneseq
        %v1604 = vshrl.u32 %v1603, 7
        %v1605 = vsub.s32 0, %v1604
        %v1606 = vrot.slane %v1529, %v1605
        %v1607 = vlaneseq
        %v1608 = vshrl.u32 %v1607, 7
        %v1609 = vsub.s32 0, %v1608
        %v1610 = vrot.slane %v1530, %v1609
        %1611 = vset.pattern.permute.xlu0 0
        %1612 = vperm.xlu0 %1611, %v1550
        %v1613 = vpop.permute.xlu0 %1612
        %1615 = vset.pattern.permute.xlu0 0
        %1616 = vperm.xlu0 %1615, %v1554
        %v1617 = vpop.permute.xlu0 %1616
        %1619 = vset.pattern.permute.xlu0 0
        %1620 = vperm.xlu0 %1619, %v1558
        %v1621 = vpop.permute.xlu0 %1620
        %1623 = vset.pattern.permute.xlu0 0
        %1624 = vperm.xlu0 %1623, %v1562
        %v1625 = vpop.permute.xlu0 %1624
        %1627 = vset.pattern.permute.xlu0 0
        %1628 = vperm.xlu0 %1627, %v1566
        %v1629 = vpop.permute.xlu0 %1628
        %1631 = vset.pattern.permute.xlu0 0
        %1632 = vperm.xlu0 %1631, %v1570
        %v1633 = vpop.permute.xlu0 %1632
        %1635 = vset.pattern.permute.xlu0 0
        %1636 = vperm.xlu0 %1635, %v1574
        %v1637 = vpop.permute.xlu0 %1636
        %1639 = vset.pattern.permute.xlu0 0
        %1640 = vperm.xlu0 %1639, %v1578
        %v1641 = vpop.permute.xlu0 %1640
        %1643 = vset.pattern.permute.xlu0 0
        %1644 = vperm.xlu0 %1643, %v1582
        %v1645 = vpop.permute.xlu0 %1644
        %1647 = vset.pattern.permute.xlu0 0
        %1648 = vperm.xlu0 %1647, %v1586
        %v1649 = vpop.permute.xlu0 %1648
        %1651 = vset.pattern.permute.xlu0 0
        %1652 = vperm.xlu0 %1651, %v1590
        %v1653 = vpop.permute.xlu0 %1652
        %1655 = vset.pattern.permute.xlu0 0
        %1656 = vperm.xlu0 %1655, %v1594
        %v1657 = vpop.permute.xlu0 %1656
        %1659 = vset.pattern.permute.xlu0 0
        %1660 = vperm.xlu0 %1659, %v1598
        %v1661 = vpop.permute.xlu0 %1660
        %1663 = vset.pattern.permute.xlu0 0
        %1664 = vperm.xlu0 %1663, %v1602
        %v1665 = vpop.permute.xlu0 %1664
        %1667 = vset.pattern.permute.xlu0 0
        %1668 = vperm.xlu0 %1667, %v1606
        %v1669 = vpop.permute.xlu0 %1668
        %1671 = vset.pattern.permute.xlu0 0
        %1672 = vperm.xlu0 %1671, %v1610
        %v1673 = vpop.permute.xlu0 %1672
        %v1675 = vmul.f32 %v1613, %v447
        %v1676 = vmul.f32 %v1613, %v448
        %v1677 = vmul.f32 %v1617, %v447
        %v1678 = vmul.f32 %v1617, %v448
        %v1679 = vmul.f32 %v1621, %v447
        %v1680 = vmul.f32 %v1621, %v448
        %v1681 = vmul.f32 %v1625, %v447
        %v1682 = vmul.f32 %v1625, %v448
        %v1683 = vmul.f32 %v1629, %v447
        %v1684 = vmul.f32 %v1629, %v448
        %v1685 = vmul.f32 %v1633, %v447
        %v1686 = vmul.f32 %v1633, %v448
        %v1687 = vmul.f32 %v1637, %v447
        %v1688 = vmul.f32 %v1637, %v448
        %v1689 = vmul.f32 %v1641, %v447
        %v1690 = vmul.f32 %v1641, %v448
        %v1691 = vmul.f32 %v1645, %v447
        %v1692 = vmul.f32 %v1645, %v448
        %v1693 = vmul.f32 %v1649, %v447
        %v1694 = vmul.f32 %v1649, %v448
        %v1695 = vmul.f32 %v1653, %v447
        %v1696 = vmul.f32 %v1653, %v448
        %v1697 = vmul.f32 %v1657, %v447
        %v1698 = vmul.f32 %v1657, %v448
        %v1699 = vmul.f32 %v1661, %v447
        %v1700 = vmul.f32 %v1661, %v448
        %v1701 = vmul.f32 %v1665, %v447
        %v1702 = vmul.f32 %v1665, %v448
        %v1703 = vmul.f32 %v1669, %v447
        %v1704 = vmul.f32 %v1669, %v448
        %v1705 = vmul.f32 %v1673, %v447
        %v1706 = vmul.f32 %v1673, %v448
        %v1707 = vadd.f32 %v1482, %v1675
        %v1708 = vadd.f32 %v1483, %v1676
        %v1709 = vadd.f32 %v1484, %v1677
        %v1710 = vadd.f32 %v1485, %v1678
        %v1711 = vadd.f32 %v1486, %v1679
        %v1712 = vadd.f32 %v1487, %v1680
        %v1713 = vadd.f32 %v1488, %v1681
        %v1714 = vadd.f32 %v1489, %v1682
        %v1715 = vadd.f32 %v1490, %v1683
        %v1716 = vadd.f32 %v1491, %v1684
        %v1717 = vadd.f32 %v1492, %v1685
        %v1718 = vadd.f32 %v1493, %v1686
        %v1719 = vadd.f32 %v1494, %v1687
        %v1720 = vadd.f32 %v1495, %v1688
        %v1721 = vadd.f32 %v1496, %v1689
        %v1722 = vadd.f32 %v1497, %v1690
        %v1723 = vadd.f32 %v1498, %v1691
        %v1724 = vadd.f32 %v1499, %v1692
        %v1725 = vadd.f32 %v1500, %v1693
        %v1726 = vadd.f32 %v1501, %v1694
        %v1727 = vadd.f32 %v1502, %v1695
        %v1728 = vadd.f32 %v1503, %v1696
        %v1729 = vadd.f32 %v1504, %v1697
        %v1730 = vadd.f32 %v1505, %v1698
        %v1731 = vadd.f32 %v1506, %v1699
        %v1732 = vadd.f32 %v1507, %v1700
        %v1733 = vadd.f32 %v1508, %v1701
        %v1734 = vadd.f32 %v1509, %v1702
        %v1735 = vadd.f32 %v1510, %v1703
        %v1736 = vadd.f32 %v1511, %v1704
        %v1737 = vadd.f32 %v1512, %v1705
        %v1738 = vadd.f32 %v1513, %v1706
        %s1739 = scalar_lea.vmem %s1, 80
        %v1740 = vld [vmem:[%s1739] sm:$0x1]
        %v1741 = vld [vmem:[%s1739 + $0x1] sm:$0x1]
        %v1742 = vld [vmem:[%s1739 + $0x2] sm:$0x1]
        %v1743 = vld [vmem:[%s1739 + $0x3] sm:$0x1]
        %v1744 = vld [vmem:[%s1739 + $0x4] sm:$0x1]
        %v1745 = vld [vmem:[%s1739 + $0x5] sm:$0x1]
        %v1746 = vld [vmem:[%s1739 + $0x6] sm:$0x1]
        %v1747 = vld [vmem:[%s1739 + $0x7] sm:$0x1]
        %v1748 = vld [vmem:[%s1739 + $0x8] sm:$0x1]
        %v1749 = vld [vmem:[%s1739 + $0x9] sm:$0x1]
        %v1750 = vld [vmem:[%s1739 + $0xa] sm:$0x1]
        %v1751 = vld [vmem:[%s1739 + $0xb] sm:$0x1]
        %v1752 = vld [vmem:[%s1739 + $0xc] sm:$0x1]
        %v1753 = vld [vmem:[%s1739 + $0xd] sm:$0x1]
        %v1754 = vld [vmem:[%s1739 + $0xe] sm:$0x1]
        %v1755 = vld [vmem:[%s1739 + $0xf] sm:$0x1]
        %v1772 = vlaneseq
        %v1773 = vshrl.u32 %v1772, 7
        %v1774 = vsub.s32 0, %v1773
        %v1775 = vrot.slane %v1740, %v1774
        %v1776 = vlaneseq
        %v1777 = vshrl.u32 %v1776, 7
        %v1778 = vsub.s32 0, %v1777
        %v1779 = vrot.slane %v1741, %v1778
        %v1780 = vlaneseq
        %v1781 = vshrl.u32 %v1780, 7
        %v1782 = vsub.s32 0, %v1781
        %v1783 = vrot.slane %v1742, %v1782
        %v1784 = vlaneseq
        %v1785 = vshrl.u32 %v1784, 7
        %v1786 = vsub.s32 0, %v1785
        %v1787 = vrot.slane %v1743, %v1786
        %v1788 = vlaneseq
        %v1789 = vshrl.u32 %v1788, 7
        %v1790 = vsub.s32 0, %v1789
        %v1791 = vrot.slane %v1744, %v1790
        %v1792 = vlaneseq
        %v1793 = vshrl.u32 %v1792, 7
        %v1794 = vsub.s32 0, %v1793
        %v1795 = vrot.slane %v1745, %v1794
        %v1796 = vlaneseq
        %v1797 = vshrl.u32 %v1796, 7
        %v1798 = vsub.s32 0, %v1797
        %v1799 = vrot.slane %v1746, %v1798
        %v1800 = vlaneseq
        %v1801 = vshrl.u32 %v1800, 7
        %v1802 = vsub.s32 0, %v1801
        %v1803 = vrot.slane %v1747, %v1802
        %v1804 = vlaneseq
        %v1805 = vshrl.u32 %v1804, 7
        %v1806 = vsub.s32 0, %v1805
        %v1807 = vrot.slane %v1748, %v1806
        %v1808 = vlaneseq
        %v1809 = vshrl.u32 %v1808, 7
        %v1810 = vsub.s32 0, %v1809
        %v1811 = vrot.slane %v1749, %v1810
        %v1812 = vlaneseq
        %v1813 = vshrl.u32 %v1812, 7
        %v1814 = vsub.s32 0, %v1813
        %v1815 = vrot.slane %v1750, %v1814
        %v1816 = vlaneseq
        %v1817 = vshrl.u32 %v1816, 7
        %v1818 = vsub.s32 0, %v1817
        %v1819 = vrot.slane %v1751, %v1818
        %v1820 = vlaneseq
        %v1821 = vshrl.u32 %v1820, 7
        %v1822 = vsub.s32 0, %v1821
        %v1823 = vrot.slane %v1752, %v1822
        %v1824 = vlaneseq
        %v1825 = vshrl.u32 %v1824, 7
        %v1826 = vsub.s32 0, %v1825
        %v1827 = vrot.slane %v1753, %v1826
        %v1828 = vlaneseq
        %v1829 = vshrl.u32 %v1828, 7
        %v1830 = vsub.s32 0, %v1829
        %v1831 = vrot.slane %v1754, %v1830
        %v1832 = vlaneseq
        %v1833 = vshrl.u32 %v1832, 7
        %v1834 = vsub.s32 0, %v1833
        %v1835 = vrot.slane %v1755, %v1834
        %1836 = vset.pattern.permute.xlu0 0
        %1837 = vperm.xlu0 %1836, %v1775
        %v1838 = vpop.permute.xlu0 %1837
        %1840 = vset.pattern.permute.xlu0 0
        %1841 = vperm.xlu0 %1840, %v1779
        %v1842 = vpop.permute.xlu0 %1841
        %1844 = vset.pattern.permute.xlu0 0
        %1845 = vperm.xlu0 %1844, %v1783
        %v1846 = vpop.permute.xlu0 %1845
        %1848 = vset.pattern.permute.xlu0 0
        %1849 = vperm.xlu0 %1848, %v1787
        %v1850 = vpop.permute.xlu0 %1849
        %1852 = vset.pattern.permute.xlu0 0
        %1853 = vperm.xlu0 %1852, %v1791
        %v1854 = vpop.permute.xlu0 %1853
        %1856 = vset.pattern.permute.xlu0 0
        %1857 = vperm.xlu0 %1856, %v1795
        %v1858 = vpop.permute.xlu0 %1857
        %1860 = vset.pattern.permute.xlu0 0
        %1861 = vperm.xlu0 %1860, %v1799
        %v1862 = vpop.permute.xlu0 %1861
        %1864 = vset.pattern.permute.xlu0 0
        %1865 = vperm.xlu0 %1864, %v1803
        %v1866 = vpop.permute.xlu0 %1865
        %1868 = vset.pattern.permute.xlu0 0
        %1869 = vperm.xlu0 %1868, %v1807
        %v1870 = vpop.permute.xlu0 %1869
        %1872 = vset.pattern.permute.xlu0 0
        %1873 = vperm.xlu0 %1872, %v1811
        %v1874 = vpop.permute.xlu0 %1873
        %1876 = vset.pattern.permute.xlu0 0
        %1877 = vperm.xlu0 %1876, %v1815
        %v1878 = vpop.permute.xlu0 %1877
        %1880 = vset.pattern.permute.xlu0 0
        %1881 = vperm.xlu0 %1880, %v1819
        %v1882 = vpop.permute.xlu0 %1881
        %1884 = vset.pattern.permute.xlu0 0
        %1885 = vperm.xlu0 %1884, %v1823
        %v1886 = vpop.permute.xlu0 %1885
        %1888 = vset.pattern.permute.xlu0 0
        %1889 = vperm.xlu0 %1888, %v1827
        %v1890 = vpop.permute.xlu0 %1889
        %1892 = vset.pattern.permute.xlu0 0
        %1893 = vperm.xlu0 %1892, %v1831
        %v1894 = vpop.permute.xlu0 %1893
        %1896 = vset.pattern.permute.xlu0 0
        %1897 = vperm.xlu0 %1896, %v1835
        %v1898 = vpop.permute.xlu0 %1897
        %v1900 = vmul.f32 %v1838, %v449
        %v1901 = vmul.f32 %v1838, %v450
        %v1902 = vmul.f32 %v1842, %v449
        %v1903 = vmul.f32 %v1842, %v450
        %v1904 = vmul.f32 %v1846, %v449
        %v1905 = vmul.f32 %v1846, %v450
        %v1906 = vmul.f32 %v1850, %v449
        %v1907 = vmul.f32 %v1850, %v450
        %v1908 = vmul.f32 %v1854, %v449
        %v1909 = vmul.f32 %v1854, %v450
        %v1910 = vmul.f32 %v1858, %v449
        %v1911 = vmul.f32 %v1858, %v450
        %v1912 = vmul.f32 %v1862, %v449
        %v1913 = vmul.f32 %v1862, %v450
        %v1914 = vmul.f32 %v1866, %v449
        %v1915 = vmul.f32 %v1866, %v450
        %v1916 = vmul.f32 %v1870, %v449
        %v1917 = vmul.f32 %v1870, %v450
        %v1918 = vmul.f32 %v1874, %v449
        %v1919 = vmul.f32 %v1874, %v450
        %v1920 = vmul.f32 %v1878, %v449
        %v1921 = vmul.f32 %v1878, %v450
        %v1922 = vmul.f32 %v1882, %v449
        %v1923 = vmul.f32 %v1882, %v450
        %v1924 = vmul.f32 %v1886, %v449
        %v1925 = vmul.f32 %v1886, %v450
        %v1926 = vmul.f32 %v1890, %v449
        %v1927 = vmul.f32 %v1890, %v450
        %v1928 = vmul.f32 %v1894, %v449
        %v1929 = vmul.f32 %v1894, %v450
        %v1930 = vmul.f32 %v1898, %v449
        %v1931 = vmul.f32 %v1898, %v450
        %v1932 = vadd.f32 %v1707, %v1900
        %v1933 = vadd.f32 %v1708, %v1901
        %v1934 = vadd.f32 %v1709, %v1902
        %v1935 = vadd.f32 %v1710, %v1903
        %v1936 = vadd.f32 %v1711, %v1904
        %v1937 = vadd.f32 %v1712, %v1905
        %v1938 = vadd.f32 %v1713, %v1906
        %v1939 = vadd.f32 %v1714, %v1907
        %v1940 = vadd.f32 %v1715, %v1908
        %v1941 = vadd.f32 %v1716, %v1909
        %v1942 = vadd.f32 %v1717, %v1910
        %v1943 = vadd.f32 %v1718, %v1911
        %v1944 = vadd.f32 %v1719, %v1912
        %v1945 = vadd.f32 %v1720, %v1913
        %v1946 = vadd.f32 %v1721, %v1914
        %v1947 = vadd.f32 %v1722, %v1915
        %v1948 = vadd.f32 %v1723, %v1916
        %v1949 = vadd.f32 %v1724, %v1917
        %v1950 = vadd.f32 %v1725, %v1918
        %v1951 = vadd.f32 %v1726, %v1919
        %v1952 = vadd.f32 %v1727, %v1920
        %v1953 = vadd.f32 %v1728, %v1921
        %v1954 = vadd.f32 %v1729, %v1922
        %v1955 = vadd.f32 %v1730, %v1923
        %v1956 = vadd.f32 %v1731, %v1924
        %v1957 = vadd.f32 %v1732, %v1925
        %v1958 = vadd.f32 %v1733, %v1926
        %v1959 = vadd.f32 %v1734, %v1927
        %v1960 = vadd.f32 %v1735, %v1928
        %v1961 = vadd.f32 %v1736, %v1929
        %v1962 = vadd.f32 %v1737, %v1930
        %v1963 = vadd.f32 %v1738, %v1931
        %s1964 = scalar_lea.vmem %s1, 96
        %v1965 = vld [vmem:[%s1964] sm:$0x1]
        %v1966 = vld [vmem:[%s1964 + $0x1] sm:$0x1]
        %v1967 = vld [vmem:[%s1964 + $0x2] sm:$0x1]
        %v1968 = vld [vmem:[%s1964 + $0x3] sm:$0x1]
        %v1969 = vld [vmem:[%s1964 + $0x4] sm:$0x1]
        %v1970 = vld [vmem:[%s1964 + $0x5] sm:$0x1]
        %v1971 = vld [vmem:[%s1964 + $0x6] sm:$0x1]
        %v1972 = vld [vmem:[%s1964 + $0x7] sm:$0x1]
        %v1973 = vld [vmem:[%s1964 + $0x8] sm:$0x1]
        %v1974 = vld [vmem:[%s1964 + $0x9] sm:$0x1]
        %v1975 = vld [vmem:[%s1964 + $0xa] sm:$0x1]
        %v1976 = vld [vmem:[%s1964 + $0xb] sm:$0x1]
        %v1977 = vld [vmem:[%s1964 + $0xc] sm:$0x1]
        %v1978 = vld [vmem:[%s1964 + $0xd] sm:$0x1]
        %v1979 = vld [vmem:[%s1964 + $0xe] sm:$0x1]
        %v1980 = vld [vmem:[%s1964 + $0xf] sm:$0x1]
        %v1997 = vlaneseq
        %v1998 = vshrl.u32 %v1997, 7
        %v1999 = vsub.s32 0, %v1998
        %v2000 = vrot.slane %v1965, %v1999
        %v2001 = vlaneseq
        %v2002 = vshrl.u32 %v2001, 7
        %v2003 = vsub.s32 0, %v2002
        %v2004 = vrot.slane %v1966, %v2003
        %v2005 = vlaneseq
        %v2006 = vshrl.u32 %v2005, 7
        %v2007 = vsub.s32 0, %v2006
        %v2008 = vrot.slane %v1967, %v2007
        %v2009 = vlaneseq
        %v2010 = vshrl.u32 %v2009, 7
        %v2011 = vsub.s32 0, %v2010
        %v2012 = vrot.slane %v1968, %v2011
        %v2013 = vlaneseq
        %v2014 = vshrl.u32 %v2013, 7
        %v2015 = vsub.s32 0, %v2014
        %v2016 = vrot.slane %v1969, %v2015
        %v2017 = vlaneseq
        %v2018 = vshrl.u32 %v2017, 7
        %v2019 = vsub.s32 0, %v2018
        %v2020 = vrot.slane %v1970, %v2019
        %v2021 = vlaneseq
        %v2022 = vshrl.u32 %v2021, 7
        %v2023 = vsub.s32 0, %v2022
        %v2024 = vrot.slane %v1971, %v2023
        %v2025 = vlaneseq
        %v2026 = vshrl.u32 %v2025, 7
        %v2027 = vsub.s32 0, %v2026
        %v2028 = vrot.slane %v1972, %v2027
        %v2029 = vlaneseq
        %v2030 = vshrl.u32 %v2029, 7
        %v2031 = vsub.s32 0, %v2030
        %v2032 = vrot.slane %v1973, %v2031
        %v2033 = vlaneseq
        %v2034 = vshrl.u32 %v2033, 7
        %v2035 = vsub.s32 0, %v2034
        %v2036 = vrot.slane %v1974, %v2035
        %v2037 = vlaneseq
        %v2038 = vshrl.u32 %v2037, 7
        %v2039 = vsub.s32 0, %v2038
        %v2040 = vrot.slane %v1975, %v2039
        %v2041 = vlaneseq
        %v2042 = vshrl.u32 %v2041, 7
        %v2043 = vsub.s32 0, %v2042
        %v2044 = vrot.slane %v1976, %v2043
        %v2045 = vlaneseq
        %v2046 = vshrl.u32 %v2045, 7
        %v2047 = vsub.s32 0, %v2046
        %v2048 = vrot.slane %v1977, %v2047
        %v2049 = vlaneseq
        %v2050 = vshrl.u32 %v2049, 7
        %v2051 = vsub.s32 0, %v2050
        %v2052 = vrot.slane %v1978, %v2051
        %v2053 = vlaneseq
        %v2054 = vshrl.u32 %v2053, 7
        %v2055 = vsub.s32 0, %v2054
        %v2056 = vrot.slane %v1979, %v2055
        %v2057 = vlaneseq
        %v2058 = vshrl.u32 %v2057, 7
        %v2059 = vsub.s32 0, %v2058
        %v2060 = vrot.slane %v1980, %v2059
        %2061 = vset.pattern.permute.xlu0 0
        %2062 = vperm.xlu0 %2061, %v2000
        %v2063 = vpop.permute.xlu0 %2062
        %2065 = vset.pattern.permute.xlu0 0
        %2066 = vperm.xlu0 %2065, %v2004
        %v2067 = vpop.permute.xlu0 %2066
        %2069 = vset.pattern.permute.xlu0 0
        %2070 = vperm.xlu0 %2069, %v2008
        %v2071 = vpop.permute.xlu0 %2070
        %2073 = vset.pattern.permute.xlu0 0
        %2074 = vperm.xlu0 %2073, %v2012
        %v2075 = vpop.permute.xlu0 %2074
        %2077 = vset.pattern.permute.xlu0 0
        %2078 = vperm.xlu0 %2077, %v2016
        %v2079 = vpop.permute.xlu0 %2078
        %2081 = vset.pattern.permute.xlu0 0
        %2082 = vperm.xlu0 %2081, %v2020
        %v2083 = vpop.permute.xlu0 %2082
        %2085 = vset.pattern.permute.xlu0 0
        %2086 = vperm.xlu0 %2085, %v2024
        %v2087 = vpop.permute.xlu0 %2086
        %2089 = vset.pattern.permute.xlu0 0
        %2090 = vperm.xlu0 %2089, %v2028
        %v2091 = vpop.permute.xlu0 %2090
        %2093 = vset.pattern.permute.xlu0 0
        %2094 = vperm.xlu0 %2093, %v2032
        %v2095 = vpop.permute.xlu0 %2094
        %2097 = vset.pattern.permute.xlu0 0
        %2098 = vperm.xlu0 %2097, %v2036
        %v2099 = vpop.permute.xlu0 %2098
        %2101 = vset.pattern.permute.xlu0 0
        %2102 = vperm.xlu0 %2101, %v2040
        %v2103 = vpop.permute.xlu0 %2102
        %2105 = vset.pattern.permute.xlu0 0
        %2106 = vperm.xlu0 %2105, %v2044
        %v2107 = vpop.permute.xlu0 %2106
        %2109 = vset.pattern.permute.xlu0 0
        %2110 = vperm.xlu0 %2109, %v2048
        %v2111 = vpop.permute.xlu0 %2110
        %2113 = vset.pattern.permute.xlu0 0
        %2114 = vperm.xlu0 %2113, %v2052
        %v2115 = vpop.permute.xlu0 %2114
        %2117 = vset.pattern.permute.xlu0 0
        %2118 = vperm.xlu0 %2117, %v2056
        %v2119 = vpop.permute.xlu0 %2118
        %2121 = vset.pattern.permute.xlu0 0
        %2122 = vperm.xlu0 %2121, %v2060
        %v2123 = vpop.permute.xlu0 %2122
        %v2125 = vmul.f32 %v2063, %v451
        %v2126 = vmul.f32 %v2063, %v452
        %v2127 = vmul.f32 %v2067, %v451
        %v2128 = vmul.f32 %v2067, %v452
        %v2129 = vmul.f32 %v2071, %v451
        %v2130 = vmul.f32 %v2071, %v452
        %v2131 = vmul.f32 %v2075, %v451
        %v2132 = vmul.f32 %v2075, %v452
        %v2133 = vmul.f32 %v2079, %v451
        %v2134 = vmul.f32 %v2079, %v452
        %v2135 = vmul.f32 %v2083, %v451
        %v2136 = vmul.f32 %v2083, %v452
        %v2137 = vmul.f32 %v2087, %v451
        %v2138 = vmul.f32 %v2087, %v452
        %v2139 = vmul.f32 %v2091, %v451
        %v2140 = vmul.f32 %v2091, %v452
        %v2141 = vmul.f32 %v2095, %v451
        %v2142 = vmul.f32 %v2095, %v452
        %v2143 = vmul.f32 %v2099, %v451
        %v2144 = vmul.f32 %v2099, %v452
        %v2145 = vmul.f32 %v2103, %v451
        %v2146 = vmul.f32 %v2103, %v452
        %v2147 = vmul.f32 %v2107, %v451
        %v2148 = vmul.f32 %v2107, %v452
        %v2149 = vmul.f32 %v2111, %v451
        %v2150 = vmul.f32 %v2111, %v452
        %v2151 = vmul.f32 %v2115, %v451
        %v2152 = vmul.f32 %v2115, %v452
        %v2153 = vmul.f32 %v2119, %v451
        %v2154 = vmul.f32 %v2119, %v452
        %v2155 = vmul.f32 %v2123, %v451
        %v2156 = vmul.f32 %v2123, %v452
        %v2157 = vadd.f32 %v1932, %v2125
        %v2158 = vadd.f32 %v1933, %v2126
        %v2159 = vadd.f32 %v1934, %v2127
        %v2160 = vadd.f32 %v1935, %v2128
        %v2161 = vadd.f32 %v1936, %v2129
        %v2162 = vadd.f32 %v1937, %v2130
        %v2163 = vadd.f32 %v1938, %v2131
        %v2164 = vadd.f32 %v1939, %v2132
        %v2165 = vadd.f32 %v1940, %v2133
        %v2166 = vadd.f32 %v1941, %v2134
        %v2167 = vadd.f32 %v1942, %v2135
        %v2168 = vadd.f32 %v1943, %v2136
        %v2169 = vadd.f32 %v1944, %v2137
        %v2170 = vadd.f32 %v1945, %v2138
        %v2171 = vadd.f32 %v1946, %v2139
        %v2172 = vadd.f32 %v1947, %v2140
        %v2173 = vadd.f32 %v1948, %v2141
        %v2174 = vadd.f32 %v1949, %v2142
        %v2175 = vadd.f32 %v1950, %v2143
        %v2176 = vadd.f32 %v1951, %v2144
        %v2177 = vadd.f32 %v1952, %v2145
        %v2178 = vadd.f32 %v1953, %v2146
        %v2179 = vadd.f32 %v1954, %v2147
        %v2180 = vadd.f32 %v1955, %v2148
        %v2181 = vadd.f32 %v1956, %v2149
        %v2182 = vadd.f32 %v1957, %v2150
        %v2183 = vadd.f32 %v1958, %v2151
        %v2184 = vadd.f32 %v1959, %v2152
        %v2185 = vadd.f32 %v1960, %v2153
        %v2186 = vadd.f32 %v1961, %v2154
        %v2187 = vadd.f32 %v1962, %v2155
        %v2188 = vadd.f32 %v1963, %v2156
        %s2189 = scalar_lea.vmem %s1, 112
        %v2190 = vld [vmem:[%s2189] sm:$0x1]
        %v2191 = vld [vmem:[%s2189 + $0x1] sm:$0x1]
        %v2192 = vld [vmem:[%s2189 + $0x2] sm:$0x1]
        %v2193 = vld [vmem:[%s2189 + $0x3] sm:$0x1]
        %v2194 = vld [vmem:[%s2189 + $0x4] sm:$0x1]
        %v2195 = vld [vmem:[%s2189 + $0x5] sm:$0x1]
        %v2196 = vld [vmem:[%s2189 + $0x6] sm:$0x1]
        %v2197 = vld [vmem:[%s2189 + $0x7] sm:$0x1]
        %v2198 = vld [vmem:[%s2189 + $0x8] sm:$0x1]
        %v2199 = vld [vmem:[%s2189 + $0x9] sm:$0x1]
        %v2200 = vld [vmem:[%s2189 + $0xa] sm:$0x1]
        %v2201 = vld [vmem:[%s2189 + $0xb] sm:$0x1]
        %v2202 = vld [vmem:[%s2189 + $0xc] sm:$0x1]
        %v2203 = vld [vmem:[%s2189 + $0xd] sm:$0x1]
        %v2204 = vld [vmem:[%s2189 + $0xe] sm:$0x1]
        %v2205 = vld [vmem:[%s2189 + $0xf] sm:$0x1]
        %v2222 = vlaneseq
        %v2223 = vshrl.u32 %v2222, 7
        %v2224 = vsub.s32 0, %v2223
        %v2225 = vrot.slane %v2190, %v2224
        %v2226 = vlaneseq
        %v2227 = vshrl.u32 %v2226, 7
        %v2228 = vsub.s32 0, %v2227
        %v2229 = vrot.slane %v2191, %v2228
        %v2230 = vlaneseq
        %v2231 = vshrl.u32 %v2230, 7
        %v2232 = vsub.s32 0, %v2231
        %v2233 = vrot.slane %v2192, %v2232
        %v2234 = vlaneseq
        %v2235 = vshrl.u32 %v2234, 7
        %v2236 = vsub.s32 0, %v2235
        %v2237 = vrot.slane %v2193, %v2236
        %v2238 = vlaneseq
        %v2239 = vshrl.u32 %v2238, 7
        %v2240 = vsub.s32 0, %v2239
        %v2241 = vrot.slane %v2194, %v2240
        %v2242 = vlaneseq
        %v2243 = vshrl.u32 %v2242, 7
        %v2244 = vsub.s32 0, %v2243
        %v2245 = vrot.slane %v2195, %v2244
        %v2246 = vlaneseq
        %v2247 = vshrl.u32 %v2246, 7
        %v2248 = vsub.s32 0, %v2247
        %v2249 = vrot.slane %v2196, %v2248
        %v2250 = vlaneseq
        %v2251 = vshrl.u32 %v2250, 7
        %v2252 = vsub.s32 0, %v2251
        %v2253 = vrot.slane %v2197, %v2252
        %v2254 = vlaneseq
        %v2255 = vshrl.u32 %v2254, 7
        %v2256 = vsub.s32 0, %v2255
        %v2257 = vrot.slane %v2198, %v2256
        %v2258 = vlaneseq
        %v2259 = vshrl.u32 %v2258, 7
        %v2260 = vsub.s32 0, %v2259
        %v2261 = vrot.slane %v2199, %v2260
        %v2262 = vlaneseq
        %v2263 = vshrl.u32 %v2262, 7
        %v2264 = vsub.s32 0, %v2263
        %v2265 = vrot.slane %v2200, %v2264
        %v2266 = vlaneseq
        %v2267 = vshrl.u32 %v2266, 7
        %v2268 = vsub.s32 0, %v2267
        %v2269 = vrot.slane %v2201, %v2268
        %v2270 = vlaneseq
        %v2271 = vshrl.u32 %v2270, 7
        %v2272 = vsub.s32 0, %v2271
        %v2273 = vrot.slane %v2202, %v2272
        %v2274 = vlaneseq
        %v2275 = vshrl.u32 %v2274, 7
        %v2276 = vsub.s32 0, %v2275
        %v2277 = vrot.slane %v2203, %v2276
        %v2278 = vlaneseq
        %v2279 = vshrl.u32 %v2278, 7
        %v2280 = vsub.s32 0, %v2279
        %v2281 = vrot.slane %v2204, %v2280
        %v2282 = vlaneseq
        %v2283 = vshrl.u32 %v2282, 7
        %v2284 = vsub.s32 0, %v2283
        %v2285 = vrot.slane %v2205, %v2284
        %2286 = vset.pattern.permute.xlu0 0
        %2287 = vperm.xlu0 %2286, %v2225
        %v2288 = vpop.permute.xlu0 %2287
        %2290 = vset.pattern.permute.xlu0 0
        %2291 = vperm.xlu0 %2290, %v2229
        %v2292 = vpop.permute.xlu0 %2291
        %2294 = vset.pattern.permute.xlu0 0
        %2295 = vperm.xlu0 %2294, %v2233
        %v2296 = vpop.permute.xlu0 %2295
        %2298 = vset.pattern.permute.xlu0 0
        %2299 = vperm.xlu0 %2298, %v2237
        %v2300 = vpop.permute.xlu0 %2299
        %2302 = vset.pattern.permute.xlu0 0
        %2303 = vperm.xlu0 %2302, %v2241
        %v2304 = vpop.permute.xlu0 %2303
        %2306 = vset.pattern.permute.xlu0 0
        %2307 = vperm.xlu0 %2306, %v2245
        %v2308 = vpop.permute.xlu0 %2307
        %2310 = vset.pattern.permute.xlu0 0
        %2311 = vperm.xlu0 %2310, %v2249
        %v2312 = vpop.permute.xlu0 %2311
        %2314 = vset.pattern.permute.xlu0 0
        %2315 = vperm.xlu0 %2314, %v2253
        %v2316 = vpop.permute.xlu0 %2315
        %2318 = vset.pattern.permute.xlu0 0
        %2319 = vperm.xlu0 %2318, %v2257
        %v2320 = vpop.permute.xlu0 %2319
        %2322 = vset.pattern.permute.xlu0 0
        %2323 = vperm.xlu0 %2322, %v2261
        %v2324 = vpop.permute.xlu0 %2323
        %2326 = vset.pattern.permute.xlu0 0
        %2327 = vperm.xlu0 %2326, %v2265
        %v2328 = vpop.permute.xlu0 %2327
        %2330 = vset.pattern.permute.xlu0 0
        %2331 = vperm.xlu0 %2330, %v2269
        %v2332 = vpop.permute.xlu0 %2331
        %2334 = vset.pattern.permute.xlu0 0
        %2335 = vperm.xlu0 %2334, %v2273
        %v2336 = vpop.permute.xlu0 %2335
        %2338 = vset.pattern.permute.xlu0 0
        %2339 = vperm.xlu0 %2338, %v2277
        %v2340 = vpop.permute.xlu0 %2339
        %2342 = vset.pattern.permute.xlu0 0
        %2343 = vperm.xlu0 %2342, %v2281
        %v2344 = vpop.permute.xlu0 %2343
        %2346 = vset.pattern.permute.xlu0 0
        %2347 = vperm.xlu0 %2346, %v2285
        %v2348 = vpop.permute.xlu0 %2347
        %v2350 = vmul.f32 %v2288, %v453
        %v2351 = vmul.f32 %v2288, %v454
        %v2352 = vmul.f32 %v2292, %v453
        %v2353 = vmul.f32 %v2292, %v454
        %v2354 = vmul.f32 %v2296, %v453
        %v2355 = vmul.f32 %v2296, %v454
        %v2356 = vmul.f32 %v2300, %v453
        %v2357 = vmul.f32 %v2300, %v454
        %v2358 = vmul.f32 %v2304, %v453
        %v2359 = vmul.f32 %v2304, %v454
        %v2360 = vmul.f32 %v2308, %v453
        %v2361 = vmul.f32 %v2308, %v454
        %v2362 = vmul.f32 %v2312, %v453
        %v2363 = vmul.f32 %v2312, %v454
        %v2364 = vmul.f32 %v2316, %v453
        %v2365 = vmul.f32 %v2316, %v454
        %v2366 = vmul.f32 %v2320, %v453
        %v2367 = vmul.f32 %v2320, %v454
        %v2368 = vmul.f32 %v2324, %v453
        %v2369 = vmul.f32 %v2324, %v454
        %v2370 = vmul.f32 %v2328, %v453
        %v2371 = vmul.f32 %v2328, %v454
        %v2372 = vmul.f32 %v2332, %v453
        %v2373 = vmul.f32 %v2332, %v454
        %v2374 = vmul.f32 %v2336, %v453
        %v2375 = vmul.f32 %v2336, %v454
        %v2376 = vmul.f32 %v2340, %v453
        %v2377 = vmul.f32 %v2340, %v454
        %v2378 = vmul.f32 %v2344, %v453
        %v2379 = vmul.f32 %v2344, %v454
        %v2380 = vmul.f32 %v2348, %v453
        %v2381 = vmul.f32 %v2348, %v454
        %v2382 = vadd.f32 %v2157, %v2350
        %v2383 = vadd.f32 %v2158, %v2351
        %v2384 = vadd.f32 %v2159, %v2352
        %v2385 = vadd.f32 %v2160, %v2353
        %v2386 = vadd.f32 %v2161, %v2354
        %v2387 = vadd.f32 %v2162, %v2355
        %v2388 = vadd.f32 %v2163, %v2356
        %v2389 = vadd.f32 %v2164, %v2357
        %v2390 = vadd.f32 %v2165, %v2358
        %v2391 = vadd.f32 %v2166, %v2359
        %v2392 = vadd.f32 %v2167, %v2360
        %v2393 = vadd.f32 %v2168, %v2361
        %v2394 = vadd.f32 %v2169, %v2362
        %v2395 = vadd.f32 %v2170, %v2363
        %v2396 = vadd.f32 %v2171, %v2364
        %v2397 = vadd.f32 %v2172, %v2365
        %v2398 = vadd.f32 %v2173, %v2366
        %v2399 = vadd.f32 %v2174, %v2367
        %v2400 = vadd.f32 %v2175, %v2368
        %v2401 = vadd.f32 %v2176, %v2369
        %v2402 = vadd.f32 %v2177, %v2370
        %v2403 = vadd.f32 %v2178, %v2371
        %v2404 = vadd.f32 %v2179, %v2372
        %v2405 = vadd.f32 %v2180, %v2373
        %v2406 = vadd.f32 %v2181, %v2374
        %v2407 = vadd.f32 %v2182, %v2375
        %v2408 = vadd.f32 %v2183, %v2376
        %v2409 = vadd.f32 %v2184, %v2377
        %v2410 = vadd.f32 %v2185, %v2378
        %v2411 = vadd.f32 %v2186, %v2379
        %v2412 = vadd.f32 %v2187, %v2380
        %v2413 = vadd.f32 %v2188, %v2381
        %v2414 = vmax.f32 %v2382, 0.0
        %v2415 = vmax.f32 %v2383, 0.0
        %v2416 = vmax.f32 %v2384, 0.0
        %v2417 = vmax.f32 %v2385, 0.0
        %v2418 = vmax.f32 %v2386, 0.0
        %v2419 = vmax.f32 %v2387, 0.0
        %v2420 = vmax.f32 %v2388, 0.0
        %v2421 = vmax.f32 %v2389, 0.0
        %v2422 = vmax.f32 %v2390, 0.0
        %v2423 = vmax.f32 %v2391, 0.0
        %v2424 = vmax.f32 %v2392, 0.0
        %v2425 = vmax.f32 %v2393, 0.0
        %v2426 = vmax.f32 %v2394, 0.0
        %v2427 = vmax.f32 %v2395, 0.0
        %v2428 = vmax.f32 %v2396, 0.0
        %v2429 = vmax.f32 %v2397, 0.0
        %v2430 = vmax.f32 %v2398, 0.0
        %v2431 = vmax.f32 %v2399, 0.0
        %v2432 = vmax.f32 %v2400, 0.0
        %v2433 = vmax.f32 %v2401, 0.0
        %v2434 = vmax.f32 %v2402, 0.0
        %v2435 = vmax.f32 %v2403, 0.0
        %v2436 = vmax.f32 %v2404, 0.0
        %v2437 = vmax.f32 %v2405, 0.0
        %v2438 = vmax.f32 %v2406, 0.0
        %v2439 = vmax.f32 %v2407, 0.0
        %v2440 = vmax.f32 %v2408, 0.0
        %v2441 = vmax.f32 %v2409, 0.0
        %v2442 = vmax.f32 %v2410, 0.0
        %v2443 = vmax.f32 %v2411, 0.0
        %v2444 = vmax.f32 %v2412, 0.0
        %v2445 = vmax.f32 %v2413, 0.0
        %vm2462 = vcmask 1040384
        %v2463 = vrot.slane %v2414, 7
        %v2464 = vrot.slane %v2415, 7
        %v2465 = vsel %vm2462, %v2463, %v2464
        %v2466 = vrot.slane %v2416, 7
        %v2467 = vrot.slane %v2417, 7
        %v2468 = vsel %vm2462, %v2466, %v2467
        %v2469 = vrot.slane %v2418, 7
        %v2470 = vrot.slane %v2419, 7
        %v2471 = vsel %vm2462, %v2469, %v2470
        %v2472 = vrot.slane %v2420, 7
        %v2473 = vrot.slane %v2421, 7
        %v2474 = vsel %vm2462, %v2472, %v2473
        %v2475 = vrot.slane %v2422, 7
        %v2476 = vrot.slane %v2423, 7
        %v2477 = vsel %vm2462, %v2475, %v2476
        %v2478 = vrot.slane %v2424, 7
        %v2479 = vrot.slane %v2425, 7
        %v2480 = vsel %vm2462, %v2478, %v2479
        %v2481 = vrot.slane %v2426, 7
        %v2482 = vrot.slane %v2427, 7
        %v2483 = vsel %vm2462, %v2481, %v2482
        %v2484 = vrot.slane %v2428, 7
        %v2485 = vrot.slane %v2429, 7
        %v2486 = vsel %vm2462, %v2484, %v2485
        %v2503 = vsel %vm2462, 0.0, %v2463
        %v2504 = vsel %vm2462, 0.0, %v2466
        %v2505 = vsel %vm2462, 0.0, %v2469
        %v2506 = vsel %vm2462, 0.0, %v2472
        %v2507 = vsel %vm2462, 0.0, %v2475
        %v2508 = vsel %vm2462, 0.0, %v2478
        %v2509 = vsel %vm2462, 0.0, %v2481
        %v2510 = vsel %vm2462, 0.0, %v2484
        %vm2511 = vcmask 1046528
        %v2512 = vrot.slane %v2414, 1
        %v2513 = vrot.slane %v2415, 1
        %v2514 = vsel %vm2511, %v2512, %v2513
        %v2515 = vrot.slane %v2416, 1
        %v2516 = vrot.slane %v2417, 1
        %v2517 = vsel %vm2511, %v2515, %v2516
        %v2518 = vrot.slane %v2418, 1
        %v2519 = vrot.slane %v2419, 1
        %v2520 = vsel %vm2511, %v2518, %v2519
        %v2521 = vrot.slane %v2420, 1
        %v2522 = vrot.slane %v2421, 1
        %v2523 = vsel %vm2511, %v2521, %v2522
        %v2524 = vrot.slane %v2422, 1
        %v2525 = vrot.slane %v2423, 1
        %v2526 = vsel %vm2511, %v2524, %v2525
        %v2527 = vrot.slane %v2424, 1
        %v2528 = vrot.slane %v2425, 1
        %v2529 = vsel %vm2511, %v2527, %v2528
        %v2530 = vrot.slane %v2426, 1
        %v2531 = vrot.slane %v2427, 1
        %v2532 = vsel %vm2511, %v2530, %v2531
        %v2533 = vrot.slane %v2428, 1
        %v2534 = vrot.slane %v2429, 1
        %v2535 = vsel %vm2511, %v2533, %v2534
        %v2552 = vsel %vm2511, %v2513, 0.0
        %v2553 = vsel %vm2511, %v2516, 0.0
        %v2554 = vsel %vm2511, %v2519, 0.0
        %v2555 = vsel %vm2511, %v2522, 0.0
        %v2556 = vsel %vm2511, %v2525, 0.0
        %v2557 = vsel %vm2511, %v2528, 0.0
        %v2558 = vsel %vm2511, %v2531, 0.0
        %v2559 = vsel %vm2511, %v2534, 0.0
        %v2560 = vld [vmem:[%s3] sm:$0x1]
        %v2561 = vld [vmem:[%s3 + $0x1] sm:$0x1]
        %v2562 = vld [vmem:[%s3 + $0x2] sm:$0x1]
        %v2563 = vld [vmem:[%s3 + $0x3] sm:$0x1]
        %v2564 = vld [vmem:[%s3 + $0x4] sm:$0x1]
        %v2565 = vld [vmem:[%s3 + $0x5] sm:$0x1]
        %v2566 = vld [vmem:[%s3 + $0x6] sm:$0x1]
        %v2567 = vld [vmem:[%s3 + $0x7] sm:$0x1]
        %v2576 = vlaneseq
        %v2577 = vshrl.u32 %v2576, 7
        %v2578 = vsub.s32 0, %v2577
        %v2579 = vrot.slane %v2560, %v2578
        %v2580 = vlaneseq
        %v2581 = vshrl.u32 %v2580, 7
        %v2582 = vsub.s32 0, %v2581
        %v2583 = vrot.slane %v2561, %v2582
        %v2584 = vlaneseq
        %v2585 = vshrl.u32 %v2584, 7
        %v2586 = vsub.s32 0, %v2585
        %v2587 = vrot.slane %v2562, %v2586
        %v2588 = vlaneseq
        %v2589 = vshrl.u32 %v2588, 7
        %v2590 = vsub.s32 0, %v2589
        %v2591 = vrot.slane %v2563, %v2590
        %v2592 = vlaneseq
        %v2593 = vshrl.u32 %v2592, 7
        %v2594 = vsub.s32 0, %v2593
        %v2595 = vrot.slane %v2564, %v2594
        %v2596 = vlaneseq
        %v2597 = vshrl.u32 %v2596, 7
        %v2598 = vsub.s32 0, %v2597
        %v2599 = vrot.slane %v2565, %v2598
        %v2600 = vlaneseq
        %v2601 = vshrl.u32 %v2600, 7
        %v2602 = vsub.s32 0, %v2601
        %v2603 = vrot.slane %v2566, %v2602
        %v2604 = vlaneseq
        %v2605 = vshrl.u32 %v2604, 7
        %v2606 = vsub.s32 0, %v2605
        %v2607 = vrot.slane %v2567, %v2606
        %2608 = vset.pattern.permute.xlu0 0
        %2609 = vperm.xlu0 %2608, %v2579
        %v2610 = vpop.permute.xlu0 %2609
        %2612 = vset.pattern.permute.xlu0 0
        %2613 = vperm.xlu0 %2612, %v2583
        %v2614 = vpop.permute.xlu0 %2613
        %2616 = vset.pattern.permute.xlu0 0
        %2617 = vperm.xlu0 %2616, %v2587
        %v2618 = vpop.permute.xlu0 %2617
        %2620 = vset.pattern.permute.xlu0 0
        %2621 = vperm.xlu0 %2620, %v2591
        %v2622 = vpop.permute.xlu0 %2621
        %2624 = vset.pattern.permute.xlu0 0
        %2625 = vperm.xlu0 %2624, %v2595
        %v2626 = vpop.permute.xlu0 %2625
        %2628 = vset.pattern.permute.xlu0 0
        %2629 = vperm.xlu0 %2628, %v2599
        %v2630 = vpop.permute.xlu0 %2629
        %2632 = vset.pattern.permute.xlu0 0
        %2633 = vperm.xlu0 %2632, %v2603
        %v2634 = vpop.permute.xlu0 %2633
        %2636 = vset.pattern.permute.xlu0 0
        %2637 = vperm.xlu0 %2636, %v2607
        %v2638 = vpop.permute.xlu0 %2637
        %v2640 = vmul.f32 %v2610, %v2503
        %v2641 = vmul.f32 %v2610, %v2465
        %v2642 = vmul.f32 %v2614, %v2504
        %v2643 = vmul.f32 %v2614, %v2468
        %v2644 = vmul.f32 %v2618, %v2505
        %v2645 = vmul.f32 %v2618, %v2471
        %v2646 = vmul.f32 %v2622, %v2506
        %v2647 = vmul.f32 %v2622, %v2474
        %v2648 = vmul.f32 %v2626, %v2507
        %v2649 = vmul.f32 %v2626, %v2477
        %v2650 = vmul.f32 %v2630, %v2508
        %v2651 = vmul.f32 %v2630, %v2480
        %v2652 = vmul.f32 %v2634, %v2509
        %v2653 = vmul.f32 %v2634, %v2483
        %v2654 = vmul.f32 %v2638, %v2510
        %v2655 = vmul.f32 %v2638, %v2486
        %s2656 = scalar_lea.vmem %s3, 8
        %v2657 = vld [vmem:[%s2656] sm:$0x1]
        %v2658 = vld [vmem:[%s2656 + $0x1] sm:$0x1]
        %v2659 = vld [vmem:[%s2656 + $0x2] sm:$0x1]
        %v2660 = vld [vmem:[%s2656 + $0x3] sm:$0x1]
        %v2661 = vld [vmem:[%s2656 + $0x4] sm:$0x1]
        %v2662 = vld [vmem:[%s2656 + $0x5] sm:$0x1]
        %v2663 = vld [vmem:[%s2656 + $0x6] sm:$0x1]
        %v2664 = vld [vmem:[%s2656 + $0x7] sm:$0x1]
        %v2673 = vlaneseq
        %v2674 = vshrl.u32 %v2673, 7
        %v2675 = vsub.s32 0, %v2674
        %v2676 = vrot.slane %v2657, %v2675
        %v2677 = vlaneseq
        %v2678 = vshrl.u32 %v2677, 7
        %v2679 = vsub.s32 0, %v2678
        %v2680 = vrot.slane %v2658, %v2679
        %v2681 = vlaneseq
        %v2682 = vshrl.u32 %v2681, 7
        %v2683 = vsub.s32 0, %v2682
        %v2684 = vrot.slane %v2659, %v2683
        %v2685 = vlaneseq
        %v2686 = vshrl.u32 %v2685, 7
        %v2687 = vsub.s32 0, %v2686
        %v2688 = vrot.slane %v2660, %v2687
        %v2689 = vlaneseq
        %v2690 = vshrl.u32 %v2689, 7
        %v2691 = vsub.s32 0, %v2690
        %v2692 = vrot.slane %v2661, %v2691
        %v2693 = vlaneseq
        %v2694 = vshrl.u32 %v2693, 7
        %v2695 = vsub.s32 0, %v2694
        %v2696 = vrot.slane %v2662, %v2695
        %v2697 = vlaneseq
        %v2698 = vshrl.u32 %v2697, 7
        %v2699 = vsub.s32 0, %v2698
        %v2700 = vrot.slane %v2663, %v2699
        %v2701 = vlaneseq
        %v2702 = vshrl.u32 %v2701, 7
        %v2703 = vsub.s32 0, %v2702
        %v2704 = vrot.slane %v2664, %v2703
        %2705 = vset.pattern.permute.xlu0 0
        %2706 = vperm.xlu0 %2705, %v2676
        %v2707 = vpop.permute.xlu0 %2706
        %2709 = vset.pattern.permute.xlu0 0
        %2710 = vperm.xlu0 %2709, %v2680
        %v2711 = vpop.permute.xlu0 %2710
        %2713 = vset.pattern.permute.xlu0 0
        %2714 = vperm.xlu0 %2713, %v2684
        %v2715 = vpop.permute.xlu0 %2714
        %2717 = vset.pattern.permute.xlu0 0
        %2718 = vperm.xlu0 %2717, %v2688
        %v2719 = vpop.permute.xlu0 %2718
        %2721 = vset.pattern.permute.xlu0 0
        %2722 = vperm.xlu0 %2721, %v2692
        %v2723 = vpop.permute.xlu0 %2722
        %2725 = vset.pattern.permute.xlu0 0
        %2726 = vperm.xlu0 %2725, %v2696
        %v2727 = vpop.permute.xlu0 %2726
        %2729 = vset.pattern.permute.xlu0 0
        %2730 = vperm.xlu0 %2729, %v2700
        %v2731 = vpop.permute.xlu0 %2730
        %2733 = vset.pattern.permute.xlu0 0
        %2734 = vperm.xlu0 %2733, %v2704
        %v2735 = vpop.permute.xlu0 %2734
        %v2737 = vmul.f32 %v2707, %v2414
        %v2738 = vmul.f32 %v2707, %v2415
        %v2739 = vmul.f32 %v2711, %v2416
        %v2740 = vmul.f32 %v2711, %v2417
        %v2741 = vmul.f32 %v2715, %v2418
        %v2742 = vmul.f32 %v2715, %v2419
        %v2743 = vmul.f32 %v2719, %v2420
        %v2744 = vmul.f32 %v2719, %v2421
        %v2745 = vmul.f32 %v2723, %v2422
        %v2746 = vmul.f32 %v2723, %v2423
        %v2747 = vmul.f32 %v2727, %v2424
        %v2748 = vmul.f32 %v2727, %v2425
        %v2749 = vmul.f32 %v2731, %v2426
        %v2750 = vmul.f32 %v2731, %v2427
        %v2751 = vmul.f32 %v2735, %v2428
        %v2752 = vmul.f32 %v2735, %v2429
        %v2753 = vadd.f32 %v2640, %v2737
        %v2754 = vadd.f32 %v2641, %v2738
        %v2755 = vadd.f32 %v2642, %v2739
        %v2756 = vadd.f32 %v2643, %v2740
        %v2757 = vadd.f32 %v2644, %v2741
        %v2758 = vadd.f32 %v2645, %v2742
        %v2759 = vadd.f32 %v2646, %v2743
        %v2760 = vadd.f32 %v2647, %v2744
        %v2761 = vadd.f32 %v2648, %v2745
        %v2762 = vadd.f32 %v2649, %v2746
        %v2763 = vadd.f32 %v2650, %v2747
        %v2764 = vadd.f32 %v2651, %v2748
        %v2765 = vadd.f32 %v2652, %v2749
        %v2766 = vadd.f32 %v2653, %v2750
        %v2767 = vadd.f32 %v2654, %v2751
        %v2768 = vadd.f32 %v2655, %v2752
        %s2769 = scalar_lea.vmem %s3, 16
        %v2770 = vld [vmem:[%s2769] sm:$0x1]
        %v2771 = vld [vmem:[%s2769 + $0x1] sm:$0x1]
        %v2772 = vld [vmem:[%s2769 + $0x2] sm:$0x1]
        %v2773 = vld [vmem:[%s2769 + $0x3] sm:$0x1]
        %v2774 = vld [vmem:[%s2769 + $0x4] sm:$0x1]
        %v2775 = vld [vmem:[%s2769 + $0x5] sm:$0x1]
        %v2776 = vld [vmem:[%s2769 + $0x6] sm:$0x1]
        %v2777 = vld [vmem:[%s2769 + $0x7] sm:$0x1]
        %v2786 = vlaneseq
        %v2787 = vshrl.u32 %v2786, 7
        %v2788 = vsub.s32 0, %v2787
        %v2789 = vrot.slane %v2770, %v2788
        %v2790 = vlaneseq
        %v2791 = vshrl.u32 %v2790, 7
        %v2792 = vsub.s32 0, %v2791
        %v2793 = vrot.slane %v2771, %v2792
        %v2794 = vlaneseq
        %v2795 = vshrl.u32 %v2794, 7
        %v2796 = vsub.s32 0, %v2795
        %v2797 = vrot.slane %v2772, %v2796
        %v2798 = vlaneseq
        %v2799 = vshrl.u32 %v2798, 7
        %v2800 = vsub.s32 0, %v2799
        %v2801 = vrot.slane %v2773, %v2800
        %v2802 = vlaneseq
        %v2803 = vshrl.u32 %v2802, 7
        %v2804 = vsub.s32 0, %v2803
        %v2805 = vrot.slane %v2774, %v2804
        %v2806 = vlaneseq
        %v2807 = vshrl.u32 %v2806, 7
        %v2808 = vsub.s32 0, %v2807
        %v2809 = vrot.slane %v2775, %v2808
        %v2810 = vlaneseq
        %v2811 = vshrl.u32 %v2810, 7
        %v2812 = vsub.s32 0, %v2811
        %v2813 = vrot.slane %v2776, %v2812
        %v2814 = vlaneseq
        %v2815 = vshrl.u32 %v2814, 7
        %v2816 = vsub.s32 0, %v2815
        %v2817 = vrot.slane %v2777, %v2816
        %2818 = vset.pattern.permute.xlu0 0
        %2819 = vperm.xlu0 %2818, %v2789
        %v2820 = vpop.permute.xlu0 %2819
        %2822 = vset.pattern.permute.xlu0 0
        %2823 = vperm.xlu0 %2822, %v2793
        %v2824 = vpop.permute.xlu0 %2823
        %2826 = vset.pattern.permute.xlu0 0
        %2827 = vperm.xlu0 %2826, %v2797
        %v2828 = vpop.permute.xlu0 %2827
        %2830 = vset.pattern.permute.xlu0 0
        %2831 = vperm.xlu0 %2830, %v2801
        %v2832 = vpop.permute.xlu0 %2831
        %2834 = vset.pattern.permute.xlu0 0
        %2835 = vperm.xlu0 %2834, %v2805
        %v2836 = vpop.permute.xlu0 %2835
        %2838 = vset.pattern.permute.xlu0 0
        %2839 = vperm.xlu0 %2838, %v2809
        %v2840 = vpop.permute.xlu0 %2839
        %2842 = vset.pattern.permute.xlu0 0
        %2843 = vperm.xlu0 %2842, %v2813
        %v2844 = vpop.permute.xlu0 %2843
        %2846 = vset.pattern.permute.xlu0 0
        %2847 = vperm.xlu0 %2846, %v2817
        %v2848 = vpop.permute.xlu0 %2847
        %v2850 = vmul.f32 %v2820, %v2514
        %v2851 = vmul.f32 %v2820, %v2552
        %v2852 = vmul.f32 %v2824, %v2517
        %v2853 = vmul.f32 %v2824, %v2553
        %v2854 = vmul.f32 %v2828, %v2520
        %v2855 = vmul.f32 %v2828, %v2554
        %v2856 = vmul.f32 %v2832, %v2523
        %v2857 = vmul.f32 %v2832, %v2555
        %v2858 = vmul.f32 %v2836, %v2526
        %v2859 = vmul.f32 %v2836, %v2556
        %v2860 = vmul.f32 %v2840, %v2529
        %v2861 = vmul.f32 %v2840, %v2557
        %v2862 = vmul.f32 %v2844, %v2532
        %v2863 = vmul.f32 %v2844, %v2558
        %v2864 = vmul.f32 %v2848, %v2535
        %v2865 = vmul.f32 %v2848, %v2559
        %v2866 = vadd.f32 %v2753, %v2850
        %v2867 = vadd.f32 %v2754, %v2851
        %v2868 = vadd.f32 %v2755, %v2852
        %v2869 = vadd.f32 %v2756, %v2853
        %v2870 = vadd.f32 %v2757, %v2854
        %v2871 = vadd.f32 %v2758, %v2855
        %v2872 = vadd.f32 %v2759, %v2856
        %v2873 = vadd.f32 %v2760, %v2857
        %v2874 = vadd.f32 %v2761, %v2858
        %v2875 = vadd.f32 %v2762, %v2859
        %v2876 = vadd.f32 %v2763, %v2860
        %v2877 = vadd.f32 %v2764, %v2861
        %v2878 = vadd.f32 %v2765, %v2862
        %v2879 = vadd.f32 %v2766, %v2863
        %v2880 = vadd.f32 %v2767, %v2864
        %v2881 = vadd.f32 %v2768, %v2865
        %v2882 = vld [vmem:[%s4] sm:$0x1]
        %v2883 = vld [vmem:[%s4 + $0x1] sm:$0x1]
        %v2884 = vld [vmem:[%s4 + $0x2] sm:$0x1]
        %v2885 = vld [vmem:[%s4 + $0x3] sm:$0x1]
        %v2886 = vld [vmem:[%s4 + $0x4] sm:$0x1]
        %v2887 = vld [vmem:[%s4 + $0x5] sm:$0x1]
        %v2888 = vld [vmem:[%s4 + $0x6] sm:$0x1]
        %v2889 = vld [vmem:[%s4 + $0x7] sm:$0x1]
        %v2898 = vlaneseq
        %v2899 = vshrl.u32 %v2898, 7
        %v2900 = vsub.s32 0, %v2899
        %v2901 = vrot.slane %v2882, %v2900
        %v2902 = vlaneseq
        %v2903 = vshrl.u32 %v2902, 7
        %v2904 = vsub.s32 0, %v2903
        %v2905 = vrot.slane %v2883, %v2904
        %v2906 = vlaneseq
        %v2907 = vshrl.u32 %v2906, 7
        %v2908 = vsub.s32 0, %v2907
        %v2909 = vrot.slane %v2884, %v2908
        %v2910 = vlaneseq
        %v2911 = vshrl.u32 %v2910, 7
        %v2912 = vsub.s32 0, %v2911
        %v2913 = vrot.slane %v2885, %v2912
        %v2914 = vlaneseq
        %v2915 = vshrl.u32 %v2914, 7
        %v2916 = vsub.s32 0, %v2915
        %v2917 = vrot.slane %v2886, %v2916
        %v2918 = vlaneseq
        %v2919 = vshrl.u32 %v2918, 7
        %v2920 = vsub.s32 0, %v2919
        %v2921 = vrot.slane %v2887, %v2920
        %v2922 = vlaneseq
        %v2923 = vshrl.u32 %v2922, 7
        %v2924 = vsub.s32 0, %v2923
        %v2925 = vrot.slane %v2888, %v2924
        %v2926 = vlaneseq
        %v2927 = vshrl.u32 %v2926, 7
        %v2928 = vsub.s32 0, %v2927
        %v2929 = vrot.slane %v2889, %v2928
        %2930 = vset.pattern.permute.xlu0 0
        %2931 = vperm.xlu0 %2930, %v2901
        %v2932 = vpop.permute.xlu0 %2931
        %2934 = vset.pattern.permute.xlu0 0
        %2935 = vperm.xlu0 %2934, %v2905
        %v2936 = vpop.permute.xlu0 %2935
        %2938 = vset.pattern.permute.xlu0 0
        %2939 = vperm.xlu0 %2938, %v2909
        %v2940 = vpop.permute.xlu0 %2939
        %2942 = vset.pattern.permute.xlu0 0
        %2943 = vperm.xlu0 %2942, %v2913
        %v2944 = vpop.permute.xlu0 %2943
        %2946 = vset.pattern.permute.xlu0 0
        %2947 = vperm.xlu0 %2946, %v2917
        %v2948 = vpop.permute.xlu0 %2947
        %2950 = vset.pattern.permute.xlu0 0
        %2951 = vperm.xlu0 %2950, %v2921
        %v2952 = vpop.permute.xlu0 %2951
        %2954 = vset.pattern.permute.xlu0 0
        %2955 = vperm.xlu0 %2954, %v2925
        %v2956 = vpop.permute.xlu0 %2955
        %2958 = vset.pattern.permute.xlu0 0
        %2959 = vperm.xlu0 %2958, %v2929
        %v2960 = vpop.permute.xlu0 %2959
        %v2962 = vadd.f32 %v2866, %v2932
        %v2963 = vadd.f32 %v2867, %v2932
        %v2964 = vadd.f32 %v2868, %v2936
        %v2965 = vadd.f32 %v2869, %v2936
        %v2966 = vadd.f32 %v2870, %v2940
        %v2967 = vadd.f32 %v2871, %v2940
        %v2968 = vadd.f32 %v2872, %v2944
        %v2969 = vadd.f32 %v2873, %v2944
        %v2970 = vadd.f32 %v2874, %v2948
        %v2971 = vadd.f32 %v2875, %v2948
        %v2972 = vadd.f32 %v2876, %v2952
        %v2973 = vadd.f32 %v2877, %v2952
        %v2974 = vadd.f32 %v2878, %v2956
        %v2975 = vadd.f32 %v2879, %v2956
        %v2976 = vadd.f32 %v2880, %v2960
        %v2977 = vadd.f32 %v2881, %v2960
        %v2978 = vmax.f32 %v2962, 0.0
        %v2979 = vmax.f32 %v2963, 0.0
        %v2980 = vmax.f32 %v2964, 0.0
        %v2981 = vmax.f32 %v2965, 0.0
        %v2982 = vmax.f32 %v2966, 0.0
        %v2983 = vmax.f32 %v2967, 0.0
        %v2984 = vmax.f32 %v2968, 0.0
        %v2985 = vmax.f32 %v2969, 0.0
        %v2986 = vmax.f32 %v2970, 0.0
        %v2987 = vmax.f32 %v2971, 0.0
        %v2988 = vmax.f32 %v2972, 0.0
        %v2989 = vmax.f32 %v2973, 0.0
        %v2990 = vmax.f32 %v2974, 0.0
        %v2991 = vmax.f32 %v2975, 0.0
        %v2992 = vmax.f32 %v2976, 0.0
        %v2993 = vmax.f32 %v2977, 0.0
        %vm2994 = vcmask 195584
        %v2995 = vsel %vm2994, %v2978, 0.0
        %v2996 = vsel %vm2994, %v2979, 0.0
        %v2997 = vadd.f32 %v2995, %v2996
        %v2998 = vrot.slane %v2997, 4
        %v2999 = vadd.f32 %v2997, %v2998
        %v3000 = vrot.slane %v2999, 2
        %v3001 = vadd.f32 %v2999, %v3000
        %v3002 = vrot.slane %v3001, 1
        %v3003 = vadd.f32 %v3001, %v3002
        %v3004 = vsel %vm2994, %v2980, 0.0
        %v3005 = vsel %vm2994, %v2981, 0.0
        %v3006 = vadd.f32 %v3004, %v3005
        %v3007 = vrot.slane %v3006, 4
        %v3008 = vadd.f32 %v3006, %v3007
        %v3009 = vrot.slane %v3008, 2
        %v3010 = vadd.f32 %v3008, %v3009
        %v3011 = vrot.slane %v3010, 1
        %v3012 = vadd.f32 %v3010, %v3011
        %v3013 = vsel %vm2994, %v2982, 0.0
        %v3014 = vsel %vm2994, %v2983, 0.0
        %v3015 = vadd.f32 %v3013, %v3014
        %v3016 = vrot.slane %v3015, 4
        %v3017 = vadd.f32 %v3015, %v3016
        %v3018 = vrot.slane %v3017, 2
        %v3019 = vadd.f32 %v3017, %v3018
        %v3020 = vrot.slane %v3019, 1
        %v3021 = vadd.f32 %v3019, %v3020
        %v3022 = vsel %vm2994, %v2984, 0.0
        %v3023 = vsel %vm2994, %v2985, 0.0
        %v3024 = vadd.f32 %v3022, %v3023
        %v3025 = vrot.slane %v3024, 4
        %v3026 = vadd.f32 %v3024, %v3025
        %v3027 = vrot.slane %v3026, 2
        %v3028 = vadd.f32 %v3026, %v3027
        %v3029 = vrot.slane %v3028, 1
        %v3030 = vadd.f32 %v3028, %v3029
        %v3031 = vsel %vm2994, %v2986, 0.0
        %v3032 = vsel %vm2994, %v2987, 0.0
        %v3033 = vadd.f32 %v3031, %v3032
        %v3034 = vrot.slane %v3033, 4
        %v3035 = vadd.f32 %v3033, %v3034
        %v3036 = vrot.slane %v3035, 2
        %v3037 = vadd.f32 %v3035, %v3036
        %v3038 = vrot.slane %v3037, 1
        %v3039 = vadd.f32 %v3037, %v3038
        %v3040 = vsel %vm2994, %v2988, 0.0
        %v3041 = vsel %vm2994, %v2989, 0.0
        %v3042 = vadd.f32 %v3040, %v3041
        %v3043 = vrot.slane %v3042, 4
        %v3044 = vadd.f32 %v3042, %v3043
        %v3045 = vrot.slane %v3044, 2
        %v3046 = vadd.f32 %v3044, %v3045
        %v3047 = vrot.slane %v3046, 1
        %v3048 = vadd.f32 %v3046, %v3047
        %v3049 = vsel %vm2994, %v2990, 0.0
        %v3050 = vsel %vm2994, %v2991, 0.0
        %v3051 = vadd.f32 %v3049, %v3050
        %v3052 = vrot.slane %v3051, 4
        %v3053 = vadd.f32 %v3051, %v3052
        %v3054 = vrot.slane %v3053, 2
        %v3055 = vadd.f32 %v3053, %v3054
        %v3056 = vrot.slane %v3055, 1
        %v3057 = vadd.f32 %v3055, %v3056
        %v3058 = vsel %vm2994, %v2992, 0.0
        %v3059 = vsel %vm2994, %v2993, 0.0
        %v3060 = vadd.f32 %v3058, %v3059
        %v3061 = vrot.slane %v3060, 4
        %v3062 = vadd.f32 %v3060, %v3061
        %v3063 = vrot.slane %v3062, 2
        %v3064 = vadd.f32 %v3062, %v3063
        %v3065 = vrot.slane %v3064, 1
        %v3066 = vadd.f32 %v3064, %v3065
        %v3067 = vld [vmem:[%s8] sm:$0x1]
        %v3068 = vld [vmem:[%s8 + $0x1] sm:$0x1]
        %v3069 = vld [vmem:[%s8 + $0x2] sm:$0x1]
        %v3070 = vld [vmem:[%s8 + $0x3] sm:$0x1]
        %v3071 = vld [vmem:[%s8 + $0x4] sm:$0x1]
        %v3072 = vld [vmem:[%s8 + $0x5] sm:$0x1]
        %v3073 = vld [vmem:[%s8 + $0x6] sm:$0x1]
        %v3074 = vld [vmem:[%s8 + $0x7] sm:$0x1]
        %v3075 = vld [vmem:[%s7] sm:$0x1]
        %v3076 = vld [vmem:[%s7 + $0x1] sm:$0x1]
        %v3077 = vld [vmem:[%s7 + $0x2] sm:$0x1]
        %v3078 = vld [vmem:[%s7 + $0x3] sm:$0x1]
        %v3079 = vld [vmem:[%s7 + $0x4] sm:$0x1]
        %v3080 = vld [vmem:[%s7 + $0x5] sm:$0x1]
        %v3081 = vld [vmem:[%s7 + $0x6] sm:$0x1]
        %v3082 = vld [vmem:[%s7 + $0x7] sm:$0x1]
        %3084 = vset.pattern.permute.xlu0 0
        %3085 = vperm.xlu0 %3084, %v3075
        %v3086 = vpop.permute.xlu0 %3085
        %v3088 = vlaneseq
        %v3089 = vshrl.u32 %v3088, 7
        %v3090 = vsub.s32 0, %v3089
        %v3091 = vrot.slane %v3086, %v3090
        %3093 = vset.pattern.permute.xlu0 0
        %3094 = vperm.xlu0 %3093, %v3076
        %v3095 = vpop.permute.xlu0 %3094
        %v3097 = vlaneseq
        %v3098 = vshrl.u32 %v3097, 7
        %v3099 = vsub.s32 0, %v3098
        %v3100 = vrot.slane %v3095, %v3099
        %3102 = vset.pattern.permute.xlu0 0
        %3103 = vperm.xlu0 %3102, %v3077
        %v3104 = vpop.permute.xlu0 %3103
        %v3106 = vlaneseq
        %v3107 = vshrl.u32 %v3106, 7
        %v3108 = vsub.s32 0, %v3107
        %v3109 = vrot.slane %v3104, %v3108
        %3111 = vset.pattern.permute.xlu0 0
        %3112 = vperm.xlu0 %3111, %v3078
        %v3113 = vpop.permute.xlu0 %3112
        %v3115 = vlaneseq
        %v3116 = vshrl.u32 %v3115, 7
        %v3117 = vsub.s32 0, %v3116
        %v3118 = vrot.slane %v3113, %v3117
        %3120 = vset.pattern.permute.xlu0 0
        %3121 = vperm.xlu0 %3120, %v3079
        %v3122 = vpop.permute.xlu0 %3121
        %v3124 = vlaneseq
        %v3125 = vshrl.u32 %v3124, 7
        %v3126 = vsub.s32 0, %v3125
        %v3127 = vrot.slane %v3122, %v3126
        %3129 = vset.pattern.permute.xlu0 0
        %3130 = vperm.xlu0 %3129, %v3080
        %v3131 = vpop.permute.xlu0 %3130
        %v3133 = vlaneseq
        %v3134 = vshrl.u32 %v3133, 7
        %v3135 = vsub.s32 0, %v3134
        %v3136 = vrot.slane %v3131, %v3135
        %3138 = vset.pattern.permute.xlu0 0
        %3139 = vperm.xlu0 %3138, %v3081
        %v3140 = vpop.permute.xlu0 %3139
        %v3142 = vlaneseq
        %v3143 = vshrl.u32 %v3142, 7
        %v3144 = vsub.s32 0, %v3143
        %v3145 = vrot.slane %v3140, %v3144
        %3147 = vset.pattern.permute.xlu0 0
        %3148 = vperm.xlu0 %3147, %v3082
        %v3149 = vpop.permute.xlu0 %3148
        %v3151 = vlaneseq
        %v3152 = vshrl.u32 %v3151, 7
        %v3153 = vsub.s32 0, %v3152
        %v3154 = vrot.slane %v3149, %v3153
        %v3155 = vmul.f32 %v3091, %v3003
        %v3156 = vmul.f32 %v3100, %v3003
        %v3157 = vmul.f32 %v3109, %v3003
        %v3158 = vmul.f32 %v3118, %v3003
        %v3159 = vmul.f32 %v3127, %v3003
        %v3160 = vmul.f32 %v3136, %v3003
        %v3161 = vmul.f32 %v3145, %v3003
        %v3162 = vmul.f32 %v3154, %v3003
        %3164 = vset.pattern.permute.xlu0 0
        %3165 = vperm.xlu0 %3164, %v3067
        %v3166 = vpop.permute.xlu0 %3165
        %v3168 = vlaneseq
        %v3169 = vshrl.u32 %v3168, 7
        %v3170 = vsub.s32 0, %v3169
        %v3171 = vrot.slane %v3166, %v3170
        %3173 = vset.pattern.permute.xlu0 0
        %3174 = vperm.xlu0 %3173, %v3068
        %v3175 = vpop.permute.xlu0 %3174
        %v3177 = vlaneseq
        %v3178 = vshrl.u32 %v3177, 7
        %v3179 = vsub.s32 0, %v3178
        %v3180 = vrot.slane %v3175, %v3179
        %3182 = vset.pattern.permute.xlu0 0
        %3183 = vperm.xlu0 %3182, %v3069
        %v3184 = vpop.permute.xlu0 %3183
        %v3186 = vlaneseq
        %v3187 = vshrl.u32 %v3186, 7
        %v3188 = vsub.s32 0, %v3187
        %v3189 = vrot.slane %v3184, %v3188
        %3191 = vset.pattern.permute.xlu0 0
        %3192 = vperm.xlu0 %3191, %v3070
        %v3193 = vpop.permute.xlu0 %3192
        %v3195 = vlaneseq
        %v3196 = vshrl.u32 %v3195, 7
        %v3197 = vsub.s32 0, %v3196
        %v3198 = vrot.slane %v3193, %v3197
        %3200 = vset.pattern.permute.xlu0 0
        %3201 = vperm.xlu0 %3200, %v3071
        %v3202 = vpop.permute.xlu0 %3201
        %v3204 = vlaneseq
        %v3205 = vshrl.u32 %v3204, 7
        %v3206 = vsub.s32 0, %v3205
        %v3207 = vrot.slane %v3202, %v3206
        %3209 = vset.pattern.permute.xlu0 0
        %3210 = vperm.xlu0 %3209, %v3072
        %v3211 = vpop.permute.xlu0 %3210
        %v3213 = vlaneseq
        %v3214 = vshrl.u32 %v3213, 7
        %v3215 = vsub.s32 0, %v3214
        %v3216 = vrot.slane %v3211, %v3215
        %3218 = vset.pattern.permute.xlu0 0
        %3219 = vperm.xlu0 %3218, %v3073
        %v3220 = vpop.permute.xlu0 %3219
        %v3222 = vlaneseq
        %v3223 = vshrl.u32 %v3222, 7
        %v3224 = vsub.s32 0, %v3223
        %v3225 = vrot.slane %v3220, %v3224
        %3227 = vset.pattern.permute.xlu0 0
        %3228 = vperm.xlu0 %3227, %v3074
        %v3229 = vpop.permute.xlu0 %3228
        %v3231 = vlaneseq
        %v3232 = vshrl.u32 %v3231, 7
        %v3233 = vsub.s32 0, %v3232
        %v3234 = vrot.slane %v3229, %v3233
        %v3235 = vadd.f32 %v3171, %v3155
        %v3236 = vadd.f32 %v3180, %v3156
        %v3237 = vadd.f32 %v3189, %v3157
        %v3238 = vadd.f32 %v3198, %v3158
        %v3239 = vadd.f32 %v3207, %v3159
        %v3240 = vadd.f32 %v3216, %v3160
        %v3241 = vadd.f32 %v3225, %v3161
        %v3242 = vadd.f32 %v3234, %v3162
        %s3243 = scalar_lea.vmem %s7, 8
        %v3244 = vld [vmem:[%s3243] sm:$0x1]
        %v3245 = vld [vmem:[%s3243 + $0x1] sm:$0x1]
        %v3246 = vld [vmem:[%s3243 + $0x2] sm:$0x1]
        %v3247 = vld [vmem:[%s3243 + $0x3] sm:$0x1]
        %v3248 = vld [vmem:[%s3243 + $0x4] sm:$0x1]
        %v3249 = vld [vmem:[%s3243 + $0x5] sm:$0x1]
        %v3250 = vld [vmem:[%s3243 + $0x6] sm:$0x1]
        %v3251 = vld [vmem:[%s3243 + $0x7] sm:$0x1]
        %3253 = vset.pattern.permute.xlu0 0
        %3254 = vperm.xlu0 %3253, %v3244
        %v3255 = vpop.permute.xlu0 %3254
        %v3257 = vlaneseq
        %v3258 = vshrl.u32 %v3257, 7
        %v3259 = vsub.s32 0, %v3258
        %v3260 = vrot.slane %v3255, %v3259
        %3262 = vset.pattern.permute.xlu0 0
        %3263 = vperm.xlu0 %3262, %v3245
        %v3264 = vpop.permute.xlu0 %3263
        %v3266 = vlaneseq
        %v3267 = vshrl.u32 %v3266, 7
        %v3268 = vsub.s32 0, %v3267
        %v3269 = vrot.slane %v3264, %v3268
        %3271 = vset.pattern.permute.xlu0 0
        %3272 = vperm.xlu0 %3271, %v3246
        %v3273 = vpop.permute.xlu0 %3272
        %v3275 = vlaneseq
        %v3276 = vshrl.u32 %v3275, 7
        %v3277 = vsub.s32 0, %v3276
        %v3278 = vrot.slane %v3273, %v3277
        %3280 = vset.pattern.permute.xlu0 0
        %3281 = vperm.xlu0 %3280, %v3247
        %v3282 = vpop.permute.xlu0 %3281
        %v3284 = vlaneseq
        %v3285 = vshrl.u32 %v3284, 7
        %v3286 = vsub.s32 0, %v3285
        %v3287 = vrot.slane %v3282, %v3286
        %3289 = vset.pattern.permute.xlu0 0
        %3290 = vperm.xlu0 %3289, %v3248
        %v3291 = vpop.permute.xlu0 %3290
        %v3293 = vlaneseq
        %v3294 = vshrl.u32 %v3293, 7
        %v3295 = vsub.s32 0, %v3294
        %v3296 = vrot.slane %v3291, %v3295
        %3298 = vset.pattern.permute.xlu0 0
        %3299 = vperm.xlu0 %3298, %v3249
        %v3300 = vpop.permute.xlu0 %3299
        %v3302 = vlaneseq
        %v3303 = vshrl.u32 %v3302, 7
        %v3304 = vsub.s32 0, %v3303
        %v3305 = vrot.slane %v3300, %v3304
        %3307 = vset.pattern.permute.xlu0 0
        %3308 = vperm.xlu0 %3307, %v3250
        %v3309 = vpop.permute.xlu0 %3308
        %v3311 = vlaneseq
        %v3312 = vshrl.u32 %v3311, 7
        %v3313 = vsub.s32 0, %v3312
        %v3314 = vrot.slane %v3309, %v3313
        %3316 = vset.pattern.permute.xlu0 0
        %3317 = vperm.xlu0 %3316, %v3251
        %v3318 = vpop.permute.xlu0 %3317
        %v3320 = vlaneseq
        %v3321 = vshrl.u32 %v3320, 7
        %v3322 = vsub.s32 0, %v3321
        %v3323 = vrot.slane %v3318, %v3322
        %v3324 = vmul.f32 %v3260, %v3012
        %v3325 = vmul.f32 %v3269, %v3012
        %v3326 = vmul.f32 %v3278, %v3012
        %v3327 = vmul.f32 %v3287, %v3012
        %v3328 = vmul.f32 %v3296, %v3012
        %v3329 = vmul.f32 %v3305, %v3012
        %v3330 = vmul.f32 %v3314, %v3012
        %v3331 = vmul.f32 %v3323, %v3012
        %v3332 = vadd.f32 %v3235, %v3324
        %v3333 = vadd.f32 %v3236, %v3325
        %v3334 = vadd.f32 %v3237, %v3326
        %v3335 = vadd.f32 %v3238, %v3327
        %v3336 = vadd.f32 %v3239, %v3328
        %v3337 = vadd.f32 %v3240, %v3329
        %v3338 = vadd.f32 %v3241, %v3330
        %v3339 = vadd.f32 %v3242, %v3331
        %s3340 = scalar_lea.vmem %s7, 16
        %v3341 = vld [vmem:[%s3340] sm:$0x1]
        %v3342 = vld [vmem:[%s3340 + $0x1] sm:$0x1]
        %v3343 = vld [vmem:[%s3340 + $0x2] sm:$0x1]
        %v3344 = vld [vmem:[%s3340 + $0x3] sm:$0x1]
        %v3345 = vld [vmem:[%s3340 + $0x4] sm:$0x1]
        %v3346 = vld [vmem:[%s3340 + $0x5] sm:$0x1]
        %v3347 = vld [vmem:[%s3340 + $0x6] sm:$0x1]
        %v3348 = vld [vmem:[%s3340 + $0x7] sm:$0x1]
        %3350 = vset.pattern.permute.xlu0 0
        %3351 = vperm.xlu0 %3350, %v3341
        %v3352 = vpop.permute.xlu0 %3351
        %v3354 = vlaneseq
        %v3355 = vshrl.u32 %v3354, 7
        %v3356 = vsub.s32 0, %v3355
        %v3357 = vrot.slane %v3352, %v3356
        %3359 = vset.pattern.permute.xlu0 0
        %3360 = vperm.xlu0 %3359, %v3342
        %v3361 = vpop.permute.xlu0 %3360
        %v3363 = vlaneseq
        %v3364 = vshrl.u32 %v3363, 7
        %v3365 = vsub.s32 0, %v3364
        %v3366 = vrot.slane %v3361, %v3365
        %3368 = vset.pattern.permute.xlu0 0
        %3369 = vperm.xlu0 %3368, %v3343
        %v3370 = vpop.permute.xlu0 %3369
        %v3372 = vlaneseq
        %v3373 = vshrl.u32 %v3372, 7
        %v3374 = vsub.s32 0, %v3373
        %v3375 = vrot.slane %v3370, %v3374
        %3377 = vset.pattern.permute.xlu0 0
        %3378 = vperm.xlu0 %3377, %v3344
        %v3379 = vpop.permute.xlu0 %3378
        %v3381 = vlaneseq
        %v3382 = vshrl.u32 %v3381, 7
        %v3383 = vsub.s32 0, %v3382
        %v3384 = vrot.slane %v3379, %v3383
        %3386 = vset.pattern.permute.xlu0 0
        %3387 = vperm.xlu0 %3386, %v3345
        %v3388 = vpop.permute.xlu0 %3387
        %v3390 = vlaneseq
        %v3391 = vshrl.u32 %v3390, 7
        %v3392 = vsub.s32 0, %v3391
        %v3393 = vrot.slane %v3388, %v3392
        %3395 = vset.pattern.permute.xlu0 0
        %3396 = vperm.xlu0 %3395, %v3346
        %v3397 = vpop.permute.xlu0 %3396
        %v3399 = vlaneseq
        %v3400 = vshrl.u32 %v3399, 7
        %v3401 = vsub.s32 0, %v3400
        %v3402 = vrot.slane %v3397, %v3401
        %3404 = vset.pattern.permute.xlu0 0
        %3405 = vperm.xlu0 %3404, %v3347
        %v3406 = vpop.permute.xlu0 %3405
        %v3408 = vlaneseq
        %v3409 = vshrl.u32 %v3408, 7
        %v3410 = vsub.s32 0, %v3409
        %v3411 = vrot.slane %v3406, %v3410
        %3413 = vset.pattern.permute.xlu0 0
        %3414 = vperm.xlu0 %3413, %v3348
        %v3415 = vpop.permute.xlu0 %3414
        %v3417 = vlaneseq
        %v3418 = vshrl.u32 %v3417, 7
        %v3419 = vsub.s32 0, %v3418
        %v3420 = vrot.slane %v3415, %v3419
        %v3421 = vmul.f32 %v3357, %v3021
        %v3422 = vmul.f32 %v3366, %v3021
        %v3423 = vmul.f32 %v3375, %v3021
        %v3424 = vmul.f32 %v3384, %v3021
        %v3425 = vmul.f32 %v3393, %v3021
        %v3426 = vmul.f32 %v3402, %v3021
        %v3427 = vmul.f32 %v3411, %v3021
        %v3428 = vmul.f32 %v3420, %v3021
        %v3429 = vadd.f32 %v3332, %v3421
        %v3430 = vadd.f32 %v3333, %v3422
        %v3431 = vadd.f32 %v3334, %v3423
        %v3432 = vadd.f32 %v3335, %v3424
        %v3433 = vadd.f32 %v3336, %v3425
        %v3434 = vadd.f32 %v3337, %v3426
        %v3435 = vadd.f32 %v3338, %v3427
        %v3436 = vadd.f32 %v3339, %v3428
        %s3437 = scalar_lea.vmem %s7, 24
        %v3438 = vld [vmem:[%s3437] sm:$0x1]
        %v3439 = vld [vmem:[%s3437 + $0x1] sm:$0x1]
        %v3440 = vld [vmem:[%s3437 + $0x2] sm:$0x1]
        %v3441 = vld [vmem:[%s3437 + $0x3] sm:$0x1]
        %v3442 = vld [vmem:[%s3437 + $0x4] sm:$0x1]
        %v3443 = vld [vmem:[%s3437 + $0x5] sm:$0x1]
        %v3444 = vld [vmem:[%s3437 + $0x6] sm:$0x1]
        %v3445 = vld [vmem:[%s3437 + $0x7] sm:$0x1]
        %3447 = vset.pattern.permute.xlu0 0
        %3448 = vperm.xlu0 %3447, %v3438
        %v3449 = vpop.permute.xlu0 %3448
        %v3451 = vlaneseq
        %v3452 = vshrl.u32 %v3451, 7
        %v3453 = vsub.s32 0, %v3452
        %v3454 = vrot.slane %v3449, %v3453
        %3456 = vset.pattern.permute.xlu0 0
        %3457 = vperm.xlu0 %3456, %v3439
        %v3458 = vpop.permute.xlu0 %3457
        %v3460 = vlaneseq
        %v3461 = vshrl.u32 %v3460, 7
        %v3462 = vsub.s32 0, %v3461
        %v3463 = vrot.slane %v3458, %v3462
        %3465 = vset.pattern.permute.xlu0 0
        %3466 = vperm.xlu0 %3465, %v3440
        %v3467 = vpop.permute.xlu0 %3466
        %v3469 = vlaneseq
        %v3470 = vshrl.u32 %v3469, 7
        %v3471 = vsub.s32 0, %v3470
        %v3472 = vrot.slane %v3467, %v3471
        %3474 = vset.pattern.permute.xlu0 0
        %3475 = vperm.xlu0 %3474, %v3441
        %v3476 = vpop.permute.xlu0 %3475
        %v3478 = vlaneseq
        %v3479 = vshrl.u32 %v3478, 7
        %v3480 = vsub.s32 0, %v3479
        %v3481 = vrot.slane %v3476, %v3480
        %3483 = vset.pattern.permute.xlu0 0
        %3484 = vperm.xlu0 %3483, %v3442
        %v3485 = vpop.permute.xlu0 %3484
        %v3487 = vlaneseq
        %v3488 = vshrl.u32 %v3487, 7
        %v3489 = vsub.s32 0, %v3488
        %v3490 = vrot.slane %v3485, %v3489
        %3492 = vset.pattern.permute.xlu0 0
        %3493 = vperm.xlu0 %3492, %v3443
        %v3494 = vpop.permute.xlu0 %3493
        %v3496 = vlaneseq
        %v3497 = vshrl.u32 %v3496, 7
        %v3498 = vsub.s32 0, %v3497
        %v3499 = vrot.slane %v3494, %v3498
        %3501 = vset.pattern.permute.xlu0 0
        %3502 = vperm.xlu0 %3501, %v3444
        %v3503 = vpop.permute.xlu0 %3502
        %v3505 = vlaneseq
        %v3506 = vshrl.u32 %v3505, 7
        %v3507 = vsub.s32 0, %v3506
        %v3508 = vrot.slane %v3503, %v3507
        %3510 = vset.pattern.permute.xlu0 0
        %3511 = vperm.xlu0 %3510, %v3445
        %v3512 = vpop.permute.xlu0 %3511
        %v3514 = vlaneseq
        %v3515 = vshrl.u32 %v3514, 7
        %v3516 = vsub.s32 0, %v3515
        %v3517 = vrot.slane %v3512, %v3516
        %v3518 = vmul.f32 %v3454, %v3030
        %v3519 = vmul.f32 %v3463, %v3030
        %v3520 = vmul.f32 %v3472, %v3030
        %v3521 = vmul.f32 %v3481, %v3030
        %v3522 = vmul.f32 %v3490, %v3030
        %v3523 = vmul.f32 %v3499, %v3030
        %v3524 = vmul.f32 %v3508, %v3030
        %v3525 = vmul.f32 %v3517, %v3030
        %v3526 = vadd.f32 %v3429, %v3518
        %v3527 = vadd.f32 %v3430, %v3519
        %v3528 = vadd.f32 %v3431, %v3520
        %v3529 = vadd.f32 %v3432, %v3521
        %v3530 = vadd.f32 %v3433, %v3522
        %v3531 = vadd.f32 %v3434, %v3523
        %v3532 = vadd.f32 %v3435, %v3524
        %v3533 = vadd.f32 %v3436, %v3525
        %s3534 = scalar_lea.vmem %s7, 32
        %v3535 = vld [vmem:[%s3534] sm:$0x1]
        %v3536 = vld [vmem:[%s3534 + $0x1] sm:$0x1]
        %v3537 = vld [vmem:[%s3534 + $0x2] sm:$0x1]
        %v3538 = vld [vmem:[%s3534 + $0x3] sm:$0x1]
        %v3539 = vld [vmem:[%s3534 + $0x4] sm:$0x1]
        %v3540 = vld [vmem:[%s3534 + $0x5] sm:$0x1]
        %v3541 = vld [vmem:[%s3534 + $0x6] sm:$0x1]
        %v3542 = vld [vmem:[%s3534 + $0x7] sm:$0x1]
        %3544 = vset.pattern.permute.xlu0 0
        %3545 = vperm.xlu0 %3544, %v3535
        %v3546 = vpop.permute.xlu0 %3545
        %v3548 = vlaneseq
        %v3549 = vshrl.u32 %v3548, 7
        %v3550 = vsub.s32 0, %v3549
        %v3551 = vrot.slane %v3546, %v3550
        %3553 = vset.pattern.permute.xlu0 0
        %3554 = vperm.xlu0 %3553, %v3536
        %v3555 = vpop.permute.xlu0 %3554
        %v3557 = vlaneseq
        %v3558 = vshrl.u32 %v3557, 7
        %v3559 = vsub.s32 0, %v3558
        %v3560 = vrot.slane %v3555, %v3559
        %3562 = vset.pattern.permute.xlu0 0
        %3563 = vperm.xlu0 %3562, %v3537
        %v3564 = vpop.permute.xlu0 %3563
        %v3566 = vlaneseq
        %v3567 = vshrl.u32 %v3566, 7
        %v3568 = vsub.s32 0, %v3567
        %v3569 = vrot.slane %v3564, %v3568
        %3571 = vset.pattern.permute.xlu0 0
        %3572 = vperm.xlu0 %3571, %v3538
        %v3573 = vpop.permute.xlu0 %3572
        %v3575 = vlaneseq
        %v3576 = vshrl.u32 %v3575, 7
        %v3577 = vsub.s32 0, %v3576
        %v3578 = vrot.slane %v3573, %v3577
        %3580 = vset.pattern.permute.xlu0 0
        %3581 = vperm.xlu0 %3580, %v3539
        %v3582 = vpop.permute.xlu0 %3581
        %v3584 = vlaneseq
        %v3585 = vshrl.u32 %v3584, 7
        %v3586 = vsub.s32 0, %v3585
        %v3587 = vrot.slane %v3582, %v3586
        %3589 = vset.pattern.permute.xlu0 0
        %3590 = vperm.xlu0 %3589, %v3540
        %v3591 = vpop.permute.xlu0 %3590
        %v3593 = vlaneseq
        %v3594 = vshrl.u32 %v3593, 7
        %v3595 = vsub.s32 0, %v3594
        %v3596 = vrot.slane %v3591, %v3595
        %3598 = vset.pattern.permute.xlu0 0
        %3599 = vperm.xlu0 %3598, %v3541
        %v3600 = vpop.permute.xlu0 %3599
        %v3602 = vlaneseq
        %v3603 = vshrl.u32 %v3602, 7
        %v3604 = vsub.s32 0, %v3603
        %v3605 = vrot.slane %v3600, %v3604
        %3607 = vset.pattern.permute.xlu0 0
        %3608 = vperm.xlu0 %3607, %v3542
        %v3609 = vpop.permute.xlu0 %3608
        %v3611 = vlaneseq
        %v3612 = vshrl.u32 %v3611, 7
        %v3613 = vsub.s32 0, %v3612
        %v3614 = vrot.slane %v3609, %v3613
        %v3615 = vmul.f32 %v3551, %v3039
        %v3616 = vmul.f32 %v3560, %v3039
        %v3617 = vmul.f32 %v3569, %v3039
        %v3618 = vmul.f32 %v3578, %v3039
        %v3619 = vmul.f32 %v3587, %v3039
        %v3620 = vmul.f32 %v3596, %v3039
        %v3621 = vmul.f32 %v3605, %v3039
        %v3622 = vmul.f32 %v3614, %v3039
        %v3623 = vadd.f32 %v3526, %v3615
        %v3624 = vadd.f32 %v3527, %v3616
        %v3625 = vadd.f32 %v3528, %v3617
        %v3626 = vadd.f32 %v3529, %v3618
        %v3627 = vadd.f32 %v3530, %v3619
        %v3628 = vadd.f32 %v3531, %v3620
        %v3629 = vadd.f32 %v3532, %v3621
        %v3630 = vadd.f32 %v3533, %v3622
        %s3631 = scalar_lea.vmem %s7, 40
        %v3632 = vld [vmem:[%s3631] sm:$0x1]
        %v3633 = vld [vmem:[%s3631 + $0x1] sm:$0x1]
        %v3634 = vld [vmem:[%s3631 + $0x2] sm:$0x1]
        %v3635 = vld [vmem:[%s3631 + $0x3] sm:$0x1]
        %v3636 = vld [vmem:[%s3631 + $0x4] sm:$0x1]
        %v3637 = vld [vmem:[%s3631 + $0x5] sm:$0x1]
        %v3638 = vld [vmem:[%s3631 + $0x6] sm:$0x1]
        %v3639 = vld [vmem:[%s3631 + $0x7] sm:$0x1]
        %3641 = vset.pattern.permute.xlu0 0
        %3642 = vperm.xlu0 %3641, %v3632
        %v3643 = vpop.permute.xlu0 %3642
        %v3645 = vlaneseq
        %v3646 = vshrl.u32 %v3645, 7
        %v3647 = vsub.s32 0, %v3646
        %v3648 = vrot.slane %v3643, %v3647
        %3650 = vset.pattern.permute.xlu0 0
        %3651 = vperm.xlu0 %3650, %v3633
        %v3652 = vpop.permute.xlu0 %3651
        %v3654 = vlaneseq
        %v3655 = vshrl.u32 %v3654, 7
        %v3656 = vsub.s32 0, %v3655
        %v3657 = vrot.slane %v3652, %v3656
        %3659 = vset.pattern.permute.xlu0 0
        %3660 = vperm.xlu0 %3659, %v3634
        %v3661 = vpop.permute.xlu0 %3660
        %v3663 = vlaneseq
        %v3664 = vshrl.u32 %v3663, 7
        %v3665 = vsub.s32 0, %v3664
        %v3666 = vrot.slane %v3661, %v3665
        %3668 = vset.pattern.permute.xlu0 0
        %3669 = vperm.xlu0 %3668, %v3635
        %v3670 = vpop.permute.xlu0 %3669
        %v3672 = vlaneseq
        %v3673 = vshrl.u32 %v3672, 7
        %v3674 = vsub.s32 0, %v3673
        %v3675 = vrot.slane %v3670, %v3674
        %3677 = vset.pattern.permute.xlu0 0
        %3678 = vperm.xlu0 %3677, %v3636
        %v3679 = vpop.permute.xlu0 %3678
        %v3681 = vlaneseq
        %v3682 = vshrl.u32 %v3681, 7
        %v3683 = vsub.s32 0, %v3682
        %v3684 = vrot.slane %v3679, %v3683
        %3686 = vset.pattern.permute.xlu0 0
        %3687 = vperm.xlu0 %3686, %v3637
        %v3688 = vpop.permute.xlu0 %3687
        %v3690 = vlaneseq
        %v3691 = vshrl.u32 %v3690, 7
        %v3692 = vsub.s32 0, %v3691
        %v3693 = vrot.slane %v3688, %v3692
        %3695 = vset.pattern.permute.xlu0 0
        %3696 = vperm.xlu0 %3695, %v3638
        %v3697 = vpop.permute.xlu0 %3696
        %v3699 = vlaneseq
        %v3700 = vshrl.u32 %v3699, 7
        %v3701 = vsub.s32 0, %v3700
        %v3702 = vrot.slane %v3697, %v3701
        %3704 = vset.pattern.permute.xlu0 0
        %3705 = vperm.xlu0 %3704, %v3639
        %v3706 = vpop.permute.xlu0 %3705
        %v3708 = vlaneseq
        %v3709 = vshrl.u32 %v3708, 7
        %v3710 = vsub.s32 0, %v3709
        %v3711 = vrot.slane %v3706, %v3710
        %v3712 = vmul.f32 %v3648, %v3048
        %v3713 = vmul.f32 %v3657, %v3048
        %v3714 = vmul.f32 %v3666, %v3048
        %v3715 = vmul.f32 %v3675, %v3048
        %v3716 = vmul.f32 %v3684, %v3048
        %v3717 = vmul.f32 %v3693, %v3048
        %v3718 = vmul.f32 %v3702, %v3048
        %v3719 = vmul.f32 %v3711, %v3048
        %v3720 = vadd.f32 %v3623, %v3712
        %v3721 = vadd.f32 %v3624, %v3713
        %v3722 = vadd.f32 %v3625, %v3714
        %v3723 = vadd.f32 %v3626, %v3715
        %v3724 = vadd.f32 %v3627, %v3716
        %v3725 = vadd.f32 %v3628, %v3717
        %v3726 = vadd.f32 %v3629, %v3718
        %v3727 = vadd.f32 %v3630, %v3719
        %s3728 = scalar_lea.vmem %s7, 48
        %v3729 = vld [vmem:[%s3728] sm:$0x1]
        %v3730 = vld [vmem:[%s3728 + $0x1] sm:$0x1]
        %v3731 = vld [vmem:[%s3728 + $0x2] sm:$0x1]
        %v3732 = vld [vmem:[%s3728 + $0x3] sm:$0x1]
        %v3733 = vld [vmem:[%s3728 + $0x4] sm:$0x1]
        %v3734 = vld [vmem:[%s3728 + $0x5] sm:$0x1]
        %v3735 = vld [vmem:[%s3728 + $0x6] sm:$0x1]
        %v3736 = vld [vmem:[%s3728 + $0x7] sm:$0x1]
        %3738 = vset.pattern.permute.xlu0 0
        %3739 = vperm.xlu0 %3738, %v3729
        %v3740 = vpop.permute.xlu0 %3739
        %v3742 = vlaneseq
        %v3743 = vshrl.u32 %v3742, 7
        %v3744 = vsub.s32 0, %v3743
        %v3745 = vrot.slane %v3740, %v3744
        %3747 = vset.pattern.permute.xlu0 0
        %3748 = vperm.xlu0 %3747, %v3730
        %v3749 = vpop.permute.xlu0 %3748
        %v3751 = vlaneseq
        %v3752 = vshrl.u32 %v3751, 7
        %v3753 = vsub.s32 0, %v3752
        %v3754 = vrot.slane %v3749, %v3753
        %3756 = vset.pattern.permute.xlu0 0
        %3757 = vperm.xlu0 %3756, %v3731
        %v3758 = vpop.permute.xlu0 %3757
        %v3760 = vlaneseq
        %v3761 = vshrl.u32 %v3760, 7
        %v3762 = vsub.s32 0, %v3761
        %v3763 = vrot.slane %v3758, %v3762
        %3765 = vset.pattern.permute.xlu0 0
        %3766 = vperm.xlu0 %3765, %v3732
        %v3767 = vpop.permute.xlu0 %3766
        %v3769 = vlaneseq
        %v3770 = vshrl.u32 %v3769, 7
        %v3771 = vsub.s32 0, %v3770
        %v3772 = vrot.slane %v3767, %v3771
        %3774 = vset.pattern.permute.xlu0 0
        %3775 = vperm.xlu0 %3774, %v3733
        %v3776 = vpop.permute.xlu0 %3775
        %v3778 = vlaneseq
        %v3779 = vshrl.u32 %v3778, 7
        %v3780 = vsub.s32 0, %v3779
        %v3781 = vrot.slane %v3776, %v3780
        %3783 = vset.pattern.permute.xlu0 0
        %3784 = vperm.xlu0 %3783, %v3734
        %v3785 = vpop.permute.xlu0 %3784
        %v3787 = vlaneseq
        %v3788 = vshrl.u32 %v3787, 7
        %v3789 = vsub.s32 0, %v3788
        %v3790 = vrot.slane %v3785, %v3789
        %3792 = vset.pattern.permute.xlu0 0
        %3793 = vperm.xlu0 %3792, %v3735
        %v3794 = vpop.permute.xlu0 %3793
        %v3796 = vlaneseq
        %v3797 = vshrl.u32 %v3796, 7
        %v3798 = vsub.s32 0, %v3797
        %v3799 = vrot.slane %v3794, %v3798
        %3801 = vset.pattern.permute.xlu0 0
        %3802 = vperm.xlu0 %3801, %v3736
        %v3803 = vpop.permute.xlu0 %3802
        %v3805 = vlaneseq
        %v3806 = vshrl.u32 %v3805, 7
        %v3807 = vsub.s32 0, %v3806
        %v3808 = vrot.slane %v3803, %v3807
        %v3809 = vmul.f32 %v3745, %v3057
        %v3810 = vmul.f32 %v3754, %v3057
        %v3811 = vmul.f32 %v3763, %v3057
        %v3812 = vmul.f32 %v3772, %v3057
        %v3813 = vmul.f32 %v3781, %v3057
        %v3814 = vmul.f32 %v3790, %v3057
        %v3815 = vmul.f32 %v3799, %v3057
        %v3816 = vmul.f32 %v3808, %v3057
        %v3817 = vadd.f32 %v3720, %v3809
        %v3818 = vadd.f32 %v3721, %v3810
        %v3819 = vadd.f32 %v3722, %v3811
        %v3820 = vadd.f32 %v3723, %v3812
        %v3821 = vadd.f32 %v3724, %v3813
        %v3822 = vadd.f32 %v3725, %v3814
        %v3823 = vadd.f32 %v3726, %v3815
        %v3824 = vadd.f32 %v3727, %v3816
        %s3825 = scalar_lea.vmem %s7, 56
        %v3826 = vld [vmem:[%s3825] sm:$0x1]
        %v3827 = vld [vmem:[%s3825 + $0x1] sm:$0x1]
        %v3828 = vld [vmem:[%s3825 + $0x2] sm:$0x1]
        %v3829 = vld [vmem:[%s3825 + $0x3] sm:$0x1]
        %v3830 = vld [vmem:[%s3825 + $0x4] sm:$0x1]
        %v3831 = vld [vmem:[%s3825 + $0x5] sm:$0x1]
        %v3832 = vld [vmem:[%s3825 + $0x6] sm:$0x1]
        %v3833 = vld [vmem:[%s3825 + $0x7] sm:$0x1]
        %3835 = vset.pattern.permute.xlu0 0
        %3836 = vperm.xlu0 %3835, %v3826
        %v3837 = vpop.permute.xlu0 %3836
        %v3839 = vlaneseq
        %v3840 = vshrl.u32 %v3839, 7
        %v3841 = vsub.s32 0, %v3840
        %v3842 = vrot.slane %v3837, %v3841
        %3844 = vset.pattern.permute.xlu0 0
        %3845 = vperm.xlu0 %3844, %v3827
        %v3846 = vpop.permute.xlu0 %3845
        %v3848 = vlaneseq
        %v3849 = vshrl.u32 %v3848, 7
        %v3850 = vsub.s32 0, %v3849
        %v3851 = vrot.slane %v3846, %v3850
        %3853 = vset.pattern.permute.xlu0 0
        %3854 = vperm.xlu0 %3853, %v3828
        %v3855 = vpop.permute.xlu0 %3854
        %v3857 = vlaneseq
        %v3858 = vshrl.u32 %v3857, 7
        %v3859 = vsub.s32 0, %v3858
        %v3860 = vrot.slane %v3855, %v3859
        %3862 = vset.pattern.permute.xlu0 0
        %3863 = vperm.xlu0 %3862, %v3829
        %v3864 = vpop.permute.xlu0 %3863
        %v3866 = vlaneseq
        %v3867 = vshrl.u32 %v3866, 7
        %v3868 = vsub.s32 0, %v3867
        %v3869 = vrot.slane %v3864, %v3868
        %3871 = vset.pattern.permute.xlu0 0
        %3872 = vperm.xlu0 %3871, %v3830
        %v3873 = vpop.permute.xlu0 %3872
        %v3875 = vlaneseq
        %v3876 = vshrl.u32 %v3875, 7
        %v3877 = vsub.s32 0, %v3876
        %v3878 = vrot.slane %v3873, %v3877
        %3880 = vset.pattern.permute.xlu0 0
        %3881 = vperm.xlu0 %3880, %v3831
        %v3882 = vpop.permute.xlu0 %3881
        %v3884 = vlaneseq
        %v3885 = vshrl.u32 %v3884, 7
        %v3886 = vsub.s32 0, %v3885
        %v3887 = vrot.slane %v3882, %v3886
        %3889 = vset.pattern.permute.xlu0 0
        %3890 = vperm.xlu0 %3889, %v3832
        %v3891 = vpop.permute.xlu0 %3890
        %v3893 = vlaneseq
        %v3894 = vshrl.u32 %v3893, 7
        %v3895 = vsub.s32 0, %v3894
        %v3896 = vrot.slane %v3891, %v3895
        %3898 = vset.pattern.permute.xlu0 0
        %3899 = vperm.xlu0 %3898, %v3833
        %v3900 = vpop.permute.xlu0 %3899
        %v3902 = vlaneseq
        %v3903 = vshrl.u32 %v3902, 7
        %v3904 = vsub.s32 0, %v3903
        %v3905 = vrot.slane %v3900, %v3904
        %v3906 = vmul.f32 %v3842, %v3066
        %v3907 = vmul.f32 %v3851, %v3066
        %v3908 = vmul.f32 %v3860, %v3066
        %v3909 = vmul.f32 %v3869, %v3066
        %v3910 = vmul.f32 %v3878, %v3066
        %v3911 = vmul.f32 %v3887, %v3066
        %v3912 = vmul.f32 %v3896, %v3066
        %v3913 = vmul.f32 %v3905, %v3066
        %v3914 = vadd.f32 %v3817, %v3906
        %v3915 = vadd.f32 %v3818, %v3907
        %v3916 = vadd.f32 %v3819, %v3908
        %v3917 = vadd.f32 %v3820, %v3909
        %v3918 = vadd.f32 %v3821, %v3910
        %v3919 = vadd.f32 %v3822, %v3911
        %v3920 = vadd.f32 %v3823, %v3912
        %v3921 = vadd.f32 %v3824, %v3913
        %v3922 = vmax.f32 %v3914, 0.0
        %v3923 = vmax.f32 %v3915, 0.0
        %v3924 = vmax.f32 %v3916, 0.0
        %v3925 = vmax.f32 %v3917, 0.0
        %v3926 = vmax.f32 %v3918, 0.0
        %v3927 = vmax.f32 %v3919, 0.0
        %v3928 = vmax.f32 %v3920, 0.0
        %v3929 = vmax.f32 %v3921, 0.0
        %v3930 = vadd.f32 %v2414, %v3922
        %v3931 = vadd.f32 %v2415, %v3922
        %v3932 = vadd.f32 %v2416, %v3923
        %v3933 = vadd.f32 %v2417, %v3923
        %v3934 = vadd.f32 %v2418, %v3924
        %v3935 = vadd.f32 %v2419, %v3924
        %v3936 = vadd.f32 %v2420, %v3925
        %v3937 = vadd.f32 %v2421, %v3925
        %v3938 = vadd.f32 %v2422, %v3926
        %v3939 = vadd.f32 %v2423, %v3926
        %v3940 = vadd.f32 %v2424, %v3927
        %v3941 = vadd.f32 %v2425, %v3927
        %v3942 = vadd.f32 %v2426, %v3928
        %v3943 = vadd.f32 %v2427, %v3928
        %v3944 = vadd.f32 %v2428, %v3929
        %v3945 = vadd.f32 %v2429, %v3929
        %3946 = vst.msk [vmem:[%s433] sm:$0xff] %vm2994, %v3930
        %3947 = vst.msk [vmem:[%s433 + $0x8] sm:$0xff] %vm2994, %v3931
        %3948 = vst.msk [vmem:[%s433 + $0x10] sm:$0xff] %vm2994, %v3932
        %3949 = vst.msk [vmem:[%s433 + $0x18] sm:$0xff] %vm2994, %v3933
        %3950 = vst.msk [vmem:[%s433 + $0x20] sm:$0xff] %vm2994, %v3934
        %3951 = vst.msk [vmem:[%s433 + $0x28] sm:$0xff] %vm2994, %v3935
        %3952 = vst.msk [vmem:[%s433 + $0x30] sm:$0xff] %vm2994, %v3936
        %3953 = vst.msk [vmem:[%s433 + $0x38] sm:$0xff] %vm2994, %v3937
        %3954 = vst.msk [vmem:[%s433 + $0x40] sm:$0xff] %vm2994, %v3938
        %3955 = vst.msk [vmem:[%s433 + $0x48] sm:$0xff] %vm2994, %v3939
        %3956 = vst.msk [vmem:[%s433 + $0x50] sm:$0xff] %vm2994, %v3940
        %3957 = vst.msk [vmem:[%s433 + $0x58] sm:$0xff] %vm2994, %v3941
        %3958 = vst.msk [vmem:[%s433 + $0x60] sm:$0xff] %vm2994, %v3942
        %3959 = vst.msk [vmem:[%s433 + $0x68] sm:$0xff] %vm2994, %v3943
        %3960 = vst.msk [vmem:[%s433 + $0x70] sm:$0xff] %vm2994, %v3944
        %3961 = vst.msk [vmem:[%s433 + $0x78] sm:$0xff] %vm2994, %v3945
        %v3962 = vld [vmem:[%s11] sm:$0xff]
        %v3963 = vld [vmem:[%s11 + $0x8] sm:$0xff]
        %v3964 = vld [vmem:[%s11 + $0x10] sm:$0xff]
        %v3966 = vsel %vm2994, %v2430, 0
        %v3969 = vsel %vm2994, %v2431, 0
        %v3972 = vsel %vm2994, %v2432, 0
        %v3975 = vsel %vm2994, %v2433, 0
        %v3978 = vsel %vm2994, %v2434, 0
        %v3981 = vsel %vm2994, %v2435, 0
        %v3984 = vsel %vm2994, %v2436, 0
        %v3987 = vsel %vm2994, %v2437, 0
        %v3990 = vsel %vm2994, %v2438, 0
        %v3993 = vsel %vm2994, %v2439, 0
        %v3996 = vsel %vm2994, %v2440, 0
        %v3999 = vsel %vm2994, %v2441, 0
        %v4002 = vsel %vm2994, %v2442, 0
        %v4005 = vsel %vm2994, %v2443, 0
        %v4008 = vsel %vm2994, %v2444, 0
        %v4011 = vsel %vm2994, %v2445, 0
        %4013 = vmatprep.subr.mxu0 0.0
        %4014 = vmatpush1.msra.mxu0 %v3962
        %4015 = vmatprep.subr.mxu0 0.0
        %4016 = vmatpush1.msra.mxu0 %v3963
        %4017 = vmatprep.subr.mxu0 0.0
        %4018 = vmatpush1.msra.mxu0 %v3964
        %4019 = vmatprep.subr.mxu0 0.0
        %4020 = vmatpush1.msra.mxu0 0.0
        %4021 = vmatprep.subr.mxu0 0.0
        %4022 = vmatpush1.msra.mxu0 0.0
        %4023 = vmatprep.subr.mxu0 0.0
        %4024 = vmatpush1.msra.mxu0 0.0
        %4025 = vmatprep.subr.mxu0 0.0
        %4026 = vmatpush1.msra.mxu0 0.0
        %4027 = vmatprep.subr.mxu0 0.0
        %4028 = vmatpush1.msra.mxu0 0.0
        %4029 = vmatprep.subr.mxu0 0.0
        %4030 = vmatpush1.msra.mxu0 0.0
        %4031 = vmatprep.subr.mxu0 0.0
        %4032 = vmatpush1.msra.mxu0 0.0
        %4033 = vmatprep.subr.mxu0 0.0
        %4034 = vmatpush1.msra.mxu0 0.0
        %4035 = vmatprep.subr.mxu0 0.0
        %4036 = vmatpush1.msra.mxu0 0.0
        %4037 = vmatprep.subr.mxu0 0.0
        %4038 = vmatpush1.msra.mxu0 0.0
        %4039 = vmatprep.subr.mxu0 0.0
        %4040 = vmatpush1.msra.mxu0 0.0
        %4041 = vmatprep.subr.mxu0 0.0
        %4042 = vmatpush1.msra.mxu0 0.0
        %4043 = vmatprep.subr.mxu0 0.0
        %4044 = vmatpush1.msra.mxu0 0.0
        %4045 = vmatprep.subr.mxu0 0.0
        %4046 = vmatpush1.msra.mxu0 0.0
        %4047 = vmatprep.subr.mxu0 0.0
        %4048 = vmatpush1.msra.mxu0 0.0
        %4049 = vmatprep.subr.mxu0 0.0
        %4050 = vmatpush1.msra.mxu0 0.0
        %4051 = vmatprep.subr.mxu0 0.0
        %4052 = vmatpush1.msra.mxu0 0.0
        %4053 = vmatprep.subr.mxu0 0.0
        %4054 = vmatpush1.msra.mxu0 0.0
        %4055 = vmatprep.subr.mxu0 0.0
        %4056 = vmatpush1.msra.mxu0 0.0
        %4057 = vmatprep.subr.mxu0 0.0
        %4058 = vmatpush1.msra.mxu0 0.0
        %4059 = vmatprep.subr.mxu0 0.0
        %4060 = vmatpush1.msra.mxu0 0.0
        %4061 = vmatprep.subr.mxu0 0.0
        %4062 = vmatpush1.msra.mxu0 0.0
        %4063 = vmatprep.subr.mxu0 0.0
        %4064 = vmatpush1.msra.mxu0 0.0
        %4065 = vmatprep.subr.mxu0 0.0
        %4066 = vmatpush1.msra.mxu0 0.0
        %4067 = vmatprep.subr.mxu0 0.0
        %4068 = vmatpush1.msra.mxu0 0.0
        %4069 = vmatprep.subr.mxu0 0.0
        %4070 = vmatpush1.msra.mxu0 0.0
        %4071 = vmatprep.subr.mxu0 0.0
        %4072 = vmatpush1.msra.mxu0 0.0
        %4073 = vmatprep.subr.mxu0 0.0
        %4074 = vmatpush1.msra.mxu0 0.0
        %4075 = vmatprep.subr.mxu0 0.0
        %4076 = vmatpush1.msra.mxu0 0.0
        %4077 = vmatprep.mubr.f32.mxu0 0.0
        %4078 = vmatmul.mubr.f32.gmra.mrb[0].mxu0 %v3966
        %v4079 = vpop.f32.mrb[0].mxu0
        %v4080 = vadd.f32 0.0, %v4079
        %v4081 = vpop.f32.mrb[0].mxu0
        %4082 = vmatprep.mubr.f32.mxu0 0.0
        %4083 = vmatmul.mubr.f32.gmra.mrb[0].mxu0 %v3969
        %v4084 = vpop.f32.mrb[0].mxu0
        %v4085 = vadd.f32 0.0, %v4084
        %v4086 = vpop.f32.mrb[0].mxu0
        %4087 = vmatprep.mubr.f32.mxu0 0.0
        %4088 = vmatmul.mubr.f32.gmra.mrb[0].mxu0 %v3972
        %v4089 = vpop.f32.mrb[0].mxu0
        %v4090 = vadd.f32 0.0, %v4089
        %v4091 = vpop.f32.mrb[0].mxu0
        %4092 = vmatprep.mubr.f32.mxu0 0.0
        %4093 = vmatmul.mubr.f32.gmra.mrb[0].mxu0 %v3975
        %v4094 = vpop.f32.mrb[0].mxu0
        %v4095 = vadd.f32 0.0, %v4094
        %v4096 = vpop.f32.mrb[0].mxu0
        %4097 = vmatprep.mubr.f32.mxu0 0.0
        %4098 = vmatmul.mubr.f32.gmra.mrb[0].mxu0 %v3978
        %v4099 = vpop.f32.mrb[0].mxu0
        %v4100 = vadd.f32 0.0, %v4099
        %v4101 = vpop.f32.mrb[0].mxu0
        %4102 = vmatprep.mubr.f32.mxu0 0.0
        %4103 = vmatmul.mubr.f32.gmra.mrb[0].mxu0 %v3981
        %v4104 = vpop.f32.mrb[0].mxu0
        %v4105 = vadd.f32 0.0, %v4104
        %v4106 = vpop.f32.mrb[0].mxu0
        %4107 = vmatprep.mubr.f32.mxu0 0.0
        %4108 = vmatmul.mubr.f32.gmra.mrb[0].mxu0 %v3984
        %v4109 = vpop.f32.mrb[0].mxu0
        %v4110 = vadd.f32 0.0, %v4109
        %v4111 = vpop.f32.mrb[0].mxu0
        %4112 = vmatprep.mubr.f32.mxu0 0.0
        %4113 = vmatmul.mubr.f32.gmra.mrb[0].mxu0 %v3987
        %v4114 = vpop.f32.mrb[0].mxu0
        %v4115 = vadd.f32 0.0, %v4114
        %v4116 = vpop.f32.mrb[0].mxu0
        %4117 = vmatprep.mubr.f32.mxu0 0.0
        %4118 = vmatmul.mubr.f32.gmra.mrb[0].mxu0 %v3990
        %v4119 = vpop.f32.mrb[0].mxu0
        %v4120 = vadd.f32 0.0, %v4119
        %v4121 = vpop.f32.mrb[0].mxu0
        %4122 = vmatprep.mubr.f32.mxu0 0.0
        %4123 = vmatmul.mubr.f32.gmra.mrb[0].mxu0 %v3993
        %v4124 = vpop.f32.mrb[0].mxu0
        %v4125 = vadd.f32 0.0, %v4124
        %v4126 = vpop.f32.mrb[0].mxu0
        %4127 = vmatprep.mubr.f32.mxu0 0.0
        %4128 = vmatmul.mubr.f32.gmra.mrb[0].mxu0 %v3996
        %v4129 = vpop.f32.mrb[0].mxu0
        %v4130 = vadd.f32 0.0, %v4129
        %v4131 = vpop.f32.mrb[0].mxu0
        %4132 = vmatprep.mubr.f32.mxu0 0.0
        %4133 = vmatmul.mubr.f32.gmra.mrb[0].mxu0 %v3999
        %v4134 = vpop.f32.mrb[0].mxu0
        %v4135 = vadd.f32 0.0, %v4134
        %v4136 = vpop.f32.mrb[0].mxu0
        %4137 = vmatprep.mubr.f32.mxu0 0.0
        %4138 = vmatmul.mubr.f32.gmra.mrb[0].mxu0 %v4002
        %v4139 = vpop.f32.mrb[0].mxu0
        %v4140 = vadd.f32 0.0, %v4139
        %v4141 = vpop.f32.mrb[0].mxu0
        %4142 = vmatprep.mubr.f32.mxu0 0.0
        %4143 = vmatmul.mubr.f32.gmra.mrb[0].mxu0 %v4005
        %v4144 = vpop.f32.mrb[0].mxu0
        %v4145 = vadd.f32 0.0, %v4144
        %v4146 = vpop.f32.mrb[0].mxu0
        %4147 = vmatprep.mubr.f32.mxu0 0.0
        %4148 = vmatmul.mubr.f32.gmra.mrb[0].mxu0 %v4008
        %v4149 = vpop.f32.mrb[0].mxu0
        %v4150 = vadd.f32 0.0, %v4149
        %v4151 = vpop.f32.mrb[0].mxu0
        %4152 = vmatprep.mubr.f32.mxu0 0.0
        %4153 = vmatmul.mubr.f32.gmra.mrb[0].mxu0 %v4011
        %v4154 = vpop.f32.mrb[0].mxu0
        %v4155 = vadd.f32 0.0, %v4154
        %v4156 = vpop.f32.mrb[0].mxu0
        %4157 = vdwg.mxu0
        %v4158 = vld [vmem:[%s12] sm:$0xff]
        %v4159 = vld [vmem:[%s12 + $0x8] sm:$0xff]
        %v4160 = vld [vmem:[%s12 + $0x10] sm:$0xff]
        %4161 = vmatprep.subr.mxu0 0.0
        %4162 = vmatpush1.msra.mxu0 %v4158
        %4163 = vmatprep.subr.mxu0 0.0
        %4164 = vmatpush1.msra.mxu0 %v4159
        %4165 = vmatprep.subr.mxu0 0.0
        %4166 = vmatpush1.msra.mxu0 %v4160
        %4167 = vmatprep.subr.mxu0 0.0
        %4168 = vmatpush1.msra.mxu0 0.0
        %4169 = vmatprep.subr.mxu0 0.0
        %4170 = vmatpush1.msra.mxu0 0.0
        %4171 = vmatprep.subr.mxu0 0.0
        %4172 = vmatpush1.msra.mxu0 0.0
        %4173 = vmatprep.subr.mxu0 0.0
        %4174 = vmatpush1.msra.mxu0 0.0
        %4175 = vmatprep.subr.mxu0 0.0
        %4176 = vmatpush1.msra.mxu0 0.0
        %4177 = vmatprep.subr.mxu0 0.0
        %4178 = vmatpush1.msra.mxu0 0.0
        %4179 = vmatprep.subr.mxu0 0.0
        %4180 = vmatpush1.msra.mxu0 0.0
        %4181 = vmatprep.subr.mxu0 0.0
        %4182 = vmatpush1.msra.mxu0 0.0
        %4183 = vmatprep.subr.mxu0 0.0
        %4184 = vmatpush1.msra.mxu0 0.0
        %4185 = vmatprep.subr.mxu0 0.0
        %4186 = vmatpush1.msra.mxu0 0.0
        %4187 = vmatprep.subr.mxu0 0.0
        %4188 = vmatpush1.msra.mxu0 0.0
        %4189 = vmatprep.subr.mxu0 0.0
        %4190 = vmatpush1.msra.mxu0 0.0
        %4191 = vmatprep.subr.mxu0 0.0
        %4192 = vmatpush1.msra.mxu0 0.0
        %4193 = vmatprep.subr.mxu0 0.0
        %4194 = vmatpush1.msra.mxu0 0.0
        %4195 = vmatprep.subr.mxu0 0.0
        %4196 = vmatpush1.msra.mxu0 0.0
        %4197 = vmatprep.subr.mxu0 0.0
        %4198 = vmatpush1.msra.mxu0 0.0
        %4199 = vmatprep.subr.mxu0 0.0
        %4200 = vmatpush1.msra.mxu0 0.0
        %4201 = vmatprep.subr.mxu0 0.0
        %4202 = vmatpush1.msra.mxu0 0.0
        %4203 = vmatprep.subr.mxu0 0.0
        %4204 = vmatpush1.msra.mxu0 0.0
        %4205 = vmatprep.subr.mxu0 0.0
        %4206 = vmatpush1.msra.mxu0 0.0
        %4207 = vmatprep.subr.mxu0 0.0
        %4208 = vmatpush1.msra.mxu0 0.0
        %4209 = vmatprep.subr.mxu0 0.0
        %4210 = vmatpush1.msra.mxu0 0.0
        %4211 = vmatprep.subr.mxu0 0.0
        %4212 = vmatpush1.msra.mxu0 0.0
        %4213 = vmatprep.subr.mxu0 0.0
        %4214 = vmatpush1.msra.mxu0 0.0
        %4215 = vmatprep.subr.mxu0 0.0
        %4216 = vmatpush1.msra.mxu0 0.0
        %4217 = vmatprep.subr.mxu0 0.0
        %4218 = vmatpush1.msra.mxu0 0.0
        %4219 = vmatprep.subr.mxu0 0.0
        %4220 = vmatpush1.msra.mxu0 0.0
        %4221 = vmatprep.subr.mxu0 0.0
        %4222 = vmatpush1.msra.mxu0 0.0
        %4223 = vmatprep.subr.mxu0 0.0
        %4224 = vmatpush1.msra.mxu0 0.0
        %4225 = vmatprep.mubr.f32.mxu0 0.0
        %4226 = vmatmul.mubr.f32.gmra.mrb[0].mxu0 %v3966
        %v4227 = vpop.f32.mrb[0].mxu0
        %v4228 = vadd.f32 0.0, %v4227
        %v4229 = vpop.f32.mrb[0].mxu0
        %4230 = vmatprep.mubr.f32.mxu0 0.0
        %4231 = vmatmul.mubr.f32.gmra.mrb[0].mxu0 %v3969
        %v4232 = vpop.f32.mrb[0].mxu0
        %v4233 = vadd.f32 0.0, %v4232
        %v4234 = vpop.f32.mrb[0].mxu0
        %4235 = vmatprep.mubr.f32.mxu0 0.0
        %4236 = vmatmul.mubr.f32.gmra.mrb[0].mxu0 %v3972
        %v4237 = vpop.f32.mrb[0].mxu0
        %v4238 = vadd.f32 0.0, %v4237
        %v4239 = vpop.f32.mrb[0].mxu0
        %4240 = vmatprep.mubr.f32.mxu0 0.0
        %4241 = vmatmul.mubr.f32.gmra.mrb[0].mxu0 %v3975
        %v4242 = vpop.f32.mrb[0].mxu0
        %v4243 = vadd.f32 0.0, %v4242
        %v4244 = vpop.f32.mrb[0].mxu0
        %4245 = vmatprep.mubr.f32.mxu0 0.0
        %4246 = vmatmul.mubr.f32.gmra.mrb[0].mxu0 %v3978
        %v4247 = vpop.f32.mrb[0].mxu0
        %v4248 = vadd.f32 0.0, %v4247
        %v4249 = vpop.f32.mrb[0].mxu0
        %4250 = vmatprep.mubr.f32.mxu0 0.0
        %4251 = vmatmul.mubr.f32.gmra.mrb[0].mxu0 %v3981
        %v4252 = vpop.f32.mrb[0].mxu0
        %v4253 = vadd.f32 0.0, %v4252
        %v4254 = vpop.f32.mrb[0].mxu0
        %4255 = vmatprep.mubr.f32.mxu0 0.0
        %4256 = vmatmul.mubr.f32.gmra.mrb[0].mxu0 %v3984
        %v4257 = vpop.f32.mrb[0].mxu0
        %v4258 = vadd.f32 0.0, %v4257
        %v4259 = vpop.f32.mrb[0].mxu0
        %4260 = vmatprep.mubr.f32.mxu0 0.0
        %4261 = vmatmul.mubr.f32.gmra.mrb[0].mxu0 %v3987
        %v4262 = vpop.f32.mrb[0].mxu0
        %v4263 = vadd.f32 0.0, %v4262
        %v4264 = vpop.f32.mrb[0].mxu0
        %4265 = vmatprep.mubr.f32.mxu0 0.0
        %4266 = vmatmul.mubr.f32.gmra.mrb[0].mxu0 %v3990
        %v4267 = vpop.f32.mrb[0].mxu0
        %v4268 = vadd.f32 0.0, %v4267
        %v4269 = vpop.f32.mrb[0].mxu0
        %4270 = vmatprep.mubr.f32.mxu0 0.0
        %4271 = vmatmul.mubr.f32.gmra.mrb[0].mxu0 %v3993
        %v4272 = vpop.f32.mrb[0].mxu0
        %v4273 = vadd.f32 0.0, %v4272
        %v4274 = vpop.f32.mrb[0].mxu0
        %4275 = vmatprep.mubr.f32.mxu0 0.0
        %4276 = vmatmul.mubr.f32.gmra.mrb[0].mxu0 %v3996
        %v4277 = vpop.f32.mrb[0].mxu0
        %v4278 = vadd.f32 0.0, %v4277
        %v4279 = vpop.f32.mrb[0].mxu0
        %4280 = vmatprep.mubr.f32.mxu0 0.0
        %4281 = vmatmul.mubr.f32.gmra.mrb[0].mxu0 %v3999
        %v4282 = vpop.f32.mrb[0].mxu0
        %v4283 = vadd.f32 0.0, %v4282
        %v4284 = vpop.f32.mrb[0].mxu0
        %4285 = vmatprep.mubr.f32.mxu0 0.0
        %4286 = vmatmul.mubr.f32.gmra.mrb[0].mxu0 %v4002
        %v4287 = vpop.f32.mrb[0].mxu0
        %v4288 = vadd.f32 0.0, %v4287
        %v4289 = vpop.f32.mrb[0].mxu0
        %4290 = vmatprep.mubr.f32.mxu0 0.0
        %4291 = vmatmul.mubr.f32.gmra.mrb[0].mxu0 %v4005
        %v4292 = vpop.f32.mrb[0].mxu0
        %v4293 = vadd.f32 0.0, %v4292
        %v4294 = vpop.f32.mrb[0].mxu0
        %4295 = vmatprep.mubr.f32.mxu0 0.0
        %4296 = vmatmul.mubr.f32.gmra.mrb[0].mxu0 %v4008
        %v4297 = vpop.f32.mrb[0].mxu0
        %v4298 = vadd.f32 0.0, %v4297
        %v4299 = vpop.f32.mrb[0].mxu0
        %4300 = vmatprep.mubr.f32.mxu0 0.0
        %4301 = vmatmul.mubr.f32.gmra.mrb[0].mxu0 %v4011
        %v4302 = vpop.f32.mrb[0].mxu0
        %v4303 = vadd.f32 0.0, %v4302
        %v4304 = vpop.f32.mrb[0].mxu0
        %4305 = vdwg.mxu0
        %v4306 = vld [vmem:[%s5] sm:$0x1]
        %v4307 = vld [vmem:[%s5 + $0x1] sm:$0x1]
        %v4308 = vld [vmem:[%s5 + $0x2] sm:$0x1]
        %v4309 = vld [vmem:[%s5 + $0x3] sm:$0x1]
        %v4310 = vld [vmem:[%s5 + $0x4] sm:$0x1]
        %v4311 = vld [vmem:[%s5 + $0x5] sm:$0x1]
        %v4312 = vld [vmem:[%s5 + $0x6] sm:$0x1]
        %v4313 = vld [vmem:[%s5 + $0x7] sm:$0x1]
        %v4322 = vlaneseq
        %v4323 = vshrl.u32 %v4322, 7
        %v4324 = vsub.s32 0, %v4323
        %v4325 = vrot.slane %v4306, %v4324
        %v4326 = vlaneseq
        %v4327 = vshrl.u32 %v4326, 7
        %v4328 = vsub.s32 0, %v4327
        %v4329 = vrot.slane %v4307, %v4328
        %v4330 = vlaneseq
        %v4331 = vshrl.u32 %v4330, 7
        %v4332 = vsub.s32 0, %v4331
        %v4333 = vrot.slane %v4308, %v4332
        %v4334 = vlaneseq
        %v4335 = vshrl.u32 %v4334, 7
        %v4336 = vsub.s32 0, %v4335
        %v4337 = vrot.slane %v4309, %v4336
        %v4338 = vlaneseq
        %v4339 = vshrl.u32 %v4338, 7
        %v4340 = vsub.s32 0, %v4339
        %v4341 = vrot.slane %v4310, %v4340
        %v4342 = vlaneseq
        %v4343 = vshrl.u32 %v4342, 7
        %v4344 = vsub.s32 0, %v4343
        %v4345 = vrot.slane %v4311, %v4344
        %v4346 = vlaneseq
        %v4347 = vshrl.u32 %v4346, 7
        %v4348 = vsub.s32 0, %v4347
        %v4349 = vrot.slane %v4312, %v4348
        %v4350 = vlaneseq
        %v4351 = vshrl.u32 %v4350, 7
        %v4352 = vsub.s32 0, %v4351
        %v4353 = vrot.slane %v4313, %v4352
        %4354 = vset.pattern.permute.xlu0 0
        %4355 = vperm.xlu0 %4354, %v4325
        %v4356 = vpop.permute.xlu0 %4355
        %4358 = vset.pattern.permute.xlu0 0
        %4359 = vperm.xlu0 %4358, %v4329
        %v4360 = vpop.permute.xlu0 %4359
        %4362 = vset.pattern.permute.xlu0 0
        %4363 = vperm.xlu0 %4362, %v4333
        %v4364 = vpop.permute.xlu0 %4363
        %4366 = vset.pattern.permute.xlu0 0
        %4367 = vperm.xlu0 %4366, %v4337
        %v4368 = vpop.permute.xlu0 %4367
        %4370 = vset.pattern.permute.xlu0 0
        %4371 = vperm.xlu0 %4370, %v4341
        %v4372 = vpop.permute.xlu0 %4371
        %4374 = vset.pattern.permute.xlu0 0
        %4375 = vperm.xlu0 %4374, %v4345
        %v4376 = vpop.permute.xlu0 %4375
        %4378 = vset.pattern.permute.xlu0 0
        %4379 = vperm.xlu0 %4378, %v4349
        %v4380 = vpop.permute.xlu0 %4379
        %4382 = vset.pattern.permute.xlu0 0
        %4383 = vperm.xlu0 %4382, %v4353
        %v4384 = vpop.permute.xlu0 %4383
        %v4386 = vmul.f32 %v4356, %v4080
        %v4387 = vmul.f32 %v4356, %v4085
        %v4388 = vmul.f32 %v4360, %v4090
        %v4389 = vmul.f32 %v4360, %v4095
        %v4390 = vmul.f32 %v4364, %v4100
        %v4391 = vmul.f32 %v4364, %v4105
        %v4392 = vmul.f32 %v4368, %v4110
        %v4393 = vmul.f32 %v4368, %v4115
        %v4394 = vmul.f32 %v4372, %v4120
        %v4395 = vmul.f32 %v4372, %v4125
        %v4396 = vmul.f32 %v4376, %v4130
        %v4397 = vmul.f32 %v4376, %v4135
        %v4398 = vmul.f32 %v4380, %v4140
        %v4399 = vmul.f32 %v4380, %v4145
        %v4400 = vmul.f32 %v4384, %v4150
        %v4401 = vmul.f32 %v4384, %v4155
        %s4402 = scalar_lea.vmem %s5, 8
        %v4403 = vld [vmem:[%s4402] sm:$0x1]
        %v4404 = vld [vmem:[%s4402 + $0x1] sm:$0x1]
        %v4405 = vld [vmem:[%s4402 + $0x2] sm:$0x1]
        %v4406 = vld [vmem:[%s4402 + $0x3] sm:$0x1]
        %v4407 = vld [vmem:[%s4402 + $0x4] sm:$0x1]
        %v4408 = vld [vmem:[%s4402 + $0x5] sm:$0x1]
        %v4409 = vld [vmem:[%s4402 + $0x6] sm:$0x1]
        %v4410 = vld [vmem:[%s4402 + $0x7] sm:$0x1]
        %v4419 = vlaneseq
        %v4420 = vshrl.u32 %v4419, 7
        %v4421 = vsub.s32 0, %v4420
        %v4422 = vrot.slane %v4403, %v4421
        %v4423 = vlaneseq
        %v4424 = vshrl.u32 %v4423, 7
        %v4425 = vsub.s32 0, %v4424
        %v4426 = vrot.slane %v4404, %v4425
        %v4427 = vlaneseq
        %v4428 = vshrl.u32 %v4427, 7
        %v4429 = vsub.s32 0, %v4428
        %v4430 = vrot.slane %v4405, %v4429
        %v4431 = vlaneseq
        %v4432 = vshrl.u32 %v4431, 7
        %v4433 = vsub.s32 0, %v4432
        %v4434 = vrot.slane %v4406, %v4433
        %v4435 = vlaneseq
        %v4436 = vshrl.u32 %v4435, 7
        %v4437 = vsub.s32 0, %v4436
        %v4438 = vrot.slane %v4407, %v4437
        %v4439 = vlaneseq
        %v4440 = vshrl.u32 %v4439, 7
        %v4441 = vsub.s32 0, %v4440
        %v4442 = vrot.slane %v4408, %v4441
        %v4443 = vlaneseq
        %v4444 = vshrl.u32 %v4443, 7
        %v4445 = vsub.s32 0, %v4444
        %v4446 = vrot.slane %v4409, %v4445
        %v4447 = vlaneseq
        %v4448 = vshrl.u32 %v4447, 7
        %v4449 = vsub.s32 0, %v4448
        %v4450 = vrot.slane %v4410, %v4449
        %4451 = vset.pattern.permute.xlu0 0
        %4452 = vperm.xlu0 %4451, %v4422
        %v4453 = vpop.permute.xlu0 %4452
        %4455 = vset.pattern.permute.xlu0 0
        %4456 = vperm.xlu0 %4455, %v4426
        %v4457 = vpop.permute.xlu0 %4456
        %4459 = vset.pattern.permute.xlu0 0
        %4460 = vperm.xlu0 %4459, %v4430
        %v4461 = vpop.permute.xlu0 %4460
        %4463 = vset.pattern.permute.xlu0 0
        %4464 = vperm.xlu0 %4463, %v4434
        %v4465 = vpop.permute.xlu0 %4464
        %4467 = vset.pattern.permute.xlu0 0
        %4468 = vperm.xlu0 %4467, %v4438
        %v4469 = vpop.permute.xlu0 %4468
        %4471 = vset.pattern.permute.xlu0 0
        %4472 = vperm.xlu0 %4471, %v4442
        %v4473 = vpop.permute.xlu0 %4472
        %4475 = vset.pattern.permute.xlu0 0
        %4476 = vperm.xlu0 %4475, %v4446
        %v4477 = vpop.permute.xlu0 %4476
        %4479 = vset.pattern.permute.xlu0 0
        %4480 = vperm.xlu0 %4479, %v4450
        %v4481 = vpop.permute.xlu0 %4480
        %v4483 = vmul.f32 %v4453, %v2430
        %v4484 = vmul.f32 %v4453, %v2431
        %v4485 = vmul.f32 %v4457, %v2432
        %v4486 = vmul.f32 %v4457, %v2433
        %v4487 = vmul.f32 %v4461, %v2434
        %v4488 = vmul.f32 %v4461, %v2435
        %v4489 = vmul.f32 %v4465, %v2436
        %v4490 = vmul.f32 %v4465, %v2437
        %v4491 = vmul.f32 %v4469, %v2438
        %v4492 = vmul.f32 %v4469, %v2439
        %v4493 = vmul.f32 %v4473, %v2440
        %v4494 = vmul.f32 %v4473, %v2441
        %v4495 = vmul.f32 %v4477, %v2442
        %v4496 = vmul.f32 %v4477, %v2443
        %v4497 = vmul.f32 %v4481, %v2444
        %v4498 = vmul.f32 %v4481, %v2445
        %v4499 = vadd.f32 %v4386, %v4483
        %v4500 = vadd.f32 %v4387, %v4484
        %v4501 = vadd.f32 %v4388, %v4485
        %v4502 = vadd.f32 %v4389, %v4486
        %v4503 = vadd.f32 %v4390, %v4487
        %v4504 = vadd.f32 %v4391, %v4488
        %v4505 = vadd.f32 %v4392, %v4489
        %v4506 = vadd.f32 %v4393, %v4490
        %v4507 = vadd.f32 %v4394, %v4491
        %v4508 = vadd.f32 %v4395, %v4492
        %v4509 = vadd.f32 %v4396, %v4493
        %v4510 = vadd.f32 %v4397, %v4494
        %v4511 = vadd.f32 %v4398, %v4495
        %v4512 = vadd.f32 %v4399, %v4496
        %v4513 = vadd.f32 %v4400, %v4497
        %v4514 = vadd.f32 %v4401, %v4498
        %s4515 = scalar_lea.vmem %s5, 16
        %v4516 = vld [vmem:[%s4515] sm:$0x1]
        %v4517 = vld [vmem:[%s4515 + $0x1] sm:$0x1]
        %v4518 = vld [vmem:[%s4515 + $0x2] sm:$0x1]
        %v4519 = vld [vmem:[%s4515 + $0x3] sm:$0x1]
        %v4520 = vld [vmem:[%s4515 + $0x4] sm:$0x1]
        %v4521 = vld [vmem:[%s4515 + $0x5] sm:$0x1]
        %v4522 = vld [vmem:[%s4515 + $0x6] sm:$0x1]
        %v4523 = vld [vmem:[%s4515 + $0x7] sm:$0x1]
        %v4532 = vlaneseq
        %v4533 = vshrl.u32 %v4532, 7
        %v4534 = vsub.s32 0, %v4533
        %v4535 = vrot.slane %v4516, %v4534
        %v4536 = vlaneseq
        %v4537 = vshrl.u32 %v4536, 7
        %v4538 = vsub.s32 0, %v4537
        %v4539 = vrot.slane %v4517, %v4538
        %v4540 = vlaneseq
        %v4541 = vshrl.u32 %v4540, 7
        %v4542 = vsub.s32 0, %v4541
        %v4543 = vrot.slane %v4518, %v4542
        %v4544 = vlaneseq
        %v4545 = vshrl.u32 %v4544, 7
        %v4546 = vsub.s32 0, %v4545
        %v4547 = vrot.slane %v4519, %v4546
        %v4548 = vlaneseq
        %v4549 = vshrl.u32 %v4548, 7
        %v4550 = vsub.s32 0, %v4549
        %v4551 = vrot.slane %v4520, %v4550
        %v4552 = vlaneseq
        %v4553 = vshrl.u32 %v4552, 7
        %v4554 = vsub.s32 0, %v4553
        %v4555 = vrot.slane %v4521, %v4554
        %v4556 = vlaneseq
        %v4557 = vshrl.u32 %v4556, 7
        %v4558 = vsub.s32 0, %v4557
        %v4559 = vrot.slane %v4522, %v4558
        %v4560 = vlaneseq
        %v4561 = vshrl.u32 %v4560, 7
        %v4562 = vsub.s32 0, %v4561
        %v4563 = vrot.slane %v4523, %v4562
        %4564 = vset.pattern.permute.xlu0 0
        %4565 = vperm.xlu0 %4564, %v4535
        %v4566 = vpop.permute.xlu0 %4565
        %4568 = vset.pattern.permute.xlu0 0
        %4569 = vperm.xlu0 %4568, %v4539
        %v4570 = vpop.permute.xlu0 %4569
        %4572 = vset.pattern.permute.xlu0 0
        %4573 = vperm.xlu0 %4572, %v4543
        %v4574 = vpop.permute.xlu0 %4573
        %4576 = vset.pattern.permute.xlu0 0
        %4577 = vperm.xlu0 %4576, %v4547
        %v4578 = vpop.permute.xlu0 %4577
        %4580 = vset.pattern.permute.xlu0 0
        %4581 = vperm.xlu0 %4580, %v4551
        %v4582 = vpop.permute.xlu0 %4581
        %4584 = vset.pattern.permute.xlu0 0
        %4585 = vperm.xlu0 %4584, %v4555
        %v4586 = vpop.permute.xlu0 %4585
        %4588 = vset.pattern.permute.xlu0 0
        %4589 = vperm.xlu0 %4588, %v4559
        %v4590 = vpop.permute.xlu0 %4589
        %4592 = vset.pattern.permute.xlu0 0
        %4593 = vperm.xlu0 %4592, %v4563
        %v4594 = vpop.permute.xlu0 %4593
        %v4596 = vmul.f32 %v4566, %v4228
        %v4597 = vmul.f32 %v4566, %v4233
        %v4598 = vmul.f32 %v4570, %v4238
        %v4599 = vmul.f32 %v4570, %v4243
        %v4600 = vmul.f32 %v4574, %v4248
        %v4601 = vmul.f32 %v4574, %v4253
        %v4602 = vmul.f32 %v4578, %v4258
        %v4603 = vmul.f32 %v4578, %v4263
        %v4604 = vmul.f32 %v4582, %v4268
        %v4605 = vmul.f32 %v4582, %v4273
        %v4606 = vmul.f32 %v4586, %v4278
        %v4607 = vmul.f32 %v4586, %v4283
        %v4608 = vmul.f32 %v4590, %v4288
        %v4609 = vmul.f32 %v4590, %v4293
        %v4610 = vmul.f32 %v4594, %v4298
        %v4611 = vmul.f32 %v4594, %v4303
        %v4612 = vadd.f32 %v4499, %v4596
        %v4613 = vadd.f32 %v4500, %v4597
        %v4614 = vadd.f32 %v4501, %v4598
        %v4615 = vadd.f32 %v4502, %v4599
        %v4616 = vadd.f32 %v4503, %v4600
        %v4617 = vadd.f32 %v4504, %v4601
        %v4618 = vadd.f32 %v4505, %v4602
        %v4619 = vadd.f32 %v4506, %v4603
        %v4620 = vadd.f32 %v4507, %v4604
        %v4621 = vadd.f32 %v4508, %v4605
        %v4622 = vadd.f32 %v4509, %v4606
        %v4623 = vadd.f32 %v4510, %v4607
        %v4624 = vadd.f32 %v4511, %v4608
        %v4625 = vadd.f32 %v4512, %v4609
        %v4626 = vadd.f32 %v4513, %v4610
        %v4627 = vadd.f32 %v4514, %v4611
        %v4628 = vld [vmem:[%s6] sm:$0x1]
        %v4629 = vld [vmem:[%s6 + $0x1] sm:$0x1]
        %v4630 = vld [vmem:[%s6 + $0x2] sm:$0x1]
        %v4631 = vld [vmem:[%s6 + $0x3] sm:$0x1]
        %v4632 = vld [vmem:[%s6 + $0x4] sm:$0x1]
        %v4633 = vld [vmem:[%s6 + $0x5] sm:$0x1]
        %v4634 = vld [vmem:[%s6 + $0x6] sm:$0x1]
        %v4635 = vld [vmem:[%s6 + $0x7] sm:$0x1]
        %v4644 = vlaneseq
        %v4645 = vshrl.u32 %v4644, 7
        %v4646 = vsub.s32 0, %v4645
        %v4647 = vrot.slane %v4628, %v4646
        %v4648 = vlaneseq
        %v4649 = vshrl.u32 %v4648, 7
        %v4650 = vsub.s32 0, %v4649
        %v4651 = vrot.slane %v4629, %v4650
        %v4652 = vlaneseq
        %v4653 = vshrl.u32 %v4652, 7
        %v4654 = vsub.s32 0, %v4653
        %v4655 = vrot.slane %v4630, %v4654
        %v4656 = vlaneseq
        %v4657 = vshrl.u32 %v4656, 7
        %v4658 = vsub.s32 0, %v4657
        %v4659 = vrot.slane %v4631, %v4658
        %v4660 = vlaneseq
        %v4661 = vshrl.u32 %v4660, 7
        %v4662 = vsub.s32 0, %v4661
        %v4663 = vrot.slane %v4632, %v4662
        %v4664 = vlaneseq
        %v4665 = vshrl.u32 %v4664, 7
        %v4666 = vsub.s32 0, %v4665
        %v4667 = vrot.slane %v4633, %v4666
        %v4668 = vlaneseq
        %v4669 = vshrl.u32 %v4668, 7
        %v4670 = vsub.s32 0, %v4669
        %v4671 = vrot.slane %v4634, %v4670
        %v4672 = vlaneseq
        %v4673 = vshrl.u32 %v4672, 7
        %v4674 = vsub.s32 0, %v4673
        %v4675 = vrot.slane %v4635, %v4674
        %4676 = vset.pattern.permute.xlu0 0
        %4677 = vperm.xlu0 %4676, %v4647
        %v4678 = vpop.permute.xlu0 %4677
        %4680 = vset.pattern.permute.xlu0 0
        %4681 = vperm.xlu0 %4680, %v4651
        %v4682 = vpop.permute.xlu0 %4681
        %4684 = vset.pattern.permute.xlu0 0
        %4685 = vperm.xlu0 %4684, %v4655
        %v4686 = vpop.permute.xlu0 %4685
        %4688 = vset.pattern.permute.xlu0 0
        %4689 = vperm.xlu0 %4688, %v4659
        %v4690 = vpop.permute.xlu0 %4689
        %4692 = vset.pattern.permute.xlu0 0
        %4693 = vperm.xlu0 %4692, %v4663
        %v4694 = vpop.permute.xlu0 %4693
        %4696 = vset.pattern.permute.xlu0 0
        %4697 = vperm.xlu0 %4696, %v4667
        %v4698 = vpop.permute.xlu0 %4697
        %4700 = vset.pattern.permute.xlu0 0
        %4701 = vperm.xlu0 %4700, %v4671
        %v4702 = vpop.permute.xlu0 %4701
        %4704 = vset.pattern.permute.xlu0 0
        %4705 = vperm.xlu0 %4704, %v4675
        %v4706 = vpop.permute.xlu0 %4705
        %v4708 = vadd.f32 %v4612, %v4678
        %v4709 = vadd.f32 %v4613, %v4678
        %v4710 = vadd.f32 %v4614, %v4682
        %v4711 = vadd.f32 %v4615, %v4682
        %v4712 = vadd.f32 %v4616, %v4686
        %v4713 = vadd.f32 %v4617, %v4686
        %v4714 = vadd.f32 %v4618, %v4690
        %v4715 = vadd.f32 %v4619, %v4690
        %v4716 = vadd.f32 %v4620, %v4694
        %v4717 = vadd.f32 %v4621, %v4694
        %v4718 = vadd.f32 %v4622, %v4698
        %v4719 = vadd.f32 %v4623, %v4698
        %v4720 = vadd.f32 %v4624, %v4702
        %v4721 = vadd.f32 %v4625, %v4702
        %v4722 = vadd.f32 %v4626, %v4706
        %v4723 = vadd.f32 %v4627, %v4706
        %v4724 = vmax.f32 %v4708, 0.0
        %v4725 = vmax.f32 %v4709, 0.0
        %v4726 = vmax.f32 %v4710, 0.0
        %v4727 = vmax.f32 %v4711, 0.0
        %v4728 = vmax.f32 %v4712, 0.0
        %v4729 = vmax.f32 %v4713, 0.0
        %v4730 = vmax.f32 %v4714, 0.0
        %v4731 = vmax.f32 %v4715, 0.0
        %v4732 = vmax.f32 %v4716, 0.0
        %v4733 = vmax.f32 %v4717, 0.0
        %v4734 = vmax.f32 %v4718, 0.0
        %v4735 = vmax.f32 %v4719, 0.0
        %v4736 = vmax.f32 %v4720, 0.0
        %v4737 = vmax.f32 %v4721, 0.0
        %v4738 = vmax.f32 %v4722, 0.0
        %v4739 = vmax.f32 %v4723, 0.0
        %v4740 = vsel %vm2994, %v4724, 0.0
        %4741 = vadd.xlane.f32.xlu0 %v4740
        %v4742 = vpop.xlane.xlu0 %4741
        %v4743 = vsel %vm2994, %v4725, 0.0
        %4744 = vadd.xlane.f32.xlu0 %v4743
        %v4745 = vpop.xlane.xlu0 %4744
        %v4746 = vsel %vm2994, %v4726, 0.0
        %4747 = vadd.xlane.f32.xlu0 %v4746
        %v4748 = vpop.xlane.xlu0 %4747
        %v4749 = vsel %vm2994, %v4727, 0.0
        %4750 = vadd.xlane.f32.xlu0 %v4749
        %v4751 = vpop.xlane.xlu0 %4750
        %v4752 = vsel %vm2994, %v4728, 0.0
        %4753 = vadd.xlane.f32.xlu0 %v4752
        %v4754 = vpop.xlane.xlu0 %4753
        %v4755 = vsel %vm2994, %v4729, 0.0
        %4756 = vadd.xlane.f32.xlu0 %v4755
        %v4757 = vpop.xlane.xlu0 %4756
        %v4758 = vsel %vm2994, %v4730, 0.0
        %4759 = vadd.xlane.f32.xlu0 %v4758
        %v4760 = vpop.xlane.xlu0 %4759
        %v4761 = vsel %vm2994, %v4731, 0.0
        %4762 = vadd.xlane.f32.xlu0 %v4761
        %v4763 = vpop.xlane.xlu0 %4762
        %v4764 = vsel %vm2994, %v4732, 0.0
        %4765 = vadd.xlane.f32.xlu0 %v4764
        %v4766 = vpop.xlane.xlu0 %4765
        %v4767 = vsel %vm2994, %v4733, 0.0
        %4768 = vadd.xlane.f32.xlu0 %v4767
        %v4769 = vpop.xlane.xlu0 %4768
        %v4770 = vsel %vm2994, %v4734, 0.0
        %4771 = vadd.xlane.f32.xlu0 %v4770
        %v4772 = vpop.xlane.xlu0 %4771
        %v4773 = vsel %vm2994, %v4735, 0.0
        %4774 = vadd.xlane.f32.xlu0 %v4773
        %v4775 = vpop.xlane.xlu0 %4774
        %v4776 = vsel %vm2994, %v4736, 0.0
        %4777 = vadd.xlane.f32.xlu0 %v4776
        %v4778 = vpop.xlane.xlu0 %4777
        %v4779 = vsel %vm2994, %v4737, 0.0
        %4780 = vadd.xlane.f32.xlu0 %v4779
        %v4781 = vpop.xlane.xlu0 %4780
        %v4782 = vsel %vm2994, %v4738, 0.0
        %4783 = vadd.xlane.f32.xlu0 %v4782
        %v4784 = vpop.xlane.xlu0 %4783
        %v4785 = vsel %vm2994, %v4739, 0.0
        %4786 = vadd.xlane.f32.xlu0 %v4785
        %v4787 = vpop.xlane.xlu0 %4786
        %v4788 = vld [vmem:[%s10] sm:$0x1]
        %v4789 = vld [vmem:[%s10 + $0x1] sm:$0x1]
        %v4790 = vld [vmem:[%s10 + $0x2] sm:$0x1]
        %v4791 = vld [vmem:[%s10 + $0x3] sm:$0x1]
        %v4792 = vld [vmem:[%s10 + $0x4] sm:$0x1]
        %v4793 = vld [vmem:[%s10 + $0x5] sm:$0x1]
        %v4794 = vld [vmem:[%s10 + $0x6] sm:$0x1]
        %v4795 = vld [vmem:[%s10 + $0x7] sm:$0x1]
        %v4796 = vld [vmem:[%s9] sm:$0x1]
        %v4797 = vld [vmem:[%s9 + $0x1] sm:$0x1]
        %v4798 = vld [vmem:[%s9 + $0x2] sm:$0x1]
        %v4799 = vld [vmem:[%s9 + $0x3] sm:$0x1]
        %v4800 = vld [vmem:[%s9 + $0x4] sm:$0x1]
        %v4801 = vld [vmem:[%s9 + $0x5] sm:$0x1]
        %v4802 = vld [vmem:[%s9 + $0x6] sm:$0x1]
        %v4803 = vld [vmem:[%s9 + $0x7] sm:$0x1]
        %v4812 = vlaneseq
        %v4813 = vshrl.u32 %v4812, 7
        %v4814 = vsub.s32 0, %v4813
        %v4815 = vrot.slane %v4796, %v4814
        %v4816 = vlaneseq
        %v4817 = vshrl.u32 %v4816, 7
        %v4818 = vsub.s32 0, %v4817
        %v4819 = vrot.slane %v4797, %v4818
        %v4820 = vlaneseq
        %v4821 = vshrl.u32 %v4820, 7
        %v4822 = vsub.s32 0, %v4821
        %v4823 = vrot.slane %v4798, %v4822
        %v4824 = vlaneseq
        %v4825 = vshrl.u32 %v4824, 7
        %v4826 = vsub.s32 0, %v4825
        %v4827 = vrot.slane %v4799, %v4826
        %v4828 = vlaneseq
        %v4829 = vshrl.u32 %v4828, 7
        %v4830 = vsub.s32 0, %v4829
        %v4831 = vrot.slane %v4800, %v4830
        %v4832 = vlaneseq
        %v4833 = vshrl.u32 %v4832, 7
        %v4834 = vsub.s32 0, %v4833
        %v4835 = vrot.slane %v4801, %v4834
        %v4836 = vlaneseq
        %v4837 = vshrl.u32 %v4836, 7
        %v4838 = vsub.s32 0, %v4837
        %v4839 = vrot.slane %v4802, %v4838
        %v4840 = vlaneseq
        %v4841 = vshrl.u32 %v4840, 7
        %v4842 = vsub.s32 0, %v4841
        %v4843 = vrot.slane %v4803, %v4842
        %v4852 = vmul.f32 %v4815, %v4742
        %v4853 = vmul.f32 %v4815, %v4745
        %v4854 = vmul.f32 %v4819, %v4742
        %v4855 = vmul.f32 %v4819, %v4745
        %v4856 = vmul.f32 %v4823, %v4742
        %v4857 = vmul.f32 %v4823, %v4745
        %v4858 = vmul.f32 %v4827, %v4742
        %v4859 = vmul.f32 %v4827, %v4745
        %v4860 = vmul.f32 %v4831, %v4742
        %v4861 = vmul.f32 %v4831, %v4745
        %v4862 = vmul.f32 %v4835, %v4742
        %v4863 = vmul.f32 %v4835, %v4745
        %v4864 = vmul.f32 %v4839, %v4742
        %v4865 = vmul.f32 %v4839, %v4745
        %v4866 = vmul.f32 %v4843, %v4742
        %v4867 = vmul.f32 %v4843, %v4745
        %v4876 = vlaneseq
        %v4877 = vshrl.u32 %v4876, 7
        %v4878 = vsub.s32 0, %v4877
        %v4879 = vrot.slane %v4788, %v4878
        %v4880 = vlaneseq
        %v4881 = vshrl.u32 %v4880, 7
        %v4882 = vsub.s32 0, %v4881
        %v4883 = vrot.slane %v4789, %v4882
        %v4884 = vlaneseq
        %v4885 = vshrl.u32 %v4884, 7
        %v4886 = vsub.s32 0, %v4885
        %v4887 = vrot.slane %v4790, %v4886
        %v4888 = vlaneseq
        %v4889 = vshrl.u32 %v4888, 7
        %v4890 = vsub.s32 0, %v4889
        %v4891 = vrot.slane %v4791, %v4890
        %v4892 = vlaneseq
        %v4893 = vshrl.u32 %v4892, 7
        %v4894 = vsub.s32 0, %v4893
        %v4895 = vrot.slane %v4792, %v4894
        %v4896 = vlaneseq
        %v4897 = vshrl.u32 %v4896, 7
        %v4898 = vsub.s32 0, %v4897
        %v4899 = vrot.slane %v4793, %v4898
        %v4900 = vlaneseq
        %v4901 = vshrl.u32 %v4900, 7
        %v4902 = vsub.s32 0, %v4901
        %v4903 = vrot.slane %v4794, %v4902
        %v4904 = vlaneseq
        %v4905 = vshrl.u32 %v4904, 7
        %v4906 = vsub.s32 0, %v4905
        %v4907 = vrot.slane %v4795, %v4906
        %v4916 = vadd.f32 %v4879, %v4852
        %v4917 = vadd.f32 %v4879, %v4853
        %v4918 = vadd.f32 %v4883, %v4854
        %v4919 = vadd.f32 %v4883, %v4855
        %v4920 = vadd.f32 %v4887, %v4856
        %v4921 = vadd.f32 %v4887, %v4857
        %v4922 = vadd.f32 %v4891, %v4858
        %v4923 = vadd.f32 %v4891, %v4859
        %v4924 = vadd.f32 %v4895, %v4860
        %v4925 = vadd.f32 %v4895, %v4861
        %v4926 = vadd.f32 %v4899, %v4862
        %v4927 = vadd.f32 %v4899, %v4863
        %v4928 = vadd.f32 %v4903, %v4864
        %v4929 = vadd.f32 %v4903, %v4865
        %v4930 = vadd.f32 %v4907, %v4866
        %v4931 = vadd.f32 %v4907, %v4867
        %s4932 = scalar_lea.vmem %s9, 8
        %v4933 = vld [vmem:[%s4932] sm:$0x1]
        %v4934 = vld [vmem:[%s4932 + $0x1] sm:$0x1]
        %v4935 = vld [vmem:[%s4932 + $0x2] sm:$0x1]
        %v4936 = vld [vmem:[%s4932 + $0x3] sm:$0x1]
        %v4937 = vld [vmem:[%s4932 + $0x4] sm:$0x1]
        %v4938 = vld [vmem:[%s4932 + $0x5] sm:$0x1]
        %v4939 = vld [vmem:[%s4932 + $0x6] sm:$0x1]
        %v4940 = vld [vmem:[%s4932 + $0x7] sm:$0x1]
        %v4949 = vlaneseq
        %v4950 = vshrl.u32 %v4949, 7
        %v4951 = vsub.s32 0, %v4950
        %v4952 = vrot.slane %v4933, %v4951
        %v4953 = vlaneseq
        %v4954 = vshrl.u32 %v4953, 7
        %v4955 = vsub.s32 0, %v4954
        %v4956 = vrot.slane %v4934, %v4955
        %v4957 = vlaneseq
        %v4958 = vshrl.u32 %v4957, 7
        %v4959 = vsub.s32 0, %v4958
        %v4960 = vrot.slane %v4935, %v4959
        %v4961 = vlaneseq
        %v4962 = vshrl.u32 %v4961, 7
        %v4963 = vsub.s32 0, %v4962
        %v4964 = vrot.slane %v4936, %v4963
        %v4965 = vlaneseq
        %v4966 = vshrl.u32 %v4965, 7
        %v4967 = vsub.s32 0, %v4966
        %v4968 = vrot.slane %v4937, %v4967
        %v4969 = vlaneseq
        %v4970 = vshrl.u32 %v4969, 7
        %v4971 = vsub.s32 0, %v4970
        %v4972 = vrot.slane %v4938, %v4971
        %v4973 = vlaneseq
        %v4974 = vshrl.u32 %v4973, 7
        %v4975 = vsub.s32 0, %v4974
        %v4976 = vrot.slane %v4939, %v4975
        %v4977 = vlaneseq
        %v4978 = vshrl.u32 %v4977, 7
        %v4979 = vsub.s32 0, %v4978
        %v4980 = vrot.slane %v4940, %v4979
        %v4989 = vmul.f32 %v4952, %v4748
        %v4990 = vmul.f32 %v4952, %v4751
        %v4991 = vmul.f32 %v4956, %v4748
        %v4992 = vmul.f32 %v4956, %v4751
        %v4993 = vmul.f32 %v4960, %v4748
        %v4994 = vmul.f32 %v4960, %v4751
        %v4995 = vmul.f32 %v4964, %v4748
        %v4996 = vmul.f32 %v4964, %v4751
        %v4997 = vmul.f32 %v4968, %v4748
        %v4998 = vmul.f32 %v4968, %v4751
        %v4999 = vmul.f32 %v4972, %v4748
        %v5000 = vmul.f32 %v4972, %v4751
        %v5001 = vmul.f32 %v4976, %v4748
        %v5002 = vmul.f32 %v4976, %v4751
        %v5003 = vmul.f32 %v4980, %v4748
        %v5004 = vmul.f32 %v4980, %v4751
        %v5005 = vadd.f32 %v4916, %v4989
        %v5006 = vadd.f32 %v4917, %v4990
        %v5007 = vadd.f32 %v4918, %v4991
        %v5008 = vadd.f32 %v4919, %v4992
        %v5009 = vadd.f32 %v4920, %v4993
        %v5010 = vadd.f32 %v4921, %v4994
        %v5011 = vadd.f32 %v4922, %v4995
        %v5012 = vadd.f32 %v4923, %v4996
        %v5013 = vadd.f32 %v4924, %v4997
        %v5014 = vadd.f32 %v4925, %v4998
        %v5015 = vadd.f32 %v4926, %v4999
        %v5016 = vadd.f32 %v4927, %v5000
        %v5017 = vadd.f32 %v4928, %v5001
        %v5018 = vadd.f32 %v4929, %v5002
        %v5019 = vadd.f32 %v4930, %v5003
        %v5020 = vadd.f32 %v4931, %v5004
        %s5021 = scalar_lea.vmem %s9, 16
        %v5022 = vld [vmem:[%s5021] sm:$0x1]
        %v5023 = vld [vmem:[%s5021 + $0x1] sm:$0x1]
        %v5024 = vld [vmem:[%s5021 + $0x2] sm:$0x1]
        %v5025 = vld [vmem:[%s5021 + $0x3] sm:$0x1]
        %v5026 = vld [vmem:[%s5021 + $0x4] sm:$0x1]
        %v5027 = vld [vmem:[%s5021 + $0x5] sm:$0x1]
        %v5028 = vld [vmem:[%s5021 + $0x6] sm:$0x1]
        %v5029 = vld [vmem:[%s5021 + $0x7] sm:$0x1]
        %v5038 = vlaneseq
        %v5039 = vshrl.u32 %v5038, 7
        %v5040 = vsub.s32 0, %v5039
        %v5041 = vrot.slane %v5022, %v5040
        %v5042 = vlaneseq
        %v5043 = vshrl.u32 %v5042, 7
        %v5044 = vsub.s32 0, %v5043
        %v5045 = vrot.slane %v5023, %v5044
        %v5046 = vlaneseq
        %v5047 = vshrl.u32 %v5046, 7
        %v5048 = vsub.s32 0, %v5047
        %v5049 = vrot.slane %v5024, %v5048
        %v5050 = vlaneseq
        %v5051 = vshrl.u32 %v5050, 7
        %v5052 = vsub.s32 0, %v5051
        %v5053 = vrot.slane %v5025, %v5052
        %v5054 = vlaneseq
        %v5055 = vshrl.u32 %v5054, 7
        %v5056 = vsub.s32 0, %v5055
        %v5057 = vrot.slane %v5026, %v5056
        %v5058 = vlaneseq
        %v5059 = vshrl.u32 %v5058, 7
        %v5060 = vsub.s32 0, %v5059
        %v5061 = vrot.slane %v5027, %v5060
        %v5062 = vlaneseq
        %v5063 = vshrl.u32 %v5062, 7
        %v5064 = vsub.s32 0, %v5063
        %v5065 = vrot.slane %v5028, %v5064
        %v5066 = vlaneseq
        %v5067 = vshrl.u32 %v5066, 7
        %v5068 = vsub.s32 0, %v5067
        %v5069 = vrot.slane %v5029, %v5068
        %v5078 = vmul.f32 %v5041, %v4754
        %v5079 = vmul.f32 %v5041, %v4757
        %v5080 = vmul.f32 %v5045, %v4754
        %v5081 = vmul.f32 %v5045, %v4757
        %v5082 = vmul.f32 %v5049, %v4754
        %v5083 = vmul.f32 %v5049, %v4757
        %v5084 = vmul.f32 %v5053, %v4754
        %v5085 = vmul.f32 %v5053, %v4757
        %v5086 = vmul.f32 %v5057, %v4754
        %v5087 = vmul.f32 %v5057, %v4757
        %v5088 = vmul.f32 %v5061, %v4754
        %v5089 = vmul.f32 %v5061, %v4757
        %v5090 = vmul.f32 %v5065, %v4754
        %v5091 = vmul.f32 %v5065, %v4757
        %v5092 = vmul.f32 %v5069, %v4754
        %v5093 = vmul.f32 %v5069, %v4757
        %v5094 = vadd.f32 %v5005, %v5078
        %v5095 = vadd.f32 %v5006, %v5079
        %v5096 = vadd.f32 %v5007, %v5080
        %v5097 = vadd.f32 %v5008, %v5081
        %v5098 = vadd.f32 %v5009, %v5082
        %v5099 = vadd.f32 %v5010, %v5083
        %v5100 = vadd.f32 %v5011, %v5084
        %v5101 = vadd.f32 %v5012, %v5085
        %v5102 = vadd.f32 %v5013, %v5086
        %v5103 = vadd.f32 %v5014, %v5087
        %v5104 = vadd.f32 %v5015, %v5088
        %v5105 = vadd.f32 %v5016, %v5089
        %v5106 = vadd.f32 %v5017, %v5090
        %v5107 = vadd.f32 %v5018, %v5091
        %v5108 = vadd.f32 %v5019, %v5092
        %v5109 = vadd.f32 %v5020, %v5093
        %s5110 = scalar_lea.vmem %s9, 24
        %v5111 = vld [vmem:[%s5110] sm:$0x1]
        %v5112 = vld [vmem:[%s5110 + $0x1] sm:$0x1]
        %v5113 = vld [vmem:[%s5110 + $0x2] sm:$0x1]
        %v5114 = vld [vmem:[%s5110 + $0x3] sm:$0x1]
        %v5115 = vld [vmem:[%s5110 + $0x4] sm:$0x1]
        %v5116 = vld [vmem:[%s5110 + $0x5] sm:$0x1]
        %v5117 = vld [vmem:[%s5110 + $0x6] sm:$0x1]
        %v5118 = vld [vmem:[%s5110 + $0x7] sm:$0x1]
        %v5127 = vlaneseq
        %v5128 = vshrl.u32 %v5127, 7
        %v5129 = vsub.s32 0, %v5128
        %v5130 = vrot.slane %v5111, %v5129
        %v5131 = vlaneseq
        %v5132 = vshrl.u32 %v5131, 7
        %v5133 = vsub.s32 0, %v5132
        %v5134 = vrot.slane %v5112, %v5133
        %v5135 = vlaneseq
        %v5136 = vshrl.u32 %v5135, 7
        %v5137 = vsub.s32 0, %v5136
        %v5138 = vrot.slane %v5113, %v5137
        %v5139 = vlaneseq
        %v5140 = vshrl.u32 %v5139, 7
        %v5141 = vsub.s32 0, %v5140
        %v5142 = vrot.slane %v5114, %v5141
        %v5143 = vlaneseq
        %v5144 = vshrl.u32 %v5143, 7
        %v5145 = vsub.s32 0, %v5144
        %v5146 = vrot.slane %v5115, %v5145
        %v5147 = vlaneseq
        %v5148 = vshrl.u32 %v5147, 7
        %v5149 = vsub.s32 0, %v5148
        %v5150 = vrot.slane %v5116, %v5149
        %v5151 = vlaneseq
        %v5152 = vshrl.u32 %v5151, 7
        %v5153 = vsub.s32 0, %v5152
        %v5154 = vrot.slane %v5117, %v5153
        %v5155 = vlaneseq
        %v5156 = vshrl.u32 %v5155, 7
        %v5157 = vsub.s32 0, %v5156
        %v5158 = vrot.slane %v5118, %v5157
        %v5167 = vmul.f32 %v5130, %v4760
        %v5168 = vmul.f32 %v5130, %v4763
        %v5169 = vmul.f32 %v5134, %v4760
        %v5170 = vmul.f32 %v5134, %v4763
        %v5171 = vmul.f32 %v5138, %v4760
        %v5172 = vmul.f32 %v5138, %v4763
        %v5173 = vmul.f32 %v5142, %v4760
        %v5174 = vmul.f32 %v5142, %v4763
        %v5175 = vmul.f32 %v5146, %v4760
        %v5176 = vmul.f32 %v5146, %v4763
        %v5177 = vmul.f32 %v5150, %v4760
        %v5178 = vmul.f32 %v5150, %v4763
        %v5179 = vmul.f32 %v5154, %v4760
        %v5180 = vmul.f32 %v5154, %v4763
        %v5181 = vmul.f32 %v5158, %v4760
        %v5182 = vmul.f32 %v5158, %v4763
        %v5183 = vadd.f32 %v5094, %v5167
        %v5184 = vadd.f32 %v5095, %v5168
        %v5185 = vadd.f32 %v5096, %v5169
        %v5186 = vadd.f32 %v5097, %v5170
        %v5187 = vadd.f32 %v5098, %v5171
        %v5188 = vadd.f32 %v5099, %v5172
        %v5189 = vadd.f32 %v5100, %v5173
        %v5190 = vadd.f32 %v5101, %v5174
        %v5191 = vadd.f32 %v5102, %v5175
        %v5192 = vadd.f32 %v5103, %v5176
        %v5193 = vadd.f32 %v5104, %v5177
        %v5194 = vadd.f32 %v5105, %v5178
        %v5195 = vadd.f32 %v5106, %v5179
        %v5196 = vadd.f32 %v5107, %v5180
        %v5197 = vadd.f32 %v5108, %v5181
        %v5198 = vadd.f32 %v5109, %v5182
        %s5199 = scalar_lea.vmem %s9, 32
        %v5200 = vld [vmem:[%s5199] sm:$0x1]
        %v5201 = vld [vmem:[%s5199 + $0x1] sm:$0x1]
        %v5202 = vld [vmem:[%s5199 + $0x2] sm:$0x1]
        %v5203 = vld [vmem:[%s5199 + $0x3] sm:$0x1]
        %v5204 = vld [vmem:[%s5199 + $0x4] sm:$0x1]
        %v5205 = vld [vmem:[%s5199 + $0x5] sm:$0x1]
        %v5206 = vld [vmem:[%s5199 + $0x6] sm:$0x1]
        %v5207 = vld [vmem:[%s5199 + $0x7] sm:$0x1]
        %v5216 = vlaneseq
        %v5217 = vshrl.u32 %v5216, 7
        %v5218 = vsub.s32 0, %v5217
        %v5219 = vrot.slane %v5200, %v5218
        %v5220 = vlaneseq
        %v5221 = vshrl.u32 %v5220, 7
        %v5222 = vsub.s32 0, %v5221
        %v5223 = vrot.slane %v5201, %v5222
        %v5224 = vlaneseq
        %v5225 = vshrl.u32 %v5224, 7
        %v5226 = vsub.s32 0, %v5225
        %v5227 = vrot.slane %v5202, %v5226
        %v5228 = vlaneseq
        %v5229 = vshrl.u32 %v5228, 7
        %v5230 = vsub.s32 0, %v5229
        %v5231 = vrot.slane %v5203, %v5230
        %v5232 = vlaneseq
        %v5233 = vshrl.u32 %v5232, 7
        %v5234 = vsub.s32 0, %v5233
        %v5235 = vrot.slane %v5204, %v5234
        %v5236 = vlaneseq
        %v5237 = vshrl.u32 %v5236, 7
        %v5238 = vsub.s32 0, %v5237
        %v5239 = vrot.slane %v5205, %v5238
        %v5240 = vlaneseq
        %v5241 = vshrl.u32 %v5240, 7
        %v5242 = vsub.s32 0, %v5241
        %v5243 = vrot.slane %v5206, %v5242
        %v5244 = vlaneseq
        %v5245 = vshrl.u32 %v5244, 7
        %v5246 = vsub.s32 0, %v5245
        %v5247 = vrot.slane %v5207, %v5246
        %v5256 = vmul.f32 %v5219, %v4766
        %v5257 = vmul.f32 %v5219, %v4769
        %v5258 = vmul.f32 %v5223, %v4766
        %v5259 = vmul.f32 %v5223, %v4769
        %v5260 = vmul.f32 %v5227, %v4766
        %v5261 = vmul.f32 %v5227, %v4769
        %v5262 = vmul.f32 %v5231, %v4766
        %v5263 = vmul.f32 %v5231, %v4769
        %v5264 = vmul.f32 %v5235, %v4766
        %v5265 = vmul.f32 %v5235, %v4769
        %v5266 = vmul.f32 %v5239, %v4766
        %v5267 = vmul.f32 %v5239, %v4769
        %v5268 = vmul.f32 %v5243, %v4766
        %v5269 = vmul.f32 %v5243, %v4769
        %v5270 = vmul.f32 %v5247, %v4766
        %v5271 = vmul.f32 %v5247, %v4769
        %v5272 = vadd.f32 %v5183, %v5256
        %v5273 = vadd.f32 %v5184, %v5257
        %v5274 = vadd.f32 %v5185, %v5258
        %v5275 = vadd.f32 %v5186, %v5259
        %v5276 = vadd.f32 %v5187, %v5260
        %v5277 = vadd.f32 %v5188, %v5261
        %v5278 = vadd.f32 %v5189, %v5262
        %v5279 = vadd.f32 %v5190, %v5263
        %v5280 = vadd.f32 %v5191, %v5264
        %v5281 = vadd.f32 %v5192, %v5265
        %v5282 = vadd.f32 %v5193, %v5266
        %v5283 = vadd.f32 %v5194, %v5267
        %v5284 = vadd.f32 %v5195, %v5268
        %v5285 = vadd.f32 %v5196, %v5269
        %v5286 = vadd.f32 %v5197, %v5270
        %v5287 = vadd.f32 %v5198, %v5271
        %s5288 = scalar_lea.vmem %s9, 40
        %v5289 = vld [vmem:[%s5288] sm:$0x1]
        %v5290 = vld [vmem:[%s5288 + $0x1] sm:$0x1]
        %v5291 = vld [vmem:[%s5288 + $0x2] sm:$0x1]
        %v5292 = vld [vmem:[%s5288 + $0x3] sm:$0x1]
        %v5293 = vld [vmem:[%s5288 + $0x4] sm:$0x1]
        %v5294 = vld [vmem:[%s5288 + $0x5] sm:$0x1]
        %v5295 = vld [vmem:[%s5288 + $0x6] sm:$0x1]
        %v5296 = vld [vmem:[%s5288 + $0x7] sm:$0x1]
        %v5305 = vlaneseq
        %v5306 = vshrl.u32 %v5305, 7
        %v5307 = vsub.s32 0, %v5306
        %v5308 = vrot.slane %v5289, %v5307
        %v5309 = vlaneseq
        %v5310 = vshrl.u32 %v5309, 7
        %v5311 = vsub.s32 0, %v5310
        %v5312 = vrot.slane %v5290, %v5311
        %v5313 = vlaneseq
        %v5314 = vshrl.u32 %v5313, 7
        %v5315 = vsub.s32 0, %v5314
        %v5316 = vrot.slane %v5291, %v5315
        %v5317 = vlaneseq
        %v5318 = vshrl.u32 %v5317, 7
        %v5319 = vsub.s32 0, %v5318
        %v5320 = vrot.slane %v5292, %v5319
        %v5321 = vlaneseq
        %v5322 = vshrl.u32 %v5321, 7
        %v5323 = vsub.s32 0, %v5322
        %v5324 = vrot.slane %v5293, %v5323
        %v5325 = vlaneseq
        %v5326 = vshrl.u32 %v5325, 7
        %v5327 = vsub.s32 0, %v5326
        %v5328 = vrot.slane %v5294, %v5327
        %v5329 = vlaneseq
        %v5330 = vshrl.u32 %v5329, 7
        %v5331 = vsub.s32 0, %v5330
        %v5332 = vrot.slane %v5295, %v5331
        %v5333 = vlaneseq
        %v5334 = vshrl.u32 %v5333, 7
        %v5335 = vsub.s32 0, %v5334
        %v5336 = vrot.slane %v5296, %v5335
        %v5345 = vmul.f32 %v5308, %v4772
        %v5346 = vmul.f32 %v5308, %v4775
        %v5347 = vmul.f32 %v5312, %v4772
        %v5348 = vmul.f32 %v5312, %v4775
        %v5349 = vmul.f32 %v5316, %v4772
        %v5350 = vmul.f32 %v5316, %v4775
        %v5351 = vmul.f32 %v5320, %v4772
        %v5352 = vmul.f32 %v5320, %v4775
        %v5353 = vmul.f32 %v5324, %v4772
        %v5354 = vmul.f32 %v5324, %v4775
        %v5355 = vmul.f32 %v5328, %v4772
        %v5356 = vmul.f32 %v5328, %v4775
        %v5357 = vmul.f32 %v5332, %v4772
        %v5358 = vmul.f32 %v5332, %v4775
        %v5359 = vmul.f32 %v5336, %v4772
        %v5360 = vmul.f32 %v5336, %v4775
        %v5361 = vadd.f32 %v5272, %v5345
        %v5362 = vadd.f32 %v5273, %v5346
        %v5363 = vadd.f32 %v5274, %v5347
        %v5364 = vadd.f32 %v5275, %v5348
        %v5365 = vadd.f32 %v5276, %v5349
        %v5366 = vadd.f32 %v5277, %v5350
        %v5367 = vadd.f32 %v5278, %v5351
        %v5368 = vadd.f32 %v5279, %v5352
        %v5369 = vadd.f32 %v5280, %v5353
        %v5370 = vadd.f32 %v5281, %v5354
        %v5371 = vadd.f32 %v5282, %v5355
        %v5372 = vadd.f32 %v5283, %v5356
        %v5373 = vadd.f32 %v5284, %v5357
        %v5374 = vadd.f32 %v5285, %v5358
        %v5375 = vadd.f32 %v5286, %v5359
        %v5376 = vadd.f32 %v5287, %v5360
        %s5377 = scalar_lea.vmem %s9, 48
        %v5378 = vld [vmem:[%s5377] sm:$0x1]
        %v5379 = vld [vmem:[%s5377 + $0x1] sm:$0x1]
        %v5380 = vld [vmem:[%s5377 + $0x2] sm:$0x1]
        %v5381 = vld [vmem:[%s5377 + $0x3] sm:$0x1]
        %v5382 = vld [vmem:[%s5377 + $0x4] sm:$0x1]
        %v5383 = vld [vmem:[%s5377 + $0x5] sm:$0x1]
        %v5384 = vld [vmem:[%s5377 + $0x6] sm:$0x1]
        %v5385 = vld [vmem:[%s5377 + $0x7] sm:$0x1]
        %v5394 = vlaneseq
        %v5395 = vshrl.u32 %v5394, 7
        %v5396 = vsub.s32 0, %v5395
        %v5397 = vrot.slane %v5378, %v5396
        %v5398 = vlaneseq
        %v5399 = vshrl.u32 %v5398, 7
        %v5400 = vsub.s32 0, %v5399
        %v5401 = vrot.slane %v5379, %v5400
        %v5402 = vlaneseq
        %v5403 = vshrl.u32 %v5402, 7
        %v5404 = vsub.s32 0, %v5403
        %v5405 = vrot.slane %v5380, %v5404
        %v5406 = vlaneseq
        %v5407 = vshrl.u32 %v5406, 7
        %v5408 = vsub.s32 0, %v5407
        %v5409 = vrot.slane %v5381, %v5408
        %v5410 = vlaneseq
        %v5411 = vshrl.u32 %v5410, 7
        %v5412 = vsub.s32 0, %v5411
        %v5413 = vrot.slane %v5382, %v5412
        %v5414 = vlaneseq
        %v5415 = vshrl.u32 %v5414, 7
        %v5416 = vsub.s32 0, %v5415
        %v5417 = vrot.slane %v5383, %v5416
        %v5418 = vlaneseq
        %v5419 = vshrl.u32 %v5418, 7
        %v5420 = vsub.s32 0, %v5419
        %v5421 = vrot.slane %v5384, %v5420
        %v5422 = vlaneseq
        %v5423 = vshrl.u32 %v5422, 7
        %v5424 = vsub.s32 0, %v5423
        %v5425 = vrot.slane %v5385, %v5424
        %v5434 = vmul.f32 %v5397, %v4778
        %v5435 = vmul.f32 %v5397, %v4781
        %v5436 = vmul.f32 %v5401, %v4778
        %v5437 = vmul.f32 %v5401, %v4781
        %v5438 = vmul.f32 %v5405, %v4778
        %v5439 = vmul.f32 %v5405, %v4781
        %v5440 = vmul.f32 %v5409, %v4778
        %v5441 = vmul.f32 %v5409, %v4781
        %v5442 = vmul.f32 %v5413, %v4778
        %v5443 = vmul.f32 %v5413, %v4781
        %v5444 = vmul.f32 %v5417, %v4778
        %v5445 = vmul.f32 %v5417, %v4781
        %v5446 = vmul.f32 %v5421, %v4778
        %v5447 = vmul.f32 %v5421, %v4781
        %v5448 = vmul.f32 %v5425, %v4778
        %v5449 = vmul.f32 %v5425, %v4781
        %v5450 = vadd.f32 %v5361, %v5434
        %v5451 = vadd.f32 %v5362, %v5435
        %v5452 = vadd.f32 %v5363, %v5436
        %v5453 = vadd.f32 %v5364, %v5437
        %v5454 = vadd.f32 %v5365, %v5438
        %v5455 = vadd.f32 %v5366, %v5439
        %v5456 = vadd.f32 %v5367, %v5440
        %v5457 = vadd.f32 %v5368, %v5441
        %v5458 = vadd.f32 %v5369, %v5442
        %v5459 = vadd.f32 %v5370, %v5443
        %v5460 = vadd.f32 %v5371, %v5444
        %v5461 = vadd.f32 %v5372, %v5445
        %v5462 = vadd.f32 %v5373, %v5446
        %v5463 = vadd.f32 %v5374, %v5447
        %v5464 = vadd.f32 %v5375, %v5448
        %v5465 = vadd.f32 %v5376, %v5449
        %s5466 = scalar_lea.vmem %s9, 56
        %v5467 = vld [vmem:[%s5466] sm:$0x1]
        %v5468 = vld [vmem:[%s5466 + $0x1] sm:$0x1]
        %v5469 = vld [vmem:[%s5466 + $0x2] sm:$0x1]
        %v5470 = vld [vmem:[%s5466 + $0x3] sm:$0x1]
        %v5471 = vld [vmem:[%s5466 + $0x4] sm:$0x1]
        %v5472 = vld [vmem:[%s5466 + $0x5] sm:$0x1]
        %v5473 = vld [vmem:[%s5466 + $0x6] sm:$0x1]
        %v5474 = vld [vmem:[%s5466 + $0x7] sm:$0x1]
        %v5483 = vlaneseq
        %v5484 = vshrl.u32 %v5483, 7
        %v5485 = vsub.s32 0, %v5484
        %v5486 = vrot.slane %v5467, %v5485
        %v5487 = vlaneseq
        %v5488 = vshrl.u32 %v5487, 7
        %v5489 = vsub.s32 0, %v5488
        %v5490 = vrot.slane %v5468, %v5489
        %v5491 = vlaneseq
        %v5492 = vshrl.u32 %v5491, 7
        %v5493 = vsub.s32 0, %v5492
        %v5494 = vrot.slane %v5469, %v5493
        %v5495 = vlaneseq
        %v5496 = vshrl.u32 %v5495, 7
        %v5497 = vsub.s32 0, %v5496
        %v5498 = vrot.slane %v5470, %v5497
        %v5499 = vlaneseq
        %v5500 = vshrl.u32 %v5499, 7
        %v5501 = vsub.s32 0, %v5500
        %v5502 = vrot.slane %v5471, %v5501
        %v5503 = vlaneseq
        %v5504 = vshrl.u32 %v5503, 7
        %v5505 = vsub.s32 0, %v5504
        %v5506 = vrot.slane %v5472, %v5505
        %v5507 = vlaneseq
        %v5508 = vshrl.u32 %v5507, 7
        %v5509 = vsub.s32 0, %v5508
        %v5510 = vrot.slane %v5473, %v5509
        %v5511 = vlaneseq
        %v5512 = vshrl.u32 %v5511, 7
        %v5513 = vsub.s32 0, %v5512
        %v5514 = vrot.slane %v5474, %v5513
        %v5523 = vmul.f32 %v5486, %v4784
        %v5524 = vmul.f32 %v5486, %v4787
        %v5525 = vmul.f32 %v5490, %v4784
        %v5526 = vmul.f32 %v5490, %v4787
        %v5527 = vmul.f32 %v5494, %v4784
        %v5528 = vmul.f32 %v5494, %v4787
        %v5529 = vmul.f32 %v5498, %v4784
        %v5530 = vmul.f32 %v5498, %v4787
        %v5531 = vmul.f32 %v5502, %v4784
        %v5532 = vmul.f32 %v5502, %v4787
        %v5533 = vmul.f32 %v5506, %v4784
        %v5534 = vmul.f32 %v5506, %v4787
        %v5535 = vmul.f32 %v5510, %v4784
        %v5536 = vmul.f32 %v5510, %v4787
        %v5537 = vmul.f32 %v5514, %v4784
        %v5538 = vmul.f32 %v5514, %v4787
        %v5539 = vadd.f32 %v5450, %v5523
        %v5540 = vadd.f32 %v5451, %v5524
        %v5541 = vadd.f32 %v5452, %v5525
        %v5542 = vadd.f32 %v5453, %v5526
        %v5543 = vadd.f32 %v5454, %v5527
        %v5544 = vadd.f32 %v5455, %v5528
        %v5545 = vadd.f32 %v5456, %v5529
        %v5546 = vadd.f32 %v5457, %v5530
        %v5547 = vadd.f32 %v5458, %v5531
        %v5548 = vadd.f32 %v5459, %v5532
        %v5549 = vadd.f32 %v5460, %v5533
        %v5550 = vadd.f32 %v5461, %v5534
        %v5551 = vadd.f32 %v5462, %v5535
        %v5552 = vadd.f32 %v5463, %v5536
        %v5553 = vadd.f32 %v5464, %v5537
        %v5554 = vadd.f32 %v5465, %v5538
        %v5555 = vmax.f32 %v5539, 0.0
        %v5556 = vmax.f32 %v5540, 0.0
        %v5557 = vmax.f32 %v5541, 0.0
        %v5558 = vmax.f32 %v5542, 0.0
        %v5559 = vmax.f32 %v5543, 0.0
        %v5560 = vmax.f32 %v5544, 0.0
        %v5561 = vmax.f32 %v5545, 0.0
        %v5562 = vmax.f32 %v5546, 0.0
        %v5563 = vmax.f32 %v5547, 0.0
        %v5564 = vmax.f32 %v5548, 0.0
        %v5565 = vmax.f32 %v5549, 0.0
        %v5566 = vmax.f32 %v5550, 0.0
        %v5567 = vmax.f32 %v5551, 0.0
        %v5568 = vmax.f32 %v5552, 0.0
        %v5569 = vmax.f32 %v5553, 0.0
        %v5570 = vmax.f32 %v5554, 0.0
        %5572 = vset.pattern.permute.xlu0 0
        %5573 = vperm.xlu0 %5572, %v5555
        %v5574 = vpop.permute.xlu0 %5573
        %5577 = vset.pattern.permute.xlu0 0
        %5578 = vperm.xlu0 %5577, %v5556
        %v5579 = vpop.permute.xlu0 %5578
        %5582 = vset.pattern.permute.xlu0 0
        %5583 = vperm.xlu0 %5582, %v5557
        %v5584 = vpop.permute.xlu0 %5583
        %5587 = vset.pattern.permute.xlu0 0
        %5588 = vperm.xlu0 %5587, %v5558
        %v5589 = vpop.permute.xlu0 %5588
        %5592 = vset.pattern.permute.xlu0 0
        %5593 = vperm.xlu0 %5592, %v5559
        %v5594 = vpop.permute.xlu0 %5593
        %5597 = vset.pattern.permute.xlu0 0
        %5598 = vperm.xlu0 %5597, %v5560
        %v5599 = vpop.permute.xlu0 %5598
        %5602 = vset.pattern.permute.xlu0 0
        %5603 = vperm.xlu0 %5602, %v5561
        %v5604 = vpop.permute.xlu0 %5603
        %5607 = vset.pattern.permute.xlu0 0
        %5608 = vperm.xlu0 %5607, %v5562
        %v5609 = vpop.permute.xlu0 %5608
        %5612 = vset.pattern.permute.xlu0 0
        %5613 = vperm.xlu0 %5612, %v5563
        %v5614 = vpop.permute.xlu0 %5613
        %5617 = vset.pattern.permute.xlu0 0
        %5618 = vperm.xlu0 %5617, %v5564
        %v5619 = vpop.permute.xlu0 %5618
        %5622 = vset.pattern.permute.xlu0 0
        %5623 = vperm.xlu0 %5622, %v5565
        %v5624 = vpop.permute.xlu0 %5623
        %5627 = vset.pattern.permute.xlu0 0
        %5628 = vperm.xlu0 %5627, %v5566
        %v5629 = vpop.permute.xlu0 %5628
        %5632 = vset.pattern.permute.xlu0 0
        %5633 = vperm.xlu0 %5632, %v5567
        %v5634 = vpop.permute.xlu0 %5633
        %5637 = vset.pattern.permute.xlu0 0
        %5638 = vperm.xlu0 %5637, %v5568
        %v5639 = vpop.permute.xlu0 %5638
        %5642 = vset.pattern.permute.xlu0 0
        %5643 = vperm.xlu0 %5642, %v5569
        %v5644 = vpop.permute.xlu0 %5643
        %5647 = vset.pattern.permute.xlu0 0
        %5648 = vperm.xlu0 %5647, %v5570
        %v5649 = vpop.permute.xlu0 %5648
        %v5651 = vadd.f32 %v2430, %v5574
        %v5652 = vadd.f32 %v2431, %v5579
        %v5653 = vadd.f32 %v2432, %v5584
        %v5654 = vadd.f32 %v2433, %v5589
        %v5655 = vadd.f32 %v2434, %v5594
        %v5656 = vadd.f32 %v2435, %v5599
        %v5657 = vadd.f32 %v2436, %v5604
        %v5658 = vadd.f32 %v2437, %v5609
        %v5659 = vadd.f32 %v2438, %v5614
        %v5660 = vadd.f32 %v2439, %v5619
        %v5661 = vadd.f32 %v2440, %v5624
        %v5662 = vadd.f32 %v2441, %v5629
        %v5663 = vadd.f32 %v2442, %v5634
        %v5664 = vadd.f32 %v2443, %v5639
        %v5665 = vadd.f32 %v2444, %v5644
        %v5666 = vadd.f32 %v2445, %v5649
        %s5667 = scalar_lea.vmem %s433, 128 [#allocation2]
        %5668 = vst.msk [vmem:[%s5667] sm:$0xff] %vm2994, %v5651
        %5669 = vst.msk [vmem:[%s5667 + $0x8] sm:$0xff] %vm2994, %v5652
        %5670 = vst.msk [vmem:[%s5667 + $0x10] sm:$0xff] %vm2994, %v5653
        %5671 = vst.msk [vmem:[%s5667 + $0x18] sm:$0xff] %vm2994, %v5654
        %5672 = vst.msk [vmem:[%s5667 + $0x20] sm:$0xff] %vm2994, %v5655
        %5673 = vst.msk [vmem:[%s5667 + $0x28] sm:$0xff] %vm2994, %v5656
        %5674 = vst.msk [vmem:[%s5667 + $0x30] sm:$0xff] %vm2994, %v5657
        %5675 = vst.msk [vmem:[%s5667 + $0x38] sm:$0xff] %vm2994, %v5658
        %5676 = vst.msk [vmem:[%s5667 + $0x40] sm:$0xff] %vm2994, %v5659
        %5677 = vst.msk [vmem:[%s5667 + $0x48] sm:$0xff] %vm2994, %v5660
        %5678 = vst.msk [vmem:[%s5667 + $0x50] sm:$0xff] %vm2994, %v5661
        %5679 = vst.msk [vmem:[%s5667 + $0x58] sm:$0xff] %vm2994, %v5662
        %5680 = vst.msk [vmem:[%s5667 + $0x60] sm:$0xff] %vm2994, %v5663
        %5681 = vst.msk [vmem:[%s5667 + $0x68] sm:$0xff] %vm2994, %v5664
        %5682 = vst.msk [vmem:[%s5667 + $0x70] sm:$0xff] %vm2994, %v5665
        %5683 = vst.msk [vmem:[%s5667 + $0x78] sm:$0xff] %vm2994, %v5666
        %s5684 = sand.u32 %s313, 1
        %s5685 = scalar_lea.sflag [#allocation3], %s5684
        %s5686 = sand.u32 %s313, 1
        %s5687 = smul.addr %s5686, 256
        %s5688 = scalar_lea.vmem [#allocation2], %s5687
        // Predicated region
        $region73: #{tpu_custom_call.1} parent=71 // pred_check
          %p5689 = pneg %p323
        $region74: #{tpu_custom_call.1} parent=71 // pred_check_branch
          %5691 = sbr.rel (%p5689) target = $region76
        $region75: #{tpu_custom_call.1} parent=71 // pred_region
          %s5693 = ssub.s32 4096, 4096
          %5694 = vsyncadd %s5685, %s5693
          %s5695 = smul.addr %s27, 32
          %s5696 = smul.addr %s5695, 128
          %s5697 = scalar_lea.hbm %s13, %s5696
          %s5698 = sshll.u32 %s5688, 4
          %s5699 = int_to_ptr.vmem [resolvable:$true] %s5698
          %5704 = dma.vmem_to_hbm [thread:$0]  %s5699, 4096, %s5697, %s5685, 128, 128, 8
        $region76: #{tpu_custom_call.1} parent=71 // pred_fallthru
          _
      $region72: #{tpu_custom_call.1} parent=5 // pred_fallthru
        _
      %p5705 = scmp.le.s32.totalorder 2, %s22
      // Predicated region
      $region77: #{tpu_custom_call.1} parent=5 // pred_check
        %p5706 = pneg %p5705
      $region78: #{tpu_custom_call.1} parent=5 // pred_check_branch
        %5708 = sbr.rel (%p5706) target = $region80
      $region79: #{tpu_custom_call.1} parent=5 // pred_region
        %s5709 = ssub.s32 %s22, 2
        // Predicated region
        $region81: #{tpu_custom_call.1} parent=79 // pred_check
          %p5710 = pneg %p329
        $region82: #{tpu_custom_call.1} parent=79 // pred_check_branch
          %5712 = sbr.rel (%p5710) target = $region84
        $region83: #{tpu_custom_call.1} parent=79 // pred_region
          %s5713 = sand.u32 %s314, 1
          %s5714 = scalar_lea.sflag [#allocation3], %s5713
          %s5715 = sand.u32 %s314, 1
          %s5716 = smul.addr %s5715, 256
          %s5717 = scalar_lea.vmem [#allocation2], %s5716
          %5718 = dma.done %s5714, 4096
        $region84: #{tpu_custom_call.1} parent=79 // pred_fallthru
          _
      $region80: #{tpu_custom_call.1} parent=5 // pred_fallthru
        _
    $region6: #{tpu_custom_call.1} parent=1 // loop_footer
      %s26 = sadd.s32 1, %s22
    $region7: #{tpu_custom_call.1} parent=1 // loop_footer_branch
      %21 = sbr.rel target = $region3
    $region8: #{tpu_custom_call.1} parent=1 // loop_exit
      _
    %5719 = vsyncpa [#allocation3], 1
    %s5720 = scalar_lea.sflag [#allocation3], 1
    %5721 = vsyncpa %s5720, 1

</llo_original>
